<compile_context>
chip_gen: v6e
topology: v6e:2x2x1
jax: 0.10.0
libtpu: 0.0.40
codegen_flags: <defaults>
</compile_context>

<pallas_src>
import functools

import jax
import jax.numpy as jnp
from jax.experimental import pallas as pl
from jax.experimental.pallas import tpu as pltpu

H = 50            # logical hidden size from the module
HP = 128          # padded per-gate block width == padded state width (one vreg)
HK = 64           # contraction width for the per-step h @ W_hh (covers H + bias row)
G = 4 * HP        # fused gate width: [i | f | g | o], each HP wide

_UNROLL_MAX_STEPS = 32   # fully unroll the teacher-forced loop up to this T


def _sequence_kernel(T, future,
                     x_ref, w_in_ref, b_in_ref, w_stack_ref, w_out_ref, b_out_ref,
                     out_ref,
                     zg_ref, h_ref):
    # Small params hoisted once (a handful of vregs).  The big stacked weight
    # matrix stays in VMEM and is read at its use sites.
    w_in = w_in_ref[...]          # (1, HP)
    b_in = b_in_ref[...]          # (1, HP)
    w_out = w_out_ref[...]        # (1, HP)
    b_out = b_out_ref[...]        # (1, 1)

    # Lane-dense, 128-padded output row: one unmasked init store.
    out_ref[...] = jnp.zeros_like(out_ref)

    # ---- Input path hoisted out of the recurrence: one batched matmul. ----
    # zg already includes b_ih + b_hh via W_ih's folded bias row (z[:, H] == 0.5
    # exactly, row H holds 2*b_g), so the recurrence has no bias add.
    z_all = jax.nn.sigmoid(x_ref[...] * w_in + b_in)                    # (T, HP)
    zg_ref[...] = jnp.dot(z_all, w_stack_ref[0:HP, :],
                          preferred_element_type=jnp.float32)           # (T, G)

    def lstm_cell(gates, c):
        # Each gate slice is exactly one 128-lane vreg, lane-aligned with h/c:
        # no XLU rotate on the per-step dependence chain.
        i_g = jax.nn.sigmoid(gates[:, 0 * HP:1 * HP])
        f_g = jax.nn.sigmoid(gates[:, 1 * HP:2 * HP])
        g_g = jnp.tanh(gates[:, 2 * HP:3 * HP])
        o_g = jax.nn.sigmoid(gates[:, 3 * HP:4 * HP])
        c_new = f_g * c + i_g * g_g
        h_new = o_g * jnp.tanh(c_new)
        return h_new, c_new

    def step_tf(zg_t, h, c):
        # Only the first HK hidden lanes feed the recurrence: lanes >= H of h
        # are identically zero and the matching W_hh rows are zero, so this is
        # exact while keeping the per-step RHS at (HK, G).
        hg = jnp.dot(h[:, 0:HK], w_stack_ref[HP:HP + HK, :],
                     preferred_element_type=jnp.float32)                # (1, G)
        return lstm_cell(zg_t + hg, c)

    h = jnp.zeros((1, HP), jnp.float32)
    c = jnp.zeros((1, HP), jnp.float32)

    # ---- Teacher-forced recurrence: only h @ W_hh is in-loop. ----
    if T <= _UNROLL_MAX_STEPS:
        # Small static trip count: full unroll, full LLO scheduling visibility.
        for t in range(T):
            h, c = step_tf(zg_ref[t:t + 1, :], h, c)
            h_ref[t:t + 1, :] = h          # stash h_t; output projection deferred
    else:
        # Non-toy T: bounded live ranges / imem via fori_loop with modest unroll.
        def body(t, carry):
            h_t, c_t = step_tf(zg_ref[pl.ds(t, 1), :], *carry)
            h_ref[pl.ds(t, 1), :] = h_t
            return (h_t, c_t)
        h, c = jax.lax.fori_loop(0, T, body, (h, c), unroll=8)

    # ---- Autoregressive feedback steps (output fed back as next input). ----
    if future > 0:
        last_out = jnp.sum(h * w_out, axis=-1, keepdims=True) + b_out   # y_{T-1}
        for j in range(future):
            z = jax.nn.sigmoid(last_out * w_in + b_in)                  # (1, HP)
            zh = jnp.concatenate([z, h], axis=1)                        # (1, 2*HP)
            # One fused MXU crossing per feedback step: z@W_ih (+bias) + h@W_hh.
            gates = jnp.dot(zh, w_stack_ref[...],
                            preferred_element_type=jnp.float32)         # (1, G)
            h, c = lstm_cell(gates, c)
            h_ref[T + j:T + j + 1, :] = h
            last_out = jnp.sum(h * w_out, axis=-1, keepdims=True) + b_out

    # ---- Deferred output projection for ALL steps: one matmul, one store. ----
    total = T + future
    outs = jax.lax.dot_general(
        w_out, h_ref[...], (((1,), (1,)), ((), ())),
        preferred_element_type=jnp.float32) + b_out                     # (1, total)
    out_ref[:, 0:total] = outs


def _pack_params(p):
    """Pad H -> HP, fuse the 4 gates into (HP, G) matrices, fold the LSTM bias.

    Zero padding keeps padded lanes of h/c exactly zero: padded gate
    pre-activations are 0 -> f=i=o=0.5, g=0 -> c_pad, h_pad stay 0.
    The fused bias is folded into (padded) row H of W_ih: z[:, H] is always
    sigmoid(0) == 0.5 exactly, so row H = 2*(b_ih + b_hh) reproduces the bias
    inside the gate matmul; b_g's padded gate columns are zero, preserving the
    padded-lane invariant.
    """
    f32 = jnp.float32
    w_in = jnp.zeros((1, HP), f32).at[:, :H].set(p["w_in"].astype(f32))
    b_in = jnp.zeros((1, HP), f32).at[:, :H].set(p["b_in"].astype(f32))
    w_out = jnp.zeros((1, HP), f32).at[:, :H].set(p["w_out"].astype(f32))
    b_out = p["b_out"].astype(f32)

    def fuse(w4):                      # (4, H, H) -> (HP, G), blocks i|f|g|o
        w = jnp.zeros((HP, G), f32)
        for k in range(4):
            w = w.at[:H, k * HP:k * HP + H].set(w4[k].astype(f32))
        return w

    w_ih = fuse(p["w_ih"])
    w_hh = fuse(p["w_hh"])

    b4 = (p["b_ih"] + p["b_hh"]).astype(f32)   # (4, 1, H) pre-summed LSTM biases
    b_g = jnp.zeros((1, G), f32)
    for k in range(4):
        b_g = b_g.at[:, k * HP:k * HP + H].set(b4[k])

    # Fold fused bias into padded row H of W_ih (see docstring).
    w_ih = w_ih.at[H, :].set(2.0 * b_g[0])

    # Stacked [W_ih(+bias) ; W_hh] -> single (2*HP, G) weight buffer.
    w_stack = jnp.concatenate([w_ih, w_hh], axis=0)
    return w_in, b_in, w_stack, w_out, b_out


def sequence_forward(x, params, future=0):
    """x: (T, 1) float32 scalar sequence (batch=1). Returns (T + future, 1)."""
    T = int(x.shape[0])
    if T < 1:
        raise ValueError("sequence_forward requires at least one input timestep")
    total = T + future
    total_pad = ((total + 127) // 128) * 128          # lane-dense output row
    w_in, b_in, w_stack, w_out, b_out = _pack_params(params)

    kernel = functools.partial(_sequence_kernel, T, future)
    vmem = pl.BlockSpec(memory_space=pltpu.MemorySpace.VMEM)
    out_row = pl.pallas_call(
        kernel,
        out_shape=jax.ShapeDtypeStruct((1, total_pad), jnp.float32),
        in_specs=[vmem] * 6,
        out_specs=vmem,
        scratch_shapes=[pltpu.VMEM((T, G), jnp.float32),        # zg = z W_ih (+bias)
                        pltpu.VMEM((total, HP), jnp.float32)],  # stacked h_t rows
    )(x.astype(jnp.float32), w_in, b_in, w_stack, w_out, b_out)
    # Lane-dense padded (1, total_pad) row -> module's (T+future, 1) layout.
    return out_row[:, :total].reshape(total, 1)


def init_params(key):
    """Deterministic synthetic parameters matching the module's shapes
    (PyTorch-style uniform(-1/sqrt(fan_in), 1/sqrt(fan_in)) init)."""
    ks = jax.random.split(key, 8)
    u = lambda k, shape, lim: jax.random.uniform(
        k, shape, jnp.float32, minval=-lim, maxval=lim)
    lim_in = 1.0                       # Linear(1, H): fan_in = 1
    lim_h = 1.0 / (H ** 0.5)           # LSTMCell / Linear(H, 1): fan_in = H
    return {
        "w_in": u(ks[0], (1, H), lim_in),        # Linear(1,H).weight^T
        "b_in": u(ks[1], (1, H), lim_in),        # Linear(1,H).bias
        "w_ih": u(ks[2], (4, H, H), lim_h),      # LSTMCell.weight_ih (i,f,g,o), transposed
        "b_ih": u(ks[3], (4, 1, H), lim_h),      # LSTMCell.bias_ih
        "w_hh": u(ks[4], (4, H, H), lim_h),      # LSTMCell.weight_hh, transposed
        "b_hh": u(ks[5], (4, 1, H), lim_h),      # LSTMCell.bias_hh
        "w_out": u(ks[6], (1, H), lim_h),        # Linear(H,1).weight
        "b_out": u(ks[7], (1, 1), lim_h),        # Linear(H,1).bias
    }


def sequence_ref(x, p, future=0):
    """Pure-JAX reference mirroring the PyTorch forward pass (unfused, unpadded)."""
    T = x.shape[0]
    h = jnp.zeros((1, H), jnp.float32)
    c = jnp.zeros((1, H), jnp.float32)
    out = jnp.zeros((1, 1), jnp.float32)
    outs = []
    for t in range(T + future):
        x_t = x[t:t + 1, :] if t < T else out
        z = jax.nn.sigmoid(x_t * p["w_in"] + p["b_in"])
        gates = [z @ p["w_ih"][k] + h @ p["w_hh"][k] + p["b_ih"][k] + p["b_hh"][k]
                 for k in range(4)]
        i_g = jax.nn.sigmoid(gates[0])
        f_g = jax.nn.sigmoid(gates[1])
        g_g = jnp.tanh(gates[2])
        o_g = jax.nn.sigmoid(gates[3])
        c = f_g * c + i_g * g_g
        h = o_g * jnp.tanh(c)
        out = jnp.sum(h * p["w_out"], axis=-1, keepdims=True) + p["b_out"]
        outs.append(out)
    return jnp.concatenate(outs, axis=0)


if __name__ == "__main__":
    key = jax.random.PRNGKey(0)
    kx, kp = jax.random.split(key)
    params = init_params(kp)

    # Case 1: small T -> fully unrolled recurrence path (matches module usage).
    T, future = 8, 4
    x = jax.random.normal(kx, (T, 1), jnp.float32)   # PyTorch inputs: (T, 1, 1); batch=1 squeezed
    out = jax.block_until_ready(sequence_forward(x, params, future=future))
    ref = sequence_ref(x, params, future=future)
    assert out.shape == (T + future, 1), out.shape
    assert bool(jnp.allclose(out, ref, atol=1e-4, rtol=1e-4)), (out, ref)

    # Case 2: longer T -> exercises the lax.fori_loop(unroll=8) recurrence path.
    T2, future2 = 48, 8
    x2 = jax.random.normal(jax.random.fold_in(kx, 1), (T2, 1), jnp.float32)
    out2 = jax.block_until_ready(sequence_forward(x2, params, future=future2))
    ref2 = sequence_ref(x2, params, future=future2)
    assert out2.shape == (T2 + future2, 1), out2.shape
    # Looser tolerance: f32 recurrent round-off accumulates over 56 steps.
    assert bool(jnp.allclose(out2, ref2, atol=1e-3, rtol=1e-3)), (out2, ref2)

    print("KERNEL_OK")
</pallas_src>

<mosaic_0001>
module attributes {stable_mosaic.version = 11 : i64} {
  func.func @_sequence_kernel(%arg0: memref<8x1xf32, #tpu.memory_space<vmem>>, %arg1: memref<1x128xf32, #tpu.memory_space<vmem>>, %arg2: memref<1x128xf32, #tpu.memory_space<vmem>>, %arg3: memref<256x512xf32, #tpu.memory_space<vmem>>, %arg4: memref<1x128xf32, #tpu.memory_space<vmem>>, %arg5: memref<1x1xf32, #tpu.memory_space<vmem>>, %arg6: memref<1x128xf32, #tpu.memory_space<vmem>>, %arg7: memref<8x512xf32, #tpu.memory_space<vmem>>, %arg8: memref<12x128xf32, #tpu.memory_space<vmem>>) attributes {dimension_semantics = [], scalar_prefetch = 0 : i64, scratch_operands = 2 : i64, tpu.core_type = #tpu.core_type<tc>} {
    %c0 = arith.constant 0 : index
    %c0_0 = arith.constant 0 : index
    %0 = vector.load %arg1[%c0, %c0_0] : memref<1x128xf32, #tpu.memory_space<vmem>>, vector<1x128xf32>
    %c0_1 = arith.constant 0 : index
    %c0_2 = arith.constant 0 : index
    %1 = vector.load %arg2[%c0_1, %c0_2] : memref<1x128xf32, #tpu.memory_space<vmem>>, vector<1x128xf32>
    %c0_3 = arith.constant 0 : index
    %c0_4 = arith.constant 0 : index
    %2 = vector.load %arg4[%c0_3, %c0_4] : memref<1x128xf32, #tpu.memory_space<vmem>>, vector<1x128xf32>
    %c0_5 = arith.constant 0 : index
    %c0_6 = arith.constant 0 : index
    %3 = vector.load %arg5[%c0_5, %c0_6] : memref<1x1xf32, #tpu.memory_space<vmem>>, vector<1x1xf32>
    %cst = arith.constant 0.000000e+00 : f32
    %4 = vector.broadcast %cst : f32 to vector<1x128xf32>
    %c0_7 = arith.constant 0 : index
    %c0_8 = arith.constant 0 : index
    %5 = vector.load %arg6[%c0_7, %c0_8] : memref<1x128xf32, #tpu.memory_space<vmem>>, vector<1x128xf32>
    tpu.vector_store %arg6[%c0_7, %c0_8], %4 {strides = array<i32>} : memref<1x128xf32, #tpu.memory_space<vmem>>, vector<1x128xf32>,
    %c0_9 = arith.constant 0 : index
    %c0_10 = arith.constant 0 : index
    %6 = vector.load %arg0[%c0_9, %c0_10] : memref<8x1xf32, #tpu.memory_space<vmem>>, vector<8x1xf32>
    %7 = vector.broadcast %6 : vector<8x1xf32> to vector<8x128xf32>
    %8 = vector.broadcast %0 : vector<1x128xf32> to vector<8x128xf32>
    %9 = arith.mulf %7, %8 : vector<8x128xf32>
    %10 = vector.broadcast %1 : vector<1x128xf32> to vector<8x128xf32>
    %11 = arith.addf %9, %10 : vector<8x128xf32>
    %12 = arith.negf %11 : vector<8x128xf32>
    %13 = math.exp %12 : vector<8x128xf32>
    %cst_11 = arith.constant 1.000000e+00 : f32
    %14 = vector.broadcast %cst_11 : f32 to vector<8x128xf32>
    %15 = arith.addf %14, %13 : vector<8x128xf32>
    %16 = arith.divf %14, %15 : vector<8x128xf32>
    %c0_12 = arith.constant 0 : index
    %c0_13 = arith.constant 0 : index
    %17 = vector.load %arg3[%c0_12, %c0_13] : memref<256x512xf32, #tpu.memory_space<vmem>>, vector<128x512xf32>
    %cst_14 = arith.constant dense<0.000000e+00> : vector<8x512xf32>
    %18 = tpu.matmul %16, %17, %cst_14 {dimension_numbers = #tpu.dot_dimension_numbers<[1], [0], [0], [1], [0, 0, 1, 1], [], []>} : vector<8x128xf32>, vector<128x512xf32>, vector<8x512xf32> -> vector<8x512xf32>
    %c0_15 = arith.constant 0 : index
    %c0_16 = arith.constant 0 : index
    %19 = vector.load %arg7[%c0_15, %c0_16] : memref<8x512xf32, #tpu.memory_space<vmem>>, vector<8x512xf32>
    tpu.vector_store %arg7[%c0_15, %c0_16], %18 {strides = array<i32>} : memref<8x512xf32, #tpu.memory_space<vmem>>, vector<8x512xf32>,
    %cst_17 = arith.constant 0.000000e+00 : f32
    %20 = vector.broadcast %cst_17 : f32 to vector<1x128xf32>
    %cst_18 = arith.constant 0.000000e+00 : f32
    %21 = vector.broadcast %cst_18 : f32 to vector<1x128xf32>
    %c0_19 = arith.constant 0 : index
    %c0_20 = arith.constant 0 : index
    %22 = vector.load %arg7[%c0_19, %c0_20] : memref<8x512xf32, #tpu.memory_space<vmem>>, vector<1x512xf32>
    %23 = vector.extract_strided_slice %20 {offsets = [0, 0], sizes = [1, 64], strides = [1, 1]} : vector<1x128xf32> to vector<1x64xf32>
    %c128 = arith.constant 128 : index
    %c0_21 = arith.constant 0 : index
    %24 = vector.load %arg3[%c128, %c0_21] : memref<256x512xf32, #tpu.memory_space<vmem>>, vector<64x512xf32>
    %cst_22 = arith.constant dense<0.000000e+00> : vector<1x512xf32>
    %25 = tpu.matmul %23, %24, %cst_22 {dimension_numbers = #tpu.dot_dimension_numbers<[1], [0], [0], [1], [0, 0, 1, 1], [], []>} : vector<1x64xf32>, vector<64x512xf32>, vector<1x512xf32> -> vector<1x512xf32>
    %26 = arith.addf %22, %25 : vector<1x512xf32>
    %27 = vector.extract_strided_slice %26 {offsets = [0, 0], sizes = [1, 128], strides = [1, 1]} : vector<1x512xf32> to vector<1x128xf32>
    %28 = arith.negf %27 : vector<1x128xf32>
    %29 = math.exp %28 : vector<1x128xf32>
    %cst_23 = arith.constant 1.000000e+00 : f32
    %30 = vector.broadcast %cst_23 : f32 to vector<1x128xf32>
    %31 = arith.addf %30, %29 : vector<1x128xf32>
    %32 = arith.divf %30, %31 : vector<1x128xf32>
    %33 = vector.extract_strided_slice %26 {offsets = [0, 128], sizes = [1, 128], strides = [1, 1]} : vector<1x512xf32> to vector<1x128xf32>
    %34 = arith.negf %33 : vector<1x128xf32>
    %35 = math.exp %34 : vector<1x128xf32>
    %cst_24 = arith.constant 1.000000e+00 : f32
    %36 = vector.broadcast %cst_24 : f32 to vector<1x128xf32>
    %37 = arith.addf %36, %35 : vector<1x128xf32>
    %38 = arith.divf %36, %37 : vector<1x128xf32>
    %39 = vector.extract_strided_slice %26 {offsets = [0, 256], sizes = [1, 128], strides = [1, 1]} : vector<1x512xf32> to vector<1x128xf32>
    %40 = math.tanh %39 : vector<1x128xf32>
    %41 = vector.extract_strided_slice %26 {offsets = [0, 384], sizes = [1, 128], strides = [1, 1]} : vector<1x512xf32> to vector<1x128xf32>
    %42 = arith.negf %41 : vector<1x128xf32>
    %43 = math.exp %42 : vector<1x128xf32>
    %cst_25 = arith.constant 1.000000e+00 : f32
    %44 = vector.broadcast %cst_25 : f32 to vector<1x128xf32>
    %45 = arith.addf %44, %43 : vector<1x128xf32>
    %46 = arith.divf %44, %45 : vector<1x128xf32>
    %47 = arith.mulf %38, %21 : vector<1x128xf32>
    %48 = arith.mulf %32, %40 : vector<1x128xf32>
    %49 = arith.addf %47, %48 : vector<1x128xf32>
    %50 = math.tanh %49 : vector<1x128xf32>
    %51 = arith.mulf %46, %50 : vector<1x128xf32>
    %c0_26 = arith.constant 0 : index
    %c0_27 = arith.constant 0 : index
    %52 = vector.load %arg8[%c0_26, %c0_27] : memref<12x128xf32, #tpu.memory_space<vmem>>, vector<1x128xf32>
    tpu.vector_store %arg8[%c0_26, %c0_27], %51 {strides = array<i32>} : memref<12x128xf32, #tpu.memory_space<vmem>>, vector<1x128xf32>,
    %c1 = arith.constant 1 : index
    %c0_28 = arith.constant 0 : index
    %53 = vector.load %arg7[%c1, %c0_28] : memref<8x512xf32, #tpu.memory_space<vmem>>, vector<1x512xf32>
    %54 = vector.extract_strided_slice %51 {offsets = [0, 0], sizes = [1, 64], strides = [1, 1]} : vector<1x128xf32> to vector<1x64xf32>
    %c128_29 = arith.constant 128 : index
    %c0_30 = arith.constant 0 : index
    %55 = vector.load %arg3[%c128_29, %c0_30] : memref<256x512xf32, #tpu.memory_space<vmem>>, vector<64x512xf32>
    %cst_31 = arith.constant dense<0.000000e+00> : vector<1x512xf32>
    %56 = tpu.matmul %54, %55, %cst_31 {dimension_numbers = #tpu.dot_dimension_numbers<[1], [0], [0], [1], [0, 0, 1, 1], [], []>} : vector<1x64xf32>, vector<64x512xf32>, vector<1x512xf32> -> vector<1x512xf32>
    %57 = arith.addf %53, %56 : vector<1x512xf32>
    %58 = vector.extract_strided_slice %57 {offsets = [0, 0], sizes = [1, 128], strides = [1, 1]} : vector<1x512xf32> to vector<1x128xf32>
    %59 = arith.negf %58 : vector<1x128xf32>
    %60 = math.exp %59 : vector<1x128xf32>
    %cst_32 = arith.constant 1.000000e+00 : f32
    %61 = vector.broadcast %cst_32 : f32 to vector<1x128xf32>
    %62 = arith.addf %61, %60 : vector<1x128xf32>
    %63 = arith.divf %61, %62 : vector<1x128xf32>
    %64 = vector.extract_strided_slice %57 {offsets = [0, 128], sizes = [1, 128], strides = [1, 1]} : vector<1x512xf32> to vector<1x128xf32>
    %65 = arith.negf %64 : vector<1x128xf32>
    %66 = math.exp %65 : vector<1x128xf32>
    %cst_33 = arith.constant 1.000000e+00 : f32
    %67 = vector.broadcast %cst_33 : f32 to vector<1x128xf32>
    %68 = arith.addf %67, %66 : vector<1x128xf32>
    %69 = arith.divf %67, %68 : vector<1x128xf32>
    %70 = vector.extract_strided_slice %57 {offsets = [0, 256], sizes = [1, 128], strides = [1, 1]} : vector<1x512xf32> to vector<1x128xf32>
    %71 = math.tanh %70 : vector<1x128xf32>
    %72 = vector.extract_strided_slice %57 {offsets = [0, 384], sizes = [1, 128], strides = [1, 1]} : vector<1x512xf32> to vector<1x128xf32>
    %73 = arith.negf %72 : vector<1x128xf32>
    %74 = math.exp %73 : vector<1x128xf32>
    %cst_34 = arith.constant 1.000000e+00 : f32
    %75 = vector.broadcast %cst_34 : f32 to vector<1x128xf32>
    %76 = arith.addf %75, %74 : vector<1x128xf32>
    %77 = arith.divf %75, %76 : vector<1x128xf32>
    %78 = arith.mulf %69, %49 : vector<1x128xf32>
    %79 = arith.mulf %63, %71 : vector<1x128xf32>
    %80 = arith.addf %78, %79 : vector<1x128xf32>
    %81 = math.tanh %80 : vector<1x128xf32>
    %82 = arith.mulf %77, %81 : vector<1x128xf32>
    %c1_35 = arith.constant 1 : index
    %c0_36 = arith.constant 0 : index
    %83 = vector.load %arg8[%c1_35, %c0_36] : memref<12x128xf32, #tpu.memory_space<vmem>>, vector<1x128xf32>
    tpu.vector_store %arg8[%c1_35, %c0_36], %82 {strides = array<i32>} : memref<12x128xf32, #tpu.memory_space<vmem>>, vector<1x128xf32>,
    %c2 = arith.constant 2 : index
    %c0_37 = arith.constant 0 : index
    %84 = vector.load %arg7[%c2, %c0_37] : memref<8x512xf32, #tpu.memory_space<vmem>>, vector<1x512xf32>
    %85 = vector.extract_strided_slice %82 {offsets = [0, 0], sizes = [1, 64], strides = [1, 1]} : vector<1x128xf32> to vector<1x64xf32>
    %c128_38 = arith.constant 128 : index
    %c0_39 = arith.constant 0 : index
    %86 = vector.load %arg3[%c128_38, %c0_39] : memref<256x512xf32, #tpu.memory_space<vmem>>, vector<64x512xf32>
    %cst_40 = arith.constant dense<0.000000e+00> : vector<1x512xf32>
    %87 = tpu.matmul %85, %86, %cst_40 {dimension_numbers = #tpu.dot_dimension_numbers<[1], [0], [0], [1], [0, 0, 1, 1], [], []>} : vector<1x64xf32>, vector<64x512xf32>, vector<1x512xf32> -> vector<1x512xf32>
    %88 = arith.addf %84, %87 : vector<1x512xf32>
    %89 = vector.extract_strided_slice %88 {offsets = [0, 0], sizes = [1, 128], strides = [1, 1]} : vector<1x512xf32> to vector<1x128xf32>
    %90 = arith.negf %89 : vector<1x128xf32>
    %91 = math.exp %90 : vector<1x128xf32>
    %cst_41 = arith.constant 1.000000e+00 : f32
    %92 = vector.broadcast %cst_41 : f32 to vector<1x128xf32>
    %93 = arith.addf %92, %91 : vector<1x128xf32>
    %94 = arith.divf %92, %93 : vector<1x128xf32>
    %95 = vector.extract_strided_slice %88 {offsets = [0, 128], sizes = [1, 128], strides = [1, 1]} : vector<1x512xf32> to vector<1x128xf32>
    %96 = arith.negf %95 : vector<1x128xf32>
    %97 = math.exp %96 : vector<1x128xf32>
    %cst_42 = arith.constant 1.000000e+00 : f32
    %98 = vector.broadcast %cst_42 : f32 to vector<1x128xf32>
    %99 = arith.addf %98, %97 : vector<1x128xf32>
    %100 = arith.divf %98, %99 : vector<1x128xf32>
    %101 = vector.extract_strided_slice %88 {offsets = [0, 256], sizes = [1, 128], strides = [1, 1]} : vector<1x512xf32> to vector<1x128xf32>
    %102 = math.tanh %101 : vector<1x128xf32>
    %103 = vector.extract_strided_slice %88 {offsets = [0, 384], sizes = [1, 128], strides = [1, 1]} : vector<1x512xf32> to vector<1x128xf32>
    %104 = arith.negf %103 : vector<1x128xf32>
    %105 = math.exp %104 : vector<1x128xf32>
    %cst_43 = arith.constant 1.000000e+00 : f32
    %106 = vector.broadcast %cst_43 : f32 to vector<1x128xf32>
    %107 = arith.addf %106, %105 : vector<1x128xf32>
    %108 = arith.divf %106, %107 : vector<1x128xf32>
    %109 = arith.mulf %100, %80 : vector<1x128xf32>
    %110 = arith.mulf %94, %102 : vector<1x128xf32>
    %111 = arith.addf %109, %110 : vector<1x128xf32>
    %112 = math.tanh %111 : vector<1x128xf32>
    %113 = arith.mulf %108, %112 : vector<1x128xf32>
    %c2_44 = arith.constant 2 : index
    %c0_45 = arith.constant 0 : index
    %114 = vector.load %arg8[%c2_44, %c0_45] : memref<12x128xf32, #tpu.memory_space<vmem>>, vector<1x128xf32>
    tpu.vector_store %arg8[%c2_44, %c0_45], %113 {strides = array<i32>} : memref<12x128xf32, #tpu.memory_space<vmem>>, vector<1x128xf32>,
    %c3 = arith.constant 3 : index
    %c0_46 = arith.constant 0 : index
    %115 = vector.load %arg7[%c3, %c0_46] : memref<8x512xf32, #tpu.memory_space<vmem>>, vector<1x512xf32>
    %116 = vector.extract_strided_slice %113 {offsets = [0, 0], sizes = [1, 64], strides = [1, 1]} : vector<1x128xf32> to vector<1x64xf32>
    %c128_47 = arith.constant 128 : index
    %c0_48 = arith.constant 0 : index
    %117 = vector.load %arg3[%c128_47, %c0_48] : memref<256x512xf32, #tpu.memory_space<vmem>>, vector<64x512xf32>
    %cst_49 = arith.constant dense<0.000000e+00> : vector<1x512xf32>
    %118 = tpu.matmul %116, %117, %cst_49 {dimension_numbers = #tpu.dot_dimension_numbers<[1], [0], [0], [1], [0, 0, 1, 1], [], []>} : vector<1x64xf32>, vector<64x512xf32>, vector<1x512xf32> -> vector<1x512xf32>
    %119 = arith.addf %115, %118 : vector<1x512xf32>
    %120 = vector.extract_strided_slice %119 {offsets = [0, 0], sizes = [1, 128], strides = [1, 1]} : vector<1x512xf32> to vector<1x128xf32>
    %121 = arith.negf %120 : vector<1x128xf32>
    %122 = math.exp %121 : vector<1x128xf32>
    %cst_50 = arith.constant 1.000000e+00 : f32
    %123 = vector.broadcast %cst_50 : f32 to vector<1x128xf32>
    %124 = arith.addf %123, %122 : vector<1x128xf32>
    %125 = arith.divf %123, %124 : vector<1x128xf32>
    %126 = vector.extract_strided_slice %119 {offsets = [0, 128], sizes = [1, 128], strides = [1, 1]} : vector<1x512xf32> to vector<1x128xf32>
    %127 = arith.negf %126 : vector<1x128xf32>
    %128 = math.exp %127 : vector<1x128xf32>
    %cst_51 = arith.constant 1.000000e+00 : f32
    %129 = vector.broadcast %cst_51 : f32 to vector<1x128xf32>
    %130 = arith.addf %129, %128 : vector<1x128xf32>
    %131 = arith.divf %129, %130 : vector<1x128xf32>
    %132 = vector.extract_strided_slice %119 {offsets = [0, 256], sizes = [1, 128], strides = [1, 1]} : vector<1x512xf32> to vector<1x128xf32>
    %133 = math.tanh %132 : vector<1x128xf32>
    %134 = vector.extract_strided_slice %119 {offsets = [0, 384], sizes = [1, 128], strides = [1, 1]} : vector<1x512xf32> to vector<1x128xf32>
    %135 = arith.negf %134 : vector<1x128xf32>
    %136 = math.exp %135 : vector<1x128xf32>
    %cst_52 = arith.constant 1.000000e+00 : f32
    %137 = vector.broadcast %cst_52 : f32 to vector<1x128xf32>
    %138 = arith.addf %137, %136 : vector<1x128xf32>
    %139 = arith.divf %137, %138 : vector<1x128xf32>
    %140 = arith.mulf %131, %111 : vector<1x128xf32>
    %141 = arith.mulf %125, %133 : vector<1x128xf32>
    %142 = arith.addf %140, %141 : vector<1x128xf32>
    %143 = math.tanh %142 : vector<1x128xf32>
    %144 = arith.mulf %139, %143 : vector<1x128xf32>
    %c3_53 = arith.constant 3 : index
    %c0_54 = arith.constant 0 : index
    %145 = vector.load %arg8[%c3_53, %c0_54] : memref<12x128xf32, #tpu.memory_space<vmem>>, vector<1x128xf32>
    tpu.vector_store %arg8[%c3_53, %c0_54], %144 {strides = array<i32>} : memref<12x128xf32, #tpu.memory_space<vmem>>, vector<1x128xf32>,
    %c4 = arith.constant 4 : index
    %c0_55 = arith.constant 0 : index
    %146 = vector.load %arg7[%c4, %c0_55] : memref<8x512xf32, #tpu.memory_space<vmem>>, vector<1x512xf32>
    %147 = vector.extract_strided_slice %144 {offsets = [0, 0], sizes = [1, 64], strides = [1, 1]} : vector<1x128xf32> to vector<1x64xf32>
    %c128_56 = arith.constant 128 : index
    %c0_57 = arith.constant 0 : index
    %148 = vector.load %arg3[%c128_56, %c0_57] : memref<256x512xf32, #tpu.memory_space<vmem>>, vector<64x512xf32>
    %cst_58 = arith.constant dense<0.000000e+00> : vector<1x512xf32>
    %149 = tpu.matmul %147, %148, %cst_58 {dimension_numbers = #tpu.dot_dimension_numbers<[1], [0], [0], [1], [0, 0, 1, 1], [], []>} : vector<1x64xf32>, vector<64x512xf32>, vector<1x512xf32> -> vector<1x512xf32>
    %150 = arith.addf %146, %149 : vector<1x512xf32>
    %151 = vector.extract_strided_slice %150 {offsets = [0, 0], sizes = [1, 128], strides = [1, 1]} : vector<1x512xf32> to vector<1x128xf32>
    %152 = arith.negf %151 : vector<1x128xf32>
    %153 = math.exp %152 : vector<1x128xf32>
    %cst_59 = arith.constant 1.000000e+00 : f32
    %154 = vector.broadcast %cst_59 : f32 to vector<1x128xf32>
    %155 = arith.addf %154, %153 : vector<1x128xf32>
    %156 = arith.divf %154, %155 : vector<1x128xf32>
    %157 = vector.extract_strided_slice %150 {offsets = [0, 128], sizes = [1, 128], strides = [1, 1]} : vector<1x512xf32> to vector<1x128xf32>
    %158 = arith.negf %157 : vector<1x128xf32>
    %159 = math.exp %158 : vector<1x128xf32>
    %cst_60 = arith.constant 1.000000e+00 : f32
    %160 = vector.broadcast %cst_60 : f32 to vector<1x128xf32>
    %161 = arith.addf %160, %159 : vector<1x128xf32>
    %162 = arith.divf %160, %161 : vector<1x128xf32>
    %163 = vector.extract_strided_slice %150 {offsets = [0, 256], sizes = [1, 128], strides = [1, 1]} : vector<1x512xf32> to vector<1x128xf32>
    %164 = math.tanh %163 : vector<1x128xf32>
    %165 = vector.extract_strided_slice %150 {offsets = [0, 384], sizes = [1, 128], strides = [1, 1]} : vector<1x512xf32> to vector<1x128xf32>
    %166 = arith.negf %165 : vector<1x128xf32>
    %167 = math.exp %166 : vector<1x128xf32>
    %cst_61 = arith.constant 1.000000e+00 : f32
    %168 = vector.broadcast %cst_61 : f32 to vector<1x128xf32>
    %169 = arith.addf %168, %167 : vector<1x128xf32>
    %170 = arith.divf %168, %169 : vector<1x128xf32>
    %171 = arith.mulf %162, %142 : vector<1x128xf32>
    %172 = arith.mulf %156, %164 : vector<1x128xf32>
    %173 = arith.addf %171, %172 : vector<1x128xf32>
    %174 = math.tanh %173 : vector<1x128xf32>
    %175 = arith.mulf %170, %174 : vector<1x128xf32>
    %c4_62 = arith.constant 4 : index
    %c0_63 = arith.constant 0 : index
    %176 = vector.load %arg8[%c4_62, %c0_63] : memref<12x128xf32, #tpu.memory_space<vmem>>, vector<1x128xf32>
    tpu.vector_store %arg8[%c4_62, %c0_63], %175 {strides = array<i32>} : memref<12x128xf32, #tpu.memory_space<vmem>>, vector<1x128xf32>,
    %c5 = arith.constant 5 : index
    %c0_64 = arith.constant 0 : index
    %177 = vector.load %arg7[%c5, %c0_64] : memref<8x512xf32, #tpu.memory_space<vmem>>, vector<1x512xf32>
    %178 = vector.extract_strided_slice %175 {offsets = [0, 0], sizes = [1, 64], strides = [1, 1]} : vector<1x128xf32> to vector<1x64xf32>
    %c128_65 = arith.constant 128 : index
    %c0_66 = arith.constant 0 : index
    %179 = vector.load %arg3[%c128_65, %c0_66] : memref<256x512xf32, #tpu.memory_space<vmem>>, vector<64x512xf32>
    %cst_67 = arith.constant dense<0.000000e+00> : vector<1x512xf32>
    %180 = tpu.matmul %178, %179, %cst_67 {dimension_numbers = #tpu.dot_dimension_numbers<[1], [0], [0], [1], [0, 0, 1, 1], [], []>} : vector<1x64xf32>, vector<64x512xf32>, vector<1x512xf32> -> vector<1x512xf32>
    %181 = arith.addf %177, %180 : vector<1x512xf32>
    %182 = vector.extract_strided_slice %181 {offsets = [0, 0], sizes = [1, 128], strides = [1, 1]} : vector<1x512xf32> to vector<1x128xf32>
    %183 = arith.negf %182 : vector<1x128xf32>
    %184 = math.exp %183 : vector<1x128xf32>
    %cst_68 = arith.constant 1.000000e+00 : f32
    %185 = vector.broadcast %cst_68 : f32 to vector<1x128xf32>
    %186 = arith.addf %185, %184 : vector<1x128xf32>
    %187 = arith.divf %185, %186 : vector<1x128xf32>
    %188 = vector.extract_strided_slice %181 {offsets = [0, 128], sizes = [1, 128], strides = [1, 1]} : vector<1x512xf32> to vector<1x128xf32>
    %189 = arith.negf %188 : vector<1x128xf32>
    %190 = math.exp %189 : vector<1x128xf32>
    %cst_69 = arith.constant 1.000000e+00 : f32
    %191 = vector.broadcast %cst_69 : f32 to vector<1x128xf32>
    %192 = arith.addf %191, %190 : vector<1x128xf32>
    %193 = arith.divf %191, %192 : vector<1x128xf32>
    %194 = vector.extract_strided_slice %181 {offsets = [0, 256], sizes = [1, 128], strides = [1, 1]} : vector<1x512xf32> to vector<1x128xf32>
    %195 = math.tanh %194 : vector<1x128xf32>
    %196 = vector.extract_strided_slice %181 {offsets = [0, 384], sizes = [1, 128], strides = [1, 1]} : vector<1x512xf32> to vector<1x128xf32>
    %197 = arith.negf %196 : vector<1x128xf32>
    %198 = math.exp %197 : vector<1x128xf32>
    %cst_70 = arith.constant 1.000000e+00 : f32
    %199 = vector.broadcast %cst_70 : f32 to vector<1x128xf32>
    %200 = arith.addf %199, %198 : vector<1x128xf32>
    %201 = arith.divf %199, %200 : vector<1x128xf32>
    %202 = arith.mulf %193, %173 : vector<1x128xf32>
    %203 = arith.mulf %187, %195 : vector<1x128xf32>
    %204 = arith.addf %202, %203 : vector<1x128xf32>
    %205 = math.tanh %204 : vector<1x128xf32>
    %206 = arith.mulf %201, %205 : vector<1x128xf32>
    %c5_71 = arith.constant 5 : index
    %c0_72 = arith.constant 0 : index
    %207 = vector.load %arg8[%c5_71, %c0_72] : memref<12x128xf32, #tpu.memory_space<vmem>>, vector<1x128xf32>
    tpu.vector_store %arg8[%c5_71, %c0_72], %206 {strides = array<i32>} : memref<12x128xf32, #tpu.memory_space<vmem>>, vector<1x128xf32>,
    %c6 = arith.constant 6 : index
    %c0_73 = arith.constant 0 : index
    %208 = vector.load %arg7[%c6, %c0_73] : memref<8x512xf32, #tpu.memory_space<vmem>>, vector<1x512xf32>
    %209 = vector.extract_strided_slice %206 {offsets = [0, 0], sizes = [1, 64], strides = [1, 1]} : vector<1x128xf32> to vector<1x64xf32>
    %c128_74 = arith.constant 128 : index
    %c0_75 = arith.constant 0 : index
    %210 = vector.load %arg3[%c128_74, %c0_75] : memref<256x512xf32, #tpu.memory_space<vmem>>, vector<64x512xf32>
    %cst_76 = arith.constant dense<0.000000e+00> : vector<1x512xf32>
    %211 = tpu.matmul %209, %210, %cst_76 {dimension_numbers = #tpu.dot_dimension_numbers<[1], [0], [0], [1], [0, 0, 1, 1], [], []>} : vector<1x64xf32>, vector<64x512xf32>, vector<1x512xf32> -> vector<1x512xf32>
    %212 = arith.addf %208, %211 : vector<1x512xf32>
    %213 = vector.extract_strided_slice %212 {offsets = [0, 0], sizes = [1, 128], strides = [1, 1]} : vector<1x512xf32> to vector<1x128xf32>
    %214 = arith.negf %213 : vector<1x128xf32>
    %215 = math.exp %214 : vector<1x128xf32>
    %cst_77 = arith.constant 1.000000e+00 : f32
    %216 = vector.broadcast %cst_77 : f32 to vector<1x128xf32>
    %217 = arith.addf %216, %215 : vector<1x128xf32>
    %218 = arith.divf %216, %217 : vector<1x128xf32>
    %219 = vector.extract_strided_slice %212 {offsets = [0, 128], sizes = [1, 128], strides = [1, 1]} : vector<1x512xf32> to vector<1x128xf32>
    %220 = arith.negf %219 : vector<1x128xf32>
    %221 = math.exp %220 : vector<1x128xf32>
    %cst_78 = arith.constant 1.000000e+00 : f32
    %222 = vector.broadcast %cst_78 : f32 to vector<1x128xf32>
    %223 = arith.addf %222, %221 : vector<1x128xf32>
    %224 = arith.divf %222, %223 : vector<1x128xf32>
    %225 = vector.extract_strided_slice %212 {offsets = [0, 256], sizes = [1, 128], strides = [1, 1]} : vector<1x512xf32> to vector<1x128xf32>
    %226 = math.tanh %225 : vector<1x128xf32>
    %227 = vector.extract_strided_slice %212 {offsets = [0, 384], sizes = [1, 128], strides = [1, 1]} : vector<1x512xf32> to vector<1x128xf32>
    %228 = arith.negf %227 : vector<1x128xf32>
    %229 = math.exp %228 : vector<1x128xf32>
    %cst_79 = arith.constant 1.000000e+00 : f32
    %230 = vector.broadcast %cst_79 : f32 to vector<1x128xf32>
    %231 = arith.addf %230, %229 : vector<1x128xf32>
    %232 = arith.divf %230, %231 : vector<1x128xf32>
    %233 = arith.mulf %224, %204 : vector<1x128xf32>
    %234 = arith.mulf %218, %226 : vector<1x128xf32>
    %235 = arith.addf %233, %234 : vector<1x128xf32>
    %236 = math.tanh %235 : vector<1x128xf32>
    %237 = arith.mulf %232, %236 : vector<1x128xf32>
    %c6_80 = arith.constant 6 : index
    %c0_81 = arith.constant 0 : index
    %238 = vector.load %arg8[%c6_80, %c0_81] : memref<12x128xf32, #tpu.memory_space<vmem>>, vector<1x128xf32>
    tpu.vector_store %arg8[%c6_80, %c0_81], %237 {strides = array<i32>} : memref<12x128xf32, #tpu.memory_space<vmem>>, vector<1x128xf32>,
    %c7 = arith.constant 7 : index
    %c0_82 = arith.constant 0 : index
    %239 = vector.load %arg7[%c7, %c0_82] : memref<8x512xf32, #tpu.memory_space<vmem>>, vector<1x512xf32>
    %240 = vector.extract_strided_slice %237 {offsets = [0, 0], sizes = [1, 64], strides = [1, 1]} : vector<1x128xf32> to vector<1x64xf32>
    %c128_83 = arith.constant 128 : index
    %c0_84 = arith.constant 0 : index
    %241 = vector.load %arg3[%c128_83, %c0_84] : memref<256x512xf32, #tpu.memory_space<vmem>>, vector<64x512xf32>
    %cst_85 = arith.constant dense<0.000000e+00> : vector<1x512xf32>
    %242 = tpu.matmul %240, %241, %cst_85 {dimension_numbers = #tpu.dot_dimension_numbers<[1], [0], [0], [1], [0, 0, 1, 1], [], []>} : vector<1x64xf32>, vector<64x512xf32>, vector<1x512xf32> -> vector<1x512xf32>
    %243 = arith.addf %239, %242 : vector<1x512xf32>
    %244 = vector.extract_strided_slice %243 {offsets = [0, 0], sizes = [1, 128], strides = [1, 1]} : vector<1x512xf32> to vector<1x128xf32>
    %245 = arith.negf %244 : vector<1x128xf32>
    %246 = math.exp %245 : vector<1x128xf32>
    %cst_86 = arith.constant 1.000000e+00 : f32
    %247 = vector.broadcast %cst_86 : f32 to vector<1x128xf32>
    %248 = arith.addf %247, %246 : vector<1x128xf32>
    %249 = arith.divf %247, %248 : vector<1x128xf32>
    %250 = vector.extract_strided_slice %243 {offsets = [0, 128], sizes = [1, 128], strides = [1, 1]} : vector<1x512xf32> to vector<1x128xf32>
    %251 = arith.negf %250 : vector<1x128xf32>
    %252 = math.exp %251 : vector<1x128xf32>
    %cst_87 = arith.constant 1.000000e+00 : f32
    %253 = vector.broadcast %cst_87 : f32 to vector<1x128xf32>
    %254 = arith.addf %253, %252 : vector<1x128xf32>
    %255 = arith.divf %253, %254 : vector<1x128xf32>
    %256 = vector.extract_strided_slice %243 {offsets = [0, 256], sizes = [1, 128], strides = [1, 1]} : vector<1x512xf32> to vector<1x128xf32>
    %257 = math.tanh %256 : vector<1x128xf32>
    %258 = vector.extract_strided_slice %243 {offsets = [0, 384], sizes = [1, 128], strides = [1, 1]} : vector<1x512xf32> to vector<1x128xf32>
    %259 = arith.negf %258 : vector<1x128xf32>
    %260 = math.exp %259 : vector<1x128xf32>
    %cst_88 = arith.constant 1.000000e+00 : f32
    %261 = vector.broadcast %cst_88 : f32 to vector<1x128xf32>
    %262 = arith.addf %261, %260 : vector<1x128xf32>
    %263 = arith.divf %261, %262 : vector<1x128xf32>
    %264 = arith.mulf %255, %235 : vector<1x128xf32>
    %265 = arith.mulf %249, %257 : vector<1x128xf32>
    %266 = arith.addf %264, %265 : vector<1x128xf32>
    %267 = math.tanh %266 : vector<1x128xf32>
    %268 = arith.mulf %263, %267 : vector<1x128xf32>
    %c7_89 = arith.constant 7 : index
    %c0_90 = arith.constant 0 : index
    %269 = vector.load %arg8[%c7_89, %c0_90] : memref<12x128xf32, #tpu.memory_space<vmem>>, vector<1x128xf32>
    tpu.vector_store %arg8[%c7_89, %c0_90], %268 {strides = array<i32>} : memref<12x128xf32, #tpu.memory_space<vmem>>, vector<1x128xf32>,
    %270 = arith.mulf %268, %2 : vector<1x128xf32>
    %cst_91 = arith.constant dense<0.000000e+00> : vector<1xf32>
    %271 = vector.multi_reduction <add>, %270, %cst_91 [1] : vector<1x128xf32> to vector<1xf32>
    %272 = vector.shape_cast %271 : vector<1xf32> to vector<1x1xf32>
    %273 = arith.addf %272, %3 : vector<1x1xf32>
    %274 = vector.broadcast %273 : vector<1x1xf32> to vector<1x128xf32>
    %275 = arith.mulf %274, %0 : vector<1x128xf32>
    %276 = arith.addf %275, %1 : vector<1x128xf32>
    %277 = arith.negf %276 : vector<1x128xf32>
    %278 = math.exp %277 : vector<1x128xf32>
    %cst_92 = arith.constant 1.000000e+00 : f32
    %279 = vector.broadcast %cst_92 : f32 to vector<1x128xf32>
    %280 = arith.addf %279, %278 : vector<1x128xf32>
    %281 = arith.divf %279, %280 : vector<1x128xf32>
    %282 = tpu.concatenate %281, %268 in 1 : vector<1x128xf32>, vector<1x128xf32> -> vector<1x256xf32>
    %c0_93 = arith.constant 0 : index
    %c0_94 = arith.constant 0 : index
    %283 = vector.load %arg3[%c0_93, %c0_94] : memref<256x512xf32, #tpu.memory_space<vmem>>, vector<256x512xf32>
    %cst_95 = arith.constant dense<0.000000e+00> : vector<1x512xf32>
    %284 = tpu.matmul %282, %283, %cst_95 {dimension_numbers = #tpu.dot_dimension_numbers<[1], [0], [0], [1], [0, 0, 1, 1], [], []>} : vector<1x256xf32>, vector<256x512xf32>, vector<1x512xf32> -> vector<1x512xf32>
    %285 = vector.extract_strided_slice %284 {offsets = [0, 0], sizes = [1, 128], strides = [1, 1]} : vector<1x512xf32> to vector<1x128xf32>
    %286 = arith.negf %285 : vector<1x128xf32>
    %287 = math.exp %286 : vector<1x128xf32>
    %cst_96 = arith.constant 1.000000e+00 : f32
    %288 = vector.broadcast %cst_96 : f32 to vector<1x128xf32>
    %289 = arith.addf %288, %287 : vector<1x128xf32>
    %290 = arith.divf %288, %289 : vector<1x128xf32>
    %291 = vector.extract_strided_slice %284 {offsets = [0, 128], sizes = [1, 128], strides = [1, 1]} : vector<1x512xf32> to vector<1x128xf32>
    %292 = arith.negf %291 : vector<1x128xf32>
    %293 = math.exp %292 : vector<1x128xf32>
    %cst_97 = arith.constant 1.000000e+00 : f32
    %294 = vector.broadcast %cst_97 : f32 to vector<1x128xf32>
    %295 = arith.addf %294, %293 : vector<1x128xf32>
    %296 = arith.divf %294, %295 : vector<1x128xf32>
    %297 = vector.extract_strided_slice %284 {offsets = [0, 256], sizes = [1, 128], strides = [1, 1]} : vector<1x512xf32> to vector<1x128xf32>
    %298 = math.tanh %297 : vector<1x128xf32>
    %299 = vector.extract_strided_slice %284 {offsets = [0, 384], sizes = [1, 128], strides = [1, 1]} : vector<1x512xf32> to vector<1x128xf32>
    %300 = arith.negf %299 : vector<1x128xf32>
    %301 = math.exp %300 : vector<1x128xf32>
    %cst_98 = arith.constant 1.000000e+00 : f32
    %302 = vector.broadcast %cst_98 : f32 to vector<1x128xf32>
    %303 = arith.addf %302, %301 : vector<1x128xf32>
    %304 = arith.divf %302, %303 : vector<1x128xf32>
    %305 = arith.mulf %296, %266 : vector<1x128xf32>
    %306 = arith.mulf %290, %298 : vector<1x128xf32>
    %307 = arith.addf %305, %306 : vector<1x128xf32>
    %308 = math.tanh %307 : vector<1x128xf32>
    %309 = arith.mulf %304, %308 : vector<1x128xf32>
    %c8 = arith.constant 8 : index
    %c0_99 = arith.constant 0 : index
    %310 = vector.load %arg8[%c8, %c0_99] : memref<12x128xf32, #tpu.memory_space<vmem>>, vector<1x128xf32>
    tpu.vector_store %arg8[%c8, %c0_99], %309 {strides = array<i32>} : memref<12x128xf32, #tpu.memory_space<vmem>>, vector<1x128xf32>,
    %311 = arith.mulf %309, %2 : vector<1x128xf32>
    %cst_100 = arith.constant dense<0.000000e+00> : vector<1xf32>
    %312 = vector.multi_reduction <add>, %311, %cst_100 [1] : vector<1x128xf32> to vector<1xf32>
    %313 = vector.shape_cast %312 : vector<1xf32> to vector<1x1xf32>
    %314 = arith.addf %313, %3 : vector<1x1xf32>
    %315 = vector.broadcast %314 : vector<1x1xf32> to vector<1x128xf32>
    %316 = arith.mulf %315, %0 : vector<1x128xf32>
    %317 = arith.addf %316, %1 : vector<1x128xf32>
    %318 = arith.negf %317 : vector<1x128xf32>
    %319 = math.exp %318 : vector<1x128xf32>
    %cst_101 = arith.constant 1.000000e+00 : f32
    %320 = vector.broadcast %cst_101 : f32 to vector<1x128xf32>
    %321 = arith.addf %320, %319 : vector<1x128xf32>
    %322 = arith.divf %320, %321 : vector<1x128xf32>
    %323 = tpu.concatenate %322, %309 in 1 : vector<1x128xf32>, vector<1x128xf32> -> vector<1x256xf32>
    %c0_102 = arith.constant 0 : index
    %c0_103 = arith.constant 0 : index
    %324 = vector.load %arg3[%c0_102, %c0_103] : memref<256x512xf32, #tpu.memory_space<vmem>>, vector<256x512xf32>
    %cst_104 = arith.constant dense<0.000000e+00> : vector<1x512xf32>
    %325 = tpu.matmul %323, %324, %cst_104 {dimension_numbers = #tpu.dot_dimension_numbers<[1], [0], [0], [1], [0, 0, 1, 1], [], []>} : vector<1x256xf32>, vector<256x512xf32>, vector<1x512xf32> -> vector<1x512xf32>
    %326 = vector.extract_strided_slice %325 {offsets = [0, 0], sizes = [1, 128], strides = [1, 1]} : vector<1x512xf32> to vector<1x128xf32>
    %327 = arith.negf %326 : vector<1x128xf32>
    %328 = math.exp %327 : vector<1x128xf32>
    %cst_105 = arith.constant 1.000000e+00 : f32
    %329 = vector.broadcast %cst_105 : f32 to vector<1x128xf32>
    %330 = arith.addf %329, %328 : vector<1x128xf32>
    %331 = arith.divf %329, %330 : vector<1x128xf32>
    %332 = vector.extract_strided_slice %325 {offsets = [0, 128], sizes = [1, 128], strides = [1, 1]} : vector<1x512xf32> to vector<1x128xf32>
    %333 = arith.negf %332 : vector<1x128xf32>
    %334 = math.exp %333 : vector<1x128xf32>
    %cst_106 = arith.constant 1.000000e+00 : f32
    %335 = vector.broadcast %cst_106 : f32 to vector<1x128xf32>
    %336 = arith.addf %335, %334 : vector<1x128xf32>
    %337 = arith.divf %335, %336 : vector<1x128xf32>
    %338 = vector.extract_strided_slice %325 {offsets = [0, 256], sizes = [1, 128], strides = [1, 1]} : vector<1x512xf32> to vector<1x128xf32>
    %339 = math.tanh %338 : vector<1x128xf32>
    %340 = vector.extract_strided_slice %325 {offsets = [0, 384], sizes = [1, 128], strides = [1, 1]} : vector<1x512xf32> to vector<1x128xf32>
    %341 = arith.negf %340 : vector<1x128xf32>
    %342 = math.exp %341 : vector<1x128xf32>
    %cst_107 = arith.constant 1.000000e+00 : f32
    %343 = vector.broadcast %cst_107 : f32 to vector<1x128xf32>
    %344 = arith.addf %343, %342 : vector<1x128xf32>
    %345 = arith.divf %343, %344 : vector<1x128xf32>
    %346 = arith.mulf %337, %307 : vector<1x128xf32>
    %347 = arith.mulf %331, %339 : vector<1x128xf32>
    %348 = arith.addf %346, %347 : vector<1x128xf32>
    %349 = math.tanh %348 : vector<1x128xf32>
    %350 = arith.mulf %345, %349 : vector<1x128xf32>
    %c9 = arith.constant 9 : index
    %c0_108 = arith.constant 0 : index
    %351 = vector.load %arg8[%c9, %c0_108] : memref<12x128xf32, #tpu.memory_space<vmem>>, vector<1x128xf32>
    tpu.vector_store %arg8[%c9, %c0_108], %350 {strides = array<i32>} : memref<12x128xf32, #tpu.memory_space<vmem>>, vector<1x128xf32>,
    %352 = arith.mulf %350, %2 : vector<1x128xf32>
    %cst_109 = arith.constant dense<0.000000e+00> : vector<1xf32>
    %353 = vector.multi_reduction <add>, %352, %cst_109 [1] : vector<1x128xf32> to vector<1xf32>
    %354 = vector.shape_cast %353 : vector<1xf32> to vector<1x1xf32>
    %355 = arith.addf %354, %3 : vector<1x1xf32>
    %356 = vector.broadcast %355 : vector<1x1xf32> to vector<1x128xf32>
    %357 = arith.mulf %356, %0 : vector<1x128xf32>
    %358 = arith.addf %357, %1 : vector<1x128xf32>
    %359 = arith.negf %358 : vector<1x128xf32>
    %360 = math.exp %359 : vector<1x128xf32>
    %cst_110 = arith.constant 1.000000e+00 : f32
    %361 = vector.broadcast %cst_110 : f32 to vector<1x128xf32>
    %362 = arith.addf %361, %360 : vector<1x128xf32>
    %363 = arith.divf %361, %362 : vector<1x128xf32>
    %364 = tpu.concatenate %363, %350 in 1 : vector<1x128xf32>, vector<1x128xf32> -> vector<1x256xf32>
    %c0_111 = arith.constant 0 : index
    %c0_112 = arith.constant 0 : index
    %365 = vector.load %arg3[%c0_111, %c0_112] : memref<256x512xf32, #tpu.memory_space<vmem>>, vector<256x512xf32>
    %cst_113 = arith.constant dense<0.000000e+00> : vector<1x512xf32>
    %366 = tpu.matmul %364, %365, %cst_113 {dimension_numbers = #tpu.dot_dimension_numbers<[1], [0], [0], [1], [0, 0, 1, 1], [], []>} : vector<1x256xf32>, vector<256x512xf32>, vector<1x512xf32> -> vector<1x512xf32>
    %367 = vector.extract_strided_slice %366 {offsets = [0, 0], sizes = [1, 128], strides = [1, 1]} : vector<1x512xf32> to vector<1x128xf32>
    %368 = arith.negf %367 : vector<1x128xf32>
    %369 = math.exp %368 : vector<1x128xf32>
    %cst_114 = arith.constant 1.000000e+00 : f32
    %370 = vector.broadcast %cst_114 : f32 to vector<1x128xf32>
    %371 = arith.addf %370, %369 : vector<1x128xf32>
    %372 = arith.divf %370, %371 : vector<1x128xf32>
    %373 = vector.extract_strided_slice %366 {offsets = [0, 128], sizes = [1, 128], strides = [1, 1]} : vector<1x512xf32> to vector<1x128xf32>
    %374 = arith.negf %373 : vector<1x128xf32>
    %375 = math.exp %374 : vector<1x128xf32>
    %cst_115 = arith.constant 1.000000e+00 : f32
    %376 = vector.broadcast %cst_115 : f32 to vector<1x128xf32>
    %377 = arith.addf %376, %375 : vector<1x128xf32>
    %378 = arith.divf %376, %377 : vector<1x128xf32>
    %379 = vector.extract_strided_slice %366 {offsets = [0, 256], sizes = [1, 128], strides = [1, 1]} : vector<1x512xf32> to vector<1x128xf32>
    %380 = math.tanh %379 : vector<1x128xf32>
    %381 = vector.extract_strided_slice %366 {offsets = [0, 384], sizes = [1, 128], strides = [1, 1]} : vector<1x512xf32> to vector<1x128xf32>
    %382 = arith.negf %381 : vector<1x128xf32>
    %383 = math.exp %382 : vector<1x128xf32>
    %cst_116 = arith.constant 1.000000e+00 : f32
    %384 = vector.broadcast %cst_116 : f32 to vector<1x128xf32>
    %385 = arith.addf %384, %383 : vector<1x128xf32>
    %386 = arith.divf %384, %385 : vector<1x128xf32>
    %387 = arith.mulf %378, %348 : vector<1x128xf32>
    %388 = arith.mulf %372, %380 : vector<1x128xf32>
    %389 = arith.addf %387, %388 : vector<1x128xf32>
    %390 = math.tanh %389 : vector<1x128xf32>
    %391 = arith.mulf %386, %390 : vector<1x128xf32>
    %c10 = arith.constant 10 : index
    %c0_117 = arith.constant 0 : index
    %392 = vector.load %arg8[%c10, %c0_117] : memref<12x128xf32, #tpu.memory_space<vmem>>, vector<1x128xf32>
    tpu.vector_store %arg8[%c10, %c0_117], %391 {strides = array<i32>} : memref<12x128xf32, #tpu.memory_space<vmem>>, vector<1x128xf32>,
    %393 = arith.mulf %391, %2 : vector<1x128xf32>
    %cst_118 = arith.constant dense<0.000000e+00> : vector<1xf32>
    %394 = vector.multi_reduction <add>, %393, %cst_118 [1] : vector<1x128xf32> to vector<1xf32>
    %395 = vector.shape_cast %394 : vector<1xf32> to vector<1x1xf32>
    %396 = arith.addf %395, %3 : vector<1x1xf32>
    %397 = vector.broadcast %396 : vector<1x1xf32> to vector<1x128xf32>
    %398 = arith.mulf %397, %0 : vector<1x128xf32>
    %399 = arith.addf %398, %1 : vector<1x128xf32>
    %400 = arith.negf %399 : vector<1x128xf32>
    %401 = math.exp %400 : vector<1x128xf32>
    %cst_119 = arith.constant 1.000000e+00 : f32
    %402 = vector.broadcast %cst_119 : f32 to vector<1x128xf32>
    %403 = arith.addf %402, %401 : vector<1x128xf32>
    %404 = arith.divf %402, %403 : vector<1x128xf32>
    %405 = tpu.concatenate %404, %391 in 1 : vector<1x128xf32>, vector<1x128xf32> -> vector<1x256xf32>
    %c0_120 = arith.constant 0 : index
    %c0_121 = arith.constant 0 : index
    %406 = vector.load %arg3[%c0_120, %c0_121] : memref<256x512xf32, #tpu.memory_space<vmem>>, vector<256x512xf32>
    %cst_122 = arith.constant dense<0.000000e+00> : vector<1x512xf32>
    %407 = tpu.matmul %405, %406, %cst_122 {dimension_numbers = #tpu.dot_dimension_numbers<[1], [0], [0], [1], [0, 0, 1, 1], [], []>} : vector<1x256xf32>, vector<256x512xf32>, vector<1x512xf32> -> vector<1x512xf32>
    %408 = vector.extract_strided_slice %407 {offsets = [0, 0], sizes = [1, 128], strides = [1, 1]} : vector<1x512xf32> to vector<1x128xf32>
    %409 = arith.negf %408 : vector<1x128xf32>
    %410 = math.exp %409 : vector<1x128xf32>
    %cst_123 = arith.constant 1.000000e+00 : f32
    %411 = vector.broadcast %cst_123 : f32 to vector<1x128xf32>
    %412 = arith.addf %411, %410 : vector<1x128xf32>
    %413 = arith.divf %411, %412 : vector<1x128xf32>
    %414 = vector.extract_strided_slice %407 {offsets = [0, 128], sizes = [1, 128], strides = [1, 1]} : vector<1x512xf32> to vector<1x128xf32>
    %415 = arith.negf %414 : vector<1x128xf32>
    %416 = math.exp %415 : vector<1x128xf32>
    %cst_124 = arith.constant 1.000000e+00 : f32
    %417 = vector.broadcast %cst_124 : f32 to vector<1x128xf32>
    %418 = arith.addf %417, %416 : vector<1x128xf32>
    %419 = arith.divf %417, %418 : vector<1x128xf32>
    %420 = vector.extract_strided_slice %407 {offsets = [0, 256], sizes = [1, 128], strides = [1, 1]} : vector<1x512xf32> to vector<1x128xf32>
    %421 = math.tanh %420 : vector<1x128xf32>
    %422 = vector.extract_strided_slice %407 {offsets = [0, 384], sizes = [1, 128], strides = [1, 1]} : vector<1x512xf32> to vector<1x128xf32>
    %423 = arith.negf %422 : vector<1x128xf32>
    %424 = math.exp %423 : vector<1x128xf32>
    %cst_125 = arith.constant 1.000000e+00 : f32
    %425 = vector.broadcast %cst_125 : f32 to vector<1x128xf32>
    %426 = arith.addf %425, %424 : vector<1x128xf32>
    %427 = arith.divf %425, %426 : vector<1x128xf32>
    %428 = arith.mulf %419, %389 : vector<1x128xf32>
    %429 = arith.mulf %413, %421 : vector<1x128xf32>
    %430 = arith.addf %428, %429 : vector<1x128xf32>
    %431 = math.tanh %430 : vector<1x128xf32>
    %432 = arith.mulf %427, %431 : vector<1x128xf32>
    %c11 = arith.constant 11 : index
    %c0_126 = arith.constant 0 : index
    %433 = vector.load %arg8[%c11, %c0_126] : memref<12x128xf32, #tpu.memory_space<vmem>>, vector<1x128xf32>
    tpu.vector_store %arg8[%c11, %c0_126], %432 {strides = array<i32>} : memref<12x128xf32, #tpu.memory_space<vmem>>, vector<1x128xf32>,
    %c0_127 = arith.constant 0 : index
    %c0_128 = arith.constant 0 : index
    %434 = vector.load %arg8[%c0_127, %c0_128] : memref<12x128xf32, #tpu.memory_space<vmem>>, vector<12x128xf32>
    %cst_129 = arith.constant dense<0.000000e+00> : vector<1x12xf32>
    %435 = tpu.matmul %2, %434, %cst_129 {dimension_numbers = #tpu.dot_dimension_numbers<[1], [1], [0], [0], [0, 0, 1, 0], [], []>} : vector<1x128xf32>, vector<12x128xf32>, vector<1x12xf32> -> vector<1x12xf32>
    %436 = vector.broadcast %3 : vector<1x1xf32> to vector<1x12xf32>
    %437 = arith.addf %435, %436 : vector<1x12xf32>
    %c0_130 = arith.constant 0 : index
    %c0_131 = arith.constant 0 : index
    %438 = vector.load %arg6[%c0_130, %c0_131] : memref<1x128xf32, #tpu.memory_space<vmem>>, vector<1x12xf32>
    tpu.vector_store %arg6[%c0_130, %c0_131], %437 {strides = array<i32>} : memref<1x128xf32, #tpu.memory_space<vmem>>, vector<1x12xf32>,
    return
  }
}

</mosaic_0001>

<llo_original>
// kernel: tpu_custom_call.1
$region0: #{tpu_custom_call.1}
  #allocation0 [shape = 'u32[]', space=smem, size = 0x4, offset = 0x4, fixed_abs, tag = 'smem constant byte address 0x4 - core index']
  #allocation1 [shape = 'u32[144,128]{1,0:T(1,128)}', space=vmem, size = 0x12000, scoped, tag = 'internal scratch']
  #allocation2 [shape = 'f32[8,512]{1,0:T(8,128)}', space=vmem, size = 0x4000, scoped, tag = 'scratch operand']
  #allocation3 [shape = 'f32[12,128]{1,0:T(8,128)}', space=vmem, size = 0x2000, scoped, tag = 'scratch operand']
  #allocation4 [shape = 'f32[1,1]{1,0:T(1,128)S(1)}', space=vmem, size = 0x200, scoped, tag = 'scoped memory for tpu_custom_call.1']
  %s0 = inlined_call_operand.vmem [shape: f32[8,1], index: 0, kind: input, shape index: {}]
  %s1 = inlined_call_operand.vmem [shape: f32[1,128], index: 1, kind: input, shape index: {}]
  %s2 = inlined_call_operand.vmem [shape: f32[1,128], index: 2, kind: input, shape index: {}]
  %s3 = inlined_call_operand.hbm [shape: f32[256,512], index: 3, kind: input, shape index: {}]
  %s4 = inlined_call_operand.vmem [shape: f32[1,128], index: 4, kind: input, shape index: {}]
  %s5 = inlined_call_operand.<no memory space> [shape: f32[1,1], index: 5, kind: input, shape index: {}]
  %s6 = inlined_call_operand.hbm [shape: f32[1,128], index: 6, kind: output, shape index: {}]
  %s7 = sld [smem:[#allocation0]]
  $region38: #{tpu_custom_call.1} parent=0
    _
  %s9 = ssub.s32 1, %s7
  %s10 = scalar_select 0, %s9, %s7
  %v11 = vstv %s5
  %12 = vst [vmem:[#allocation4] sm:$0x1] %v11
  $region1: #{tpu_custom_call.1} parent=0
    #allocation5 [shape = 'u8[524288]{0}', space=vmem, size = 0x80000, scoped, tag = 'input window, operand 3, single buffered']
    #allocation6 [shape = 's32[1]{0}', space=sflag, size = 0x4, scoped, tag = 'scoped memory for tpu_custom_call.1']
    #allocation7 [shape = 's32[1]{0}', space=sflag, size = 0x4, scoped, tag = 'scoped memory for tpu_custom_call.1']
    #allocation8 [shape = 'u8[512]{0}', space=vmem, size = 0x400, scoped, tag = 'output window, operand 0, single buffered']
    %13 = vsyncpa [#allocation6], 0
    %14 = vsyncpa [#allocation7], 0
    // Predicated region
    $region2: #{tpu_custom_call.1} parent=1 // pred_check
      _
    $region3: #{tpu_custom_call.1} parent=1 // pred_check_branch
      %16 = sbr.rel (0) target = $region5
    $region4: #{tpu_custom_call.1} parent=1 // pred_region
      _
    $region5: #{tpu_custom_call.1} parent=1 // pred_fallthru
      _
    // Predicated region
    $region6: #{tpu_custom_call.1} parent=1 // pred_check
      _
    $region7: #{tpu_custom_call.1} parent=1 // pred_check_branch
      %18 = sbr.rel (0) target = $region9
    $region8: #{tpu_custom_call.1} parent=1 // pred_region
      _
    $region9: #{tpu_custom_call.1} parent=1 // pred_fallthru
      _
    // Predicated region
    $region10: #{tpu_custom_call.1} parent=1 // pred_check
      _
    $region11: #{tpu_custom_call.1} parent=1 // pred_check_branch
      %20 = sbr.rel (0) target = $region13
    $region12: #{tpu_custom_call.1} parent=1 // pred_region
      _
    $region13: #{tpu_custom_call.1} parent=1 // pred_fallthru
      _
    // Predicated region
    $region14: #{tpu_custom_call.1} parent=1 // pred_check
      _
    $region15: #{tpu_custom_call.1} parent=1 // pred_check_branch
      %22 = sbr.rel (0) target = $region17
    $region16: #{tpu_custom_call.1} parent=1 // pred_region
      %s24 = ssub.s32 16384, 16384
      %25 = vsyncadd [#allocation6], %s24
      %s26 = sshll.u32 [#allocation5], 4
      %s27 = int_to_ptr.vmem [resolvable:$true] %s26
      %32 = dma.hbm_to_vmem [thread:$0]  %s3, 16384, %s27, [#allocation6], 512, 512, 32
    $region17: #{tpu_custom_call.1} parent=1 // pred_fallthru
      _
    // Predicated region
    $region18: #{tpu_custom_call.1} parent=1 // pred_check
      _
    $region19: #{tpu_custom_call.1} parent=1 // pred_check_branch
      %34 = sbr.rel (0) target = $region21
    $region20: #{tpu_custom_call.1} parent=1 // pred_region
      _
    $region21: #{tpu_custom_call.1} parent=1 // pred_fallthru
      _
    // Predicated region
    $region22: #{tpu_custom_call.1} parent=1 // pred_check
      _
    $region23: #{tpu_custom_call.1} parent=1 // pred_check_branch
      %36 = sbr.rel (0) target = $region25
    $region24: #{tpu_custom_call.1} parent=1 // pred_region
      _
    $region25: #{tpu_custom_call.1} parent=1 // pred_fallthru
      _
    // Predicated region
    $region26: #{tpu_custom_call.1} parent=1 // pred_check
      _
    $region27: #{tpu_custom_call.1} parent=1 // pred_check_branch
      %38 = sbr.rel (0) target = $region29
    $region28: #{tpu_custom_call.1} parent=1 // pred_region
      %39 = dma.done [#allocation6], 16384
    $region29: #{tpu_custom_call.1} parent=1 // pred_fallthru
      _
    %v40 = vld [vmem:[%s1] sm:$0x1]
    %v41 = vld [vmem:[%s2] sm:$0x1]
    %v42 = vld [vmem:[%s4] sm:$0x1]
    %v43 = vld [vmem:[#allocation4] sm:$0x1]
    %44 = vst [vmem:[#allocation8] sm:$0x1] 0.0
    %v45 = vld [vmem:[%s0] sm:$0xff]
    %47 = vset.pattern.permute.xlu0 0
    %48 = vperm.xlu0 %47, %v45
    %v49 = vpop.permute.xlu0 %48
    %v52 = vlaneseq
    %v53 = vshrl.u32 %v52, 7
    %v54 = vsub.s32 0, %v53
    %v55 = vrot.slane %v40, %v54
    %v57 = vmul.f32 %v49, %v55
    %v59 = vlaneseq
    %v60 = vshrl.u32 %v59, 7
    %v61 = vsub.s32 0, %v60
    %v62 = vrot.slane %v41, %v61
    %v64 = vadd.f32 %v57, %v62
    %v65 = vxor.u32 %v64, 2147483648
    %v66 = vmul.f32 %v65, 1.442695
    %v67 = vpow.pop %v66
    %v68 = vadd.f32 %v67, 1.0
    %v69 = vrcp.pop %v68
    %v70 = vmul.f32 1.0, %v69
    %v71 = vld [vmem:[#allocation5] sm:$0xff]
    %v72 = vld [vmem:[#allocation5 + $0x8] sm:$0xff]
    %v73 = vld [vmem:[#allocation5 + $0x10] sm:$0xff]
    %v74 = vld [vmem:[#allocation5 + $0x18] sm:$0xff]
    %v75 = vld [vmem:[#allocation5 + $0x20] sm:$0xff]
    %v76 = vld [vmem:[#allocation5 + $0x28] sm:$0xff]
    %v77 = vld [vmem:[#allocation5 + $0x30] sm:$0xff]
    %v78 = vld [vmem:[#allocation5 + $0x38] sm:$0xff]
    %v79 = vld [vmem:[#allocation5 + $0x40] sm:$0xff]
    %v80 = vld [vmem:[#allocation5 + $0x48] sm:$0xff]
    %v81 = vld [vmem:[#allocation5 + $0x50] sm:$0xff]
    %v82 = vld [vmem:[#allocation5 + $0x58] sm:$0xff]
    %v83 = vld [vmem:[#allocation5 + $0x60] sm:$0xff]
    %v84 = vld [vmem:[#allocation5 + $0x68] sm:$0xff]
    %v85 = vld [vmem:[#allocation5 + $0x70] sm:$0xff]
    %v86 = vld [vmem:[#allocation5 + $0x78] sm:$0xff]
    %v87 = vld [vmem:[#allocation5 + $0x80] sm:$0xff]
    %v88 = vld [vmem:[#allocation5 + $0x88] sm:$0xff]
    %v89 = vld [vmem:[#allocation5 + $0x90] sm:$0xff]
    %v90 = vld [vmem:[#allocation5 + $0x98] sm:$0xff]
    %v91 = vld [vmem:[#allocation5 + $0xa0] sm:$0xff]
    %v92 = vld [vmem:[#allocation5 + $0xa8] sm:$0xff]
    %v93 = vld [vmem:[#allocation5 + $0xb0] sm:$0xff]
    %v94 = vld [vmem:[#allocation5 + $0xb8] sm:$0xff]
    %v95 = vld [vmem:[#allocation5 + $0xc0] sm:$0xff]
    %v96 = vld [vmem:[#allocation5 + $0xc8] sm:$0xff]
    %v97 = vld [vmem:[#allocation5 + $0xd0] sm:$0xff]
    %v98 = vld [vmem:[#allocation5 + $0xd8] sm:$0xff]
    %v99 = vld [vmem:[#allocation5 + $0xe0] sm:$0xff]
    %v100 = vld [vmem:[#allocation5 + $0xe8] sm:$0xff]
    %v101 = vld [vmem:[#allocation5 + $0xf0] sm:$0xff]
    %v102 = vld [vmem:[#allocation5 + $0xf8] sm:$0xff]
    %v103 = vld [vmem:[#allocation5 + $0x100] sm:$0xff]
    %v104 = vld [vmem:[#allocation5 + $0x108] sm:$0xff]
    %v105 = vld [vmem:[#allocation5 + $0x110] sm:$0xff]
    %v106 = vld [vmem:[#allocation5 + $0x118] sm:$0xff]
    %v107 = vld [vmem:[#allocation5 + $0x120] sm:$0xff]
    %v108 = vld [vmem:[#allocation5 + $0x128] sm:$0xff]
    %v109 = vld [vmem:[#allocation5 + $0x130] sm:$0xff]
    %v110 = vld [vmem:[#allocation5 + $0x138] sm:$0xff]
    %v111 = vld [vmem:[#allocation5 + $0x140] sm:$0xff]
    %v112 = vld [vmem:[#allocation5 + $0x148] sm:$0xff]
    %v113 = vld [vmem:[#allocation5 + $0x150] sm:$0xff]
    %v114 = vld [vmem:[#allocation5 + $0x158] sm:$0xff]
    %v115 = vld [vmem:[#allocation5 + $0x160] sm:$0xff]
    %v116 = vld [vmem:[#allocation5 + $0x168] sm:$0xff]
    %v117 = vld [vmem:[#allocation5 + $0x170] sm:$0xff]
    %v118 = vld [vmem:[#allocation5 + $0x178] sm:$0xff]
    %v119 = vld [vmem:[#allocation5 + $0x180] sm:$0xff]
    %v120 = vld [vmem:[#allocation5 + $0x188] sm:$0xff]
    %v121 = vld [vmem:[#allocation5 + $0x190] sm:$0xff]
    %v122 = vld [vmem:[#allocation5 + $0x198] sm:$0xff]
    %v123 = vld [vmem:[#allocation5 + $0x1a0] sm:$0xff]
    %v124 = vld [vmem:[#allocation5 + $0x1a8] sm:$0xff]
    %v125 = vld [vmem:[#allocation5 + $0x1b0] sm:$0xff]
    %v126 = vld [vmem:[#allocation5 + $0x1b8] sm:$0xff]
    %v127 = vld [vmem:[#allocation5 + $0x1c0] sm:$0xff]
    %v128 = vld [vmem:[#allocation5 + $0x1c8] sm:$0xff]
    %v129 = vld [vmem:[#allocation5 + $0x1d0] sm:$0xff]
    %v130 = vld [vmem:[#allocation5 + $0x1d8] sm:$0xff]
    %v131 = vld [vmem:[#allocation5 + $0x1e0] sm:$0xff]
    %v132 = vld [vmem:[#allocation5 + $0x1e8] sm:$0xff]
    %v133 = vld [vmem:[#allocation5 + $0x1f0] sm:$0xff]
    %v134 = vld [vmem:[#allocation5 + $0x1f8] sm:$0xff]
    %135 = vmatprep.subr.mxu0 %v132
    %136 = vmatpush1.msra.mxu0 %v131
    %137 = vmatprep.subr.mxu0 %v128
    %138 = vmatpush1.msra.mxu0 %v127
    %139 = vmatprep.subr.mxu0 %v124
    %140 = vmatpush1.msra.mxu0 %v123
    %141 = vmatprep.subr.mxu0 %v120
    %142 = vmatpush1.msra.mxu0 %v119
    %143 = vmatprep.subr.mxu0 %v116
    %144 = vmatpush1.msra.mxu0 %v115
    %145 = vmatprep.subr.mxu0 %v112
    %146 = vmatpush1.msra.mxu0 %v111
    %147 = vmatprep.subr.mxu0 %v108
    %148 = vmatpush1.msra.mxu0 %v107
    %149 = vmatprep.subr.mxu0 %v104
    %150 = vmatpush1.msra.mxu0 %v103
    %151 = vmatprep.subr.mxu0 %v100
    %152 = vmatpush1.msra.mxu0 %v99
    %153 = vmatprep.subr.mxu0 %v96
    %154 = vmatpush1.msra.mxu0 %v95
    %155 = vmatprep.subr.mxu0 %v92
    %156 = vmatpush1.msra.mxu0 %v91
    %157 = vmatprep.subr.mxu0 %v88
    %158 = vmatpush1.msra.mxu0 %v87
    %159 = vmatprep.subr.mxu0 %v84
    %160 = vmatpush1.msra.mxu0 %v83
    %161 = vmatprep.subr.mxu0 %v80
    %162 = vmatpush1.msra.mxu0 %v79
    %163 = vmatprep.subr.mxu0 %v76
    %164 = vmatpush1.msra.mxu0 %v75
    %165 = vmatprep.subr.mxu0 %v72
    %166 = vmatpush1.msra.mxu0 %v71
    %167 = vmatprep.subr.mxu0 0.0
    %168 = vmatpush2.msra.mxu0 0.0
    %169 = vmatprep.subr.mxu0 0.0
    %170 = vmatpush2.msra.mxu0 0.0
    %171 = vmatprep.subr.mxu0 0.0
    %172 = vmatpush2.msra.mxu0 0.0
    %173 = vmatprep.subr.mxu0 0.0
    %174 = vmatpush2.msra.mxu0 0.0
    %175 = vmatprep.subr.mxu0 0.0
    %176 = vmatpush2.msra.mxu0 0.0
    %177 = vmatprep.subr.mxu0 0.0
    %178 = vmatpush2.msra.mxu0 0.0
    %179 = vmatprep.subr.mxu0 0.0
    %180 = vmatpush2.msra.mxu0 0.0
    %181 = vmatprep.subr.mxu0 0.0
    %182 = vmatpush2.msra.mxu0 0.0
    %183 = vmatprep.subr.mxu0 0.0
    %184 = vmatpush2.msra.mxu0 0.0
    %185 = vmatprep.subr.mxu0 0.0
    %186 = vmatpush2.msra.mxu0 0.0
    %187 = vmatprep.subr.mxu0 0.0
    %188 = vmatpush2.msra.mxu0 0.0
    %189 = vmatprep.subr.mxu0 0.0
    %190 = vmatpush2.msra.mxu0 0.0
    %191 = vmatprep.subr.mxu0 0.0
    %192 = vmatpush2.msra.mxu0 0.0
    %193 = vmatprep.subr.mxu0 0.0
    %194 = vmatpush2.msra.mxu0 0.0
    %195 = vmatprep.subr.mxu0 0.0
    %196 = vmatpush2.msra.mxu0 0.0
    %197 = vmatprep.subr.mxu0 0.0
    %198 = vmatpush2.msra.mxu0 0.0
    %199 = vmatprep.mubr.f32.mxu0 0.0
    %200 = vmatmul.mubr.f32.gmra.mxu0 %v70
    %v201 = vpop.f32.mrf.mxu0
    %v202 = vadd.f32 0.0, %v201
    %v203 = vpop.f32.mrf.mxu0
    %v204 = vadd.f32 0.0, %v203
    %205 = vdwg.mxu0
    %206 = vmatprep.subr.mxu0 %v134
    %207 = vmatpush1.msra.mxu0 %v133
    %208 = vmatprep.subr.mxu0 %v130
    %209 = vmatpush1.msra.mxu0 %v129
    %210 = vmatprep.subr.mxu0 %v126
    %211 = vmatpush1.msra.mxu0 %v125
    %212 = vmatprep.subr.mxu0 %v122
    %213 = vmatpush1.msra.mxu0 %v121
    %214 = vmatprep.subr.mxu0 %v118
    %215 = vmatpush1.msra.mxu0 %v117
    %216 = vmatprep.subr.mxu0 %v114
    %217 = vmatpush1.msra.mxu0 %v113
    %218 = vmatprep.subr.mxu0 %v110
    %219 = vmatpush1.msra.mxu0 %v109
    %220 = vmatprep.subr.mxu0 %v106
    %221 = vmatpush1.msra.mxu0 %v105
    %222 = vmatprep.subr.mxu0 %v102
    %223 = vmatpush1.msra.mxu0 %v101
    %224 = vmatprep.subr.mxu0 %v98
    %225 = vmatpush1.msra.mxu0 %v97
    %226 = vmatprep.subr.mxu0 %v94
    %227 = vmatpush1.msra.mxu0 %v93
    %228 = vmatprep.subr.mxu0 %v90
    %229 = vmatpush1.msra.mxu0 %v89
    %230 = vmatprep.subr.mxu0 %v86
    %231 = vmatpush1.msra.mxu0 %v85
    %232 = vmatprep.subr.mxu0 %v82
    %233 = vmatpush1.msra.mxu0 %v81
    %234 = vmatprep.subr.mxu0 %v78
    %235 = vmatpush1.msra.mxu0 %v77
    %236 = vmatprep.subr.mxu0 %v74
    %237 = vmatpush1.msra.mxu0 %v73
    %238 = vmatprep.subr.mxu0 0.0
    %239 = vmatpush2.msra.mxu0 0.0
    %240 = vmatprep.subr.mxu0 0.0
    %241 = vmatpush2.msra.mxu0 0.0
    %242 = vmatprep.subr.mxu0 0.0
    %243 = vmatpush2.msra.mxu0 0.0
    %244 = vmatprep.subr.mxu0 0.0
    %245 = vmatpush2.msra.mxu0 0.0
    %246 = vmatprep.subr.mxu0 0.0
    %247 = vmatpush2.msra.mxu0 0.0
    %248 = vmatprep.subr.mxu0 0.0
    %249 = vmatpush2.msra.mxu0 0.0
    %250 = vmatprep.subr.mxu0 0.0
    %251 = vmatpush2.msra.mxu0 0.0
    %252 = vmatprep.subr.mxu0 0.0
    %253 = vmatpush2.msra.mxu0 0.0
    %254 = vmatprep.subr.mxu0 0.0
    %255 = vmatpush2.msra.mxu0 0.0
    %256 = vmatprep.subr.mxu0 0.0
    %257 = vmatpush2.msra.mxu0 0.0
    %258 = vmatprep.subr.mxu0 0.0
    %259 = vmatpush2.msra.mxu0 0.0
    %260 = vmatprep.subr.mxu0 0.0
    %261 = vmatpush2.msra.mxu0 0.0
    %262 = vmatprep.subr.mxu0 0.0
    %263 = vmatpush2.msra.mxu0 0.0
    %264 = vmatprep.subr.mxu0 0.0
    %265 = vmatpush2.msra.mxu0 0.0
    %266 = vmatprep.subr.mxu0 0.0
    %267 = vmatpush2.msra.mxu0 0.0
    %268 = vmatprep.subr.mxu0 0.0
    %269 = vmatpush2.msra.mxu0 0.0
    %270 = vmatprep.mubr.f32.mxu0 0.0
    %271 = vmatmul.mubr.f32.gmra.mxu0 %v70
    %v272 = vpop.f32.mrf.mxu0
    %v273 = vadd.f32 0.0, %v272
    %v274 = vpop.f32.mrf.mxu0
    %v275 = vadd.f32 0.0, %v274
    %276 = vdwg.mxu0
    %277 = vst [vmem:[#allocation2] sm:$0xff] %v202
    %278 = vst [vmem:[#allocation2 + $0x8] sm:$0xff] %v204
    %279 = vst [vmem:[#allocation2 + $0x10] sm:$0xff] %v273
    %280 = vst [vmem:[#allocation2 + $0x18] sm:$0xff] %v275
    %v281 = vld [vmem:[#allocation2] ss:$8 sm:$0xf]
    %v282 = vld [vmem:[#allocation5 + $0x200] sm:$0xff]
    %v283 = vld [vmem:[#allocation5 + $0x208] sm:$0xff]
    %v284 = vld [vmem:[#allocation5 + $0x210] sm:$0xff]
    %v285 = vld [vmem:[#allocation5 + $0x218] sm:$0xff]
    %v286 = vld [vmem:[#allocation5 + $0x220] sm:$0xff]
    %v287 = vld [vmem:[#allocation5 + $0x228] sm:$0xff]
    %v288 = vld [vmem:[#allocation5 + $0x230] sm:$0xff]
    %v289 = vld [vmem:[#allocation5 + $0x238] sm:$0xff]
    %v290 = vld [vmem:[#allocation5 + $0x240] sm:$0xff]
    %v291 = vld [vmem:[#allocation5 + $0x248] sm:$0xff]
    %v292 = vld [vmem:[#allocation5 + $0x250] sm:$0xff]
    %v293 = vld [vmem:[#allocation5 + $0x258] sm:$0xff]
    %v294 = vld [vmem:[#allocation5 + $0x260] sm:$0xff]
    %v295 = vld [vmem:[#allocation5 + $0x268] sm:$0xff]
    %v296 = vld [vmem:[#allocation5 + $0x270] sm:$0xff]
    %v297 = vld [vmem:[#allocation5 + $0x278] sm:$0xff]
    %v298 = vld [vmem:[#allocation5 + $0x280] sm:$0xff]
    %v299 = vld [vmem:[#allocation5 + $0x288] sm:$0xff]
    %v300 = vld [vmem:[#allocation5 + $0x290] sm:$0xff]
    %v301 = vld [vmem:[#allocation5 + $0x298] sm:$0xff]
    %v302 = vld [vmem:[#allocation5 + $0x2a0] sm:$0xff]
    %v303 = vld [vmem:[#allocation5 + $0x2a8] sm:$0xff]
    %v304 = vld [vmem:[#allocation5 + $0x2b0] sm:$0xff]
    %v305 = vld [vmem:[#allocation5 + $0x2b8] sm:$0xff]
    %v306 = vld [vmem:[#allocation5 + $0x2c0] sm:$0xff]
    %v307 = vld [vmem:[#allocation5 + $0x2c8] sm:$0xff]
    %v308 = vld [vmem:[#allocation5 + $0x2d0] sm:$0xff]
    %v309 = vld [vmem:[#allocation5 + $0x2d8] sm:$0xff]
    %v310 = vld [vmem:[#allocation5 + $0x2e0] sm:$0xff]
    %v311 = vld [vmem:[#allocation5 + $0x2e8] sm:$0xff]
    %v312 = vld [vmem:[#allocation5 + $0x2f0] sm:$0xff]
    %v313 = vld [vmem:[#allocation5 + $0x2f8] sm:$0xff]
    %vm314 = vcmask 523264
    %v316 = vsel %vm314, 0.0, 0
    %318 = vmatprep.subr.mxu0 0.0
    %319 = vmatpush1.msra.mxu0 0.0
    %320 = vmatprep.subr.mxu0 0.0
    %321 = vmatpush1.msra.mxu0 0.0
    %322 = vmatprep.subr.mxu0 0.0
    %323 = vmatpush1.msra.mxu0 0.0
    %324 = vmatprep.subr.mxu0 0.0
    %325 = vmatpush1.msra.mxu0 0.0
    %326 = vmatprep.subr.mxu0 0.0
    %327 = vmatpush1.msra.mxu0 0.0
    %328 = vmatprep.subr.mxu0 0.0
    %329 = vmatpush1.msra.mxu0 0.0
    %330 = vmatprep.subr.mxu0 0.0
    %331 = vmatpush1.msra.mxu0 0.0
    %332 = vmatprep.subr.mxu0 0.0
    %333 = vmatpush1.msra.mxu0 0.0
    %334 = vmatprep.subr.mxu0 %v311
    %335 = vmatpush1.msra.mxu0 %v310
    %336 = vmatprep.subr.mxu0 %v307
    %337 = vmatpush1.msra.mxu0 %v306
    %338 = vmatprep.subr.mxu0 %v303
    %339 = vmatpush1.msra.mxu0 %v302
    %340 = vmatprep.subr.mxu0 %v299
    %341 = vmatpush1.msra.mxu0 %v298
    %342 = vmatprep.subr.mxu0 %v295
    %343 = vmatpush1.msra.mxu0 %v294
    %344 = vmatprep.subr.mxu0 %v291
    %345 = vmatpush1.msra.mxu0 %v290
    %346 = vmatprep.subr.mxu0 %v287
    %347 = vmatpush1.msra.mxu0 %v286
    %348 = vmatprep.subr.mxu0 %v283
    %349 = vmatpush1.msra.mxu0 %v282
    %350 = vmatprep.subr.mxu0 0.0
    %351 = vmatpush2.msra.mxu0 0.0
    %352 = vmatprep.subr.mxu0 0.0
    %353 = vmatpush2.msra.mxu0 0.0
    %354 = vmatprep.subr.mxu0 0.0
    %355 = vmatpush2.msra.mxu0 0.0
    %356 = vmatprep.subr.mxu0 0.0
    %357 = vmatpush2.msra.mxu0 0.0
    %358 = vmatprep.subr.mxu0 0.0
    %359 = vmatpush2.msra.mxu0 0.0
    %360 = vmatprep.subr.mxu0 0.0
    %361 = vmatpush2.msra.mxu0 0.0
    %362 = vmatprep.subr.mxu0 0.0
    %363 = vmatpush2.msra.mxu0 0.0
    %364 = vmatprep.subr.mxu0 0.0
    %365 = vmatpush2.msra.mxu0 0.0
    %366 = vmatprep.subr.mxu0 0.0
    %367 = vmatpush2.msra.mxu0 0.0
    %368 = vmatprep.subr.mxu0 0.0
    %369 = vmatpush2.msra.mxu0 0.0
    %370 = vmatprep.subr.mxu0 0.0
    %371 = vmatpush2.msra.mxu0 0.0
    %372 = vmatprep.subr.mxu0 0.0
    %373 = vmatpush2.msra.mxu0 0.0
    %374 = vmatprep.subr.mxu0 0.0
    %375 = vmatpush2.msra.mxu0 0.0
    %376 = vmatprep.subr.mxu0 0.0
    %377 = vmatpush2.msra.mxu0 0.0
    %378 = vmatprep.subr.mxu0 0.0
    %379 = vmatpush2.msra.mxu0 0.0
    %380 = vmatprep.subr.mxu0 0.0
    %381 = vmatpush2.msra.mxu0 0.0
    %382 = vmatprep.mubr.f32.mxu0 0.0
    %383 = vmatmul.mubr.f32.gmra.mxu0 %v316
    %v384 = vpop.f32.mrf.mxu0
    %v385 = vadd.f32 0.0, %v384
    %v386 = vpop.f32.mrf.mxu0
    %v387 = vadd.f32 0.0, %v386
    %388 = vdwg.mxu0
    %389 = vmatprep.subr.mxu0 0.0
    %390 = vmatpush1.msra.mxu0 0.0
    %391 = vmatprep.subr.mxu0 0.0
    %392 = vmatpush1.msra.mxu0 0.0
    %393 = vmatprep.subr.mxu0 0.0
    %394 = vmatpush1.msra.mxu0 0.0
    %395 = vmatprep.subr.mxu0 0.0
    %396 = vmatpush1.msra.mxu0 0.0
    %397 = vmatprep.subr.mxu0 0.0
    %398 = vmatpush1.msra.mxu0 0.0
    %399 = vmatprep.subr.mxu0 0.0
    %400 = vmatpush1.msra.mxu0 0.0
    %401 = vmatprep.subr.mxu0 0.0
    %402 = vmatpush1.msra.mxu0 0.0
    %403 = vmatprep.subr.mxu0 0.0
    %404 = vmatpush1.msra.mxu0 0.0
    %405 = vmatprep.subr.mxu0 %v313
    %406 = vmatpush1.msra.mxu0 %v312
    %407 = vmatprep.subr.mxu0 %v309
    %408 = vmatpush1.msra.mxu0 %v308
    %409 = vmatprep.subr.mxu0 %v305
    %410 = vmatpush1.msra.mxu0 %v304
    %411 = vmatprep.subr.mxu0 %v301
    %412 = vmatpush1.msra.mxu0 %v300
    %413 = vmatprep.subr.mxu0 %v297
    %414 = vmatpush1.msra.mxu0 %v296
    %415 = vmatprep.subr.mxu0 %v293
    %416 = vmatpush1.msra.mxu0 %v292
    %417 = vmatprep.subr.mxu0 %v289
    %418 = vmatpush1.msra.mxu0 %v288
    %419 = vmatprep.subr.mxu0 %v285
    %420 = vmatpush1.msra.mxu0 %v284
    %421 = vmatprep.subr.mxu0 0.0
    %422 = vmatpush2.msra.mxu0 0.0
    %423 = vmatprep.subr.mxu0 0.0
    %424 = vmatpush2.msra.mxu0 0.0
    %425 = vmatprep.subr.mxu0 0.0
    %426 = vmatpush2.msra.mxu0 0.0
    %427 = vmatprep.subr.mxu0 0.0
    %428 = vmatpush2.msra.mxu0 0.0
    %429 = vmatprep.subr.mxu0 0.0
    %430 = vmatpush2.msra.mxu0 0.0
    %431 = vmatprep.subr.mxu0 0.0
    %432 = vmatpush2.msra.mxu0 0.0
    %433 = vmatprep.subr.mxu0 0.0
    %434 = vmatpush2.msra.mxu0 0.0
    %435 = vmatprep.subr.mxu0 0.0
    %436 = vmatpush2.msra.mxu0 0.0
    %437 = vmatprep.subr.mxu0 0.0
    %438 = vmatpush2.msra.mxu0 0.0
    %439 = vmatprep.subr.mxu0 0.0
    %440 = vmatpush2.msra.mxu0 0.0
    %441 = vmatprep.subr.mxu0 0.0
    %442 = vmatpush2.msra.mxu0 0.0
    %443 = vmatprep.subr.mxu0 0.0
    %444 = vmatpush2.msra.mxu0 0.0
    %445 = vmatprep.subr.mxu0 0.0
    %446 = vmatpush2.msra.mxu0 0.0
    %447 = vmatprep.subr.mxu0 0.0
    %448 = vmatpush2.msra.mxu0 0.0
    %449 = vmatprep.subr.mxu0 0.0
    %450 = vmatpush2.msra.mxu0 0.0
    %451 = vmatprep.subr.mxu0 0.0
    %452 = vmatpush2.msra.mxu0 0.0
    %453 = vmatprep.mubr.f32.mxu0 0.0
    %454 = vmatmul.mubr.f32.gmra.mxu0 %v316
    %v455 = vpop.f32.mrf.mxu0
    %v456 = vadd.f32 0.0, %v455
    %v457 = vpop.f32.mrf.mxu0
    %v458 = vadd.f32 0.0, %v457
    %459 = vdwg.mxu0
    %v464 = vcombine.low %v385, %v387
    %v465 = vcombine.low %v456, %v458
    %v467 = vunpack.c.l.s4 1966171168
    %v468 = vunpack.c.0.s8 %v467
    %v469 = vlaneseq
    %v470 = vshrl.u32 %v469, 7
    %v471 = vsub.s32 %v468, %v470
    %v472 = vrot.slane %v464, %v471
    %v474 = vunpack.c.l.s4 1966171168
    %v475 = vunpack.c.0.s8 %v474
    %v476 = vlaneseq
    %v477 = vshrl.u32 %v476, 7
    %v478 = vsub.s32 %v475, %v477
    %v479 = vrot.slane %v465, %v478
    %v480 = vcombine.low %v472, %v479
    %v482 = vunpack.c.l.s4 1966171168
    %v483 = vunpack.c.0.s8 %v482
    %v484 = vlaneseq
    %v485 = vshrl.u32 %v484, 7
    %v486 = vsub.s32 %v483, %v485
    %v487 = vrot.slane %v480, %v486
    %v489 = vadd.f32 %v281, %v487
    %v490 = vxor.u32 %v489, 2147483648
    %v491 = vmul.f32 %v490, 1.442695
    %v492 = vpow.pop %v491
    %v493 = vadd.f32 %v492, 1.0
    %v494 = vrcp.pop %v493
    %v495 = vmul.f32 1.0, %v494
    %v497 = vrot.slane %v489, 1
    %v499 = vxor.u32 %v497, 2147483648
    %v500 = vmul.f32 %v499, 1.442695
    %v501 = vpow.pop %v500
    %v502 = vadd.f32 %v501, 1.0
    %v503 = vrcp.pop %v502
    %v504 = vmul.f32 1.0, %v503
    %v505 = vrot.slane %v489, 2
    %v507 = vtanh.pop %v505
    %v508 = vrot.slane %v489, 3
    %v510 = vxor.u32 %v508, 2147483648
    %v511 = vmul.f32 %v510, 1.442695
    %v512 = vpow.pop %v511
    %v513 = vadd.f32 %v512, 1.0
    %v514 = vrcp.pop %v513
    %v515 = vmul.f32 1.0, %v514
    %v516 = vmul.f32 %v504, 0.0
    %v517 = vmul.f32 %v495, %v507
    %v518 = vadd.f32 %v516, %v517
    %v519 = vtanh.pop %v518
    %v520 = vmul.f32 %v515, %v519
    %521 = vst [vmem:[#allocation3] sm:$0x1] %v520
    %s522 = scalar_lea.vmem [#allocation2], 1
    %v523 = vld [vmem:[%s522] ss:$8 sm:$0xf]
    %v524 = vld [vmem:[#allocation5 + $0x200] sm:$0xff]
    %v525 = vld [vmem:[#allocation5 + $0x208] sm:$0xff]
    %v526 = vld [vmem:[#allocation5 + $0x210] sm:$0xff]
    %v527 = vld [vmem:[#allocation5 + $0x218] sm:$0xff]
    %v528 = vld [vmem:[#allocation5 + $0x220] sm:$0xff]
    %v529 = vld [vmem:[#allocation5 + $0x228] sm:$0xff]
    %v530 = vld [vmem:[#allocation5 + $0x230] sm:$0xff]
    %v531 = vld [vmem:[#allocation5 + $0x238] sm:$0xff]
    %v532 = vld [vmem:[#allocation5 + $0x240] sm:$0xff]
    %v533 = vld [vmem:[#allocation5 + $0x248] sm:$0xff]
    %v534 = vld [vmem:[#allocation5 + $0x250] sm:$0xff]
    %v535 = vld [vmem:[#allocation5 + $0x258] sm:$0xff]
    %v536 = vld [vmem:[#allocation5 + $0x260] sm:$0xff]
    %v537 = vld [vmem:[#allocation5 + $0x268] sm:$0xff]
    %v538 = vld [vmem:[#allocation5 + $0x270] sm:$0xff]
    %v539 = vld [vmem:[#allocation5 + $0x278] sm:$0xff]
    %v540 = vld [vmem:[#allocation5 + $0x280] sm:$0xff]
    %v541 = vld [vmem:[#allocation5 + $0x288] sm:$0xff]
    %v542 = vld [vmem:[#allocation5 + $0x290] sm:$0xff]
    %v543 = vld [vmem:[#allocation5 + $0x298] sm:$0xff]
    %v544 = vld [vmem:[#allocation5 + $0x2a0] sm:$0xff]
    %v545 = vld [vmem:[#allocation5 + $0x2a8] sm:$0xff]
    %v546 = vld [vmem:[#allocation5 + $0x2b0] sm:$0xff]
    %v547 = vld [vmem:[#allocation5 + $0x2b8] sm:$0xff]
    %v548 = vld [vmem:[#allocation5 + $0x2c0] sm:$0xff]
    %v549 = vld [vmem:[#allocation5 + $0x2c8] sm:$0xff]
    %v550 = vld [vmem:[#allocation5 + $0x2d0] sm:$0xff]
    %v551 = vld [vmem:[#allocation5 + $0x2d8] sm:$0xff]
    %v552 = vld [vmem:[#allocation5 + $0x2e0] sm:$0xff]
    %v553 = vld [vmem:[#allocation5 + $0x2e8] sm:$0xff]
    %v554 = vld [vmem:[#allocation5 + $0x2f0] sm:$0xff]
    %v555 = vld [vmem:[#allocation5 + $0x2f8] sm:$0xff]
    %v557 = vsel %vm314, %v520, 0
    %559 = vmatprep.subr.mxu0 0.0
    %560 = vmatpush1.msra.mxu0 0.0
    %561 = vmatprep.subr.mxu0 0.0
    %562 = vmatpush1.msra.mxu0 0.0
    %563 = vmatprep.subr.mxu0 0.0
    %564 = vmatpush1.msra.mxu0 0.0
    %565 = vmatprep.subr.mxu0 0.0
    %566 = vmatpush1.msra.mxu0 0.0
    %567 = vmatprep.subr.mxu0 0.0
    %568 = vmatpush1.msra.mxu0 0.0
    %569 = vmatprep.subr.mxu0 0.0
    %570 = vmatpush1.msra.mxu0 0.0
    %571 = vmatprep.subr.mxu0 0.0
    %572 = vmatpush1.msra.mxu0 0.0
    %573 = vmatprep.subr.mxu0 0.0
    %574 = vmatpush1.msra.mxu0 0.0
    %575 = vmatprep.subr.mxu0 %v553
    %576 = vmatpush1.msra.mxu0 %v552
    %577 = vmatprep.subr.mxu0 %v549
    %578 = vmatpush1.msra.mxu0 %v548
    %579 = vmatprep.subr.mxu0 %v545
    %580 = vmatpush1.msra.mxu0 %v544
    %581 = vmatprep.subr.mxu0 %v541
    %582 = vmatpush1.msra.mxu0 %v540
    %583 = vmatprep.subr.mxu0 %v537
    %584 = vmatpush1.msra.mxu0 %v536
    %585 = vmatprep.subr.mxu0 %v533
    %586 = vmatpush1.msra.mxu0 %v532
    %587 = vmatprep.subr.mxu0 %v529
    %588 = vmatpush1.msra.mxu0 %v528
    %589 = vmatprep.subr.mxu0 %v525
    %590 = vmatpush1.msra.mxu0 %v524
    %591 = vmatprep.subr.mxu0 0.0
    %592 = vmatpush2.msra.mxu0 0.0
    %593 = vmatprep.subr.mxu0 0.0
    %594 = vmatpush2.msra.mxu0 0.0
    %595 = vmatprep.subr.mxu0 0.0
    %596 = vmatpush2.msra.mxu0 0.0
    %597 = vmatprep.subr.mxu0 0.0
    %598 = vmatpush2.msra.mxu0 0.0
    %599 = vmatprep.subr.mxu0 0.0
    %600 = vmatpush2.msra.mxu0 0.0
    %601 = vmatprep.subr.mxu0 0.0
    %602 = vmatpush2.msra.mxu0 0.0
    %603 = vmatprep.subr.mxu0 0.0
    %604 = vmatpush2.msra.mxu0 0.0
    %605 = vmatprep.subr.mxu0 0.0
    %606 = vmatpush2.msra.mxu0 0.0
    %607 = vmatprep.subr.mxu0 0.0
    %608 = vmatpush2.msra.mxu0 0.0
    %609 = vmatprep.subr.mxu0 0.0
    %610 = vmatpush2.msra.mxu0 0.0
    %611 = vmatprep.subr.mxu0 0.0
    %612 = vmatpush2.msra.mxu0 0.0
    %613 = vmatprep.subr.mxu0 0.0
    %614 = vmatpush2.msra.mxu0 0.0
    %615 = vmatprep.subr.mxu0 0.0
    %616 = vmatpush2.msra.mxu0 0.0
    %617 = vmatprep.subr.mxu0 0.0
    %618 = vmatpush2.msra.mxu0 0.0
    %619 = vmatprep.subr.mxu0 0.0
    %620 = vmatpush2.msra.mxu0 0.0
    %621 = vmatprep.subr.mxu0 0.0
    %622 = vmatpush2.msra.mxu0 0.0
    %623 = vmatprep.mubr.f32.mxu0 0.0
    %624 = vmatmul.mubr.f32.gmra.mxu0 %v557
    %v625 = vpop.f32.mrf.mxu0
    %v626 = vadd.f32 0.0, %v625
    %v627 = vpop.f32.mrf.mxu0
    %v628 = vadd.f32 0.0, %v627
    %629 = vdwg.mxu0
    %630 = vmatprep.subr.mxu0 0.0
    %631 = vmatpush1.msra.mxu0 0.0
    %632 = vmatprep.subr.mxu0 0.0
    %633 = vmatpush1.msra.mxu0 0.0
    %634 = vmatprep.subr.mxu0 0.0
    %635 = vmatpush1.msra.mxu0 0.0
    %636 = vmatprep.subr.mxu0 0.0
    %637 = vmatpush1.msra.mxu0 0.0
    %638 = vmatprep.subr.mxu0 0.0
    %639 = vmatpush1.msra.mxu0 0.0
    %640 = vmatprep.subr.mxu0 0.0
    %641 = vmatpush1.msra.mxu0 0.0
    %642 = vmatprep.subr.mxu0 0.0
    %643 = vmatpush1.msra.mxu0 0.0
    %644 = vmatprep.subr.mxu0 0.0
    %645 = vmatpush1.msra.mxu0 0.0
    %646 = vmatprep.subr.mxu0 %v555
    %647 = vmatpush1.msra.mxu0 %v554
    %648 = vmatprep.subr.mxu0 %v551
    %649 = vmatpush1.msra.mxu0 %v550
    %650 = vmatprep.subr.mxu0 %v547
    %651 = vmatpush1.msra.mxu0 %v546
    %652 = vmatprep.subr.mxu0 %v543
    %653 = vmatpush1.msra.mxu0 %v542
    %654 = vmatprep.subr.mxu0 %v539
    %655 = vmatpush1.msra.mxu0 %v538
    %656 = vmatprep.subr.mxu0 %v535
    %657 = vmatpush1.msra.mxu0 %v534
    %658 = vmatprep.subr.mxu0 %v531
    %659 = vmatpush1.msra.mxu0 %v530
    %660 = vmatprep.subr.mxu0 %v527
    %661 = vmatpush1.msra.mxu0 %v526
    %662 = vmatprep.subr.mxu0 0.0
    %663 = vmatpush2.msra.mxu0 0.0
    %664 = vmatprep.subr.mxu0 0.0
    %665 = vmatpush2.msra.mxu0 0.0
    %666 = vmatprep.subr.mxu0 0.0
    %667 = vmatpush2.msra.mxu0 0.0
    %668 = vmatprep.subr.mxu0 0.0
    %669 = vmatpush2.msra.mxu0 0.0
    %670 = vmatprep.subr.mxu0 0.0
    %671 = vmatpush2.msra.mxu0 0.0
    %672 = vmatprep.subr.mxu0 0.0
    %673 = vmatpush2.msra.mxu0 0.0
    %674 = vmatprep.subr.mxu0 0.0
    %675 = vmatpush2.msra.mxu0 0.0
    %676 = vmatprep.subr.mxu0 0.0
    %677 = vmatpush2.msra.mxu0 0.0
    %678 = vmatprep.subr.mxu0 0.0
    %679 = vmatpush2.msra.mxu0 0.0
    %680 = vmatprep.subr.mxu0 0.0
    %681 = vmatpush2.msra.mxu0 0.0
    %682 = vmatprep.subr.mxu0 0.0
    %683 = vmatpush2.msra.mxu0 0.0
    %684 = vmatprep.subr.mxu0 0.0
    %685 = vmatpush2.msra.mxu0 0.0
    %686 = vmatprep.subr.mxu0 0.0
    %687 = vmatpush2.msra.mxu0 0.0
    %688 = vmatprep.subr.mxu0 0.0
    %689 = vmatpush2.msra.mxu0 0.0
    %690 = vmatprep.subr.mxu0 0.0
    %691 = vmatpush2.msra.mxu0 0.0
    %692 = vmatprep.subr.mxu0 0.0
    %693 = vmatpush2.msra.mxu0 0.0
    %694 = vmatprep.mubr.f32.mxu0 0.0
    %695 = vmatmul.mubr.f32.gmra.mxu0 %v557
    %v696 = vpop.f32.mrf.mxu0
    %v697 = vadd.f32 0.0, %v696
    %v698 = vpop.f32.mrf.mxu0
    %v699 = vadd.f32 0.0, %v698
    %700 = vdwg.mxu0
    %v705 = vcombine.low %v626, %v628
    %v706 = vcombine.low %v697, %v699
    %v708 = vunpack.c.l.s4 1966171168
    %v709 = vunpack.c.0.s8 %v708
    %v710 = vlaneseq
    %v711 = vshrl.u32 %v710, 7
    %v712 = vsub.s32 %v709, %v711
    %v713 = vrot.slane %v705, %v712
    %v715 = vunpack.c.l.s4 1966171168
    %v716 = vunpack.c.0.s8 %v715
    %v717 = vlaneseq
    %v718 = vshrl.u32 %v717, 7
    %v719 = vsub.s32 %v716, %v718
    %v720 = vrot.slane %v706, %v719
    %v721 = vcombine.low %v713, %v720
    %v723 = vunpack.c.l.s4 1966171168
    %v724 = vunpack.c.0.s8 %v723
    %v725 = vlaneseq
    %v726 = vshrl.u32 %v725, 7
    %v727 = vsub.s32 %v724, %v726
    %v728 = vrot.slane %v721, %v727
    %v730 = vadd.f32 %v523, %v728
    %v731 = vxor.u32 %v730, 2147483648
    %v732 = vmul.f32 %v731, 1.442695
    %v733 = vpow.pop %v732
    %v734 = vadd.f32 %v733, 1.0
    %v735 = vrcp.pop %v734
    %v736 = vmul.f32 1.0, %v735
    %v738 = vrot.slane %v730, 1
    %v740 = vxor.u32 %v738, 2147483648
    %v741 = vmul.f32 %v740, 1.442695
    %v742 = vpow.pop %v741
    %v743 = vadd.f32 %v742, 1.0
    %v744 = vrcp.pop %v743
    %v745 = vmul.f32 1.0, %v744
    %v746 = vrot.slane %v730, 2
    %v748 = vtanh.pop %v746
    %v749 = vrot.slane %v730, 3
    %v751 = vxor.u32 %v749, 2147483648
    %v752 = vmul.f32 %v751, 1.442695
    %v753 = vpow.pop %v752
    %v754 = vadd.f32 %v753, 1.0
    %v755 = vrcp.pop %v754
    %v756 = vmul.f32 1.0, %v755
    %v757 = vmul.f32 %v745, %v518
    %v758 = vmul.f32 %v736, %v748
    %v759 = vadd.f32 %v757, %v758
    %v760 = vtanh.pop %v759
    %v761 = vmul.f32 %v756, %v760
    %762 = vst [vmem:[#allocation3 + $0x1] sm:$0x1] %v761
    %s763 = scalar_lea.vmem [#allocation2], 2
    %v764 = vld [vmem:[%s763] ss:$8 sm:$0xf]
    %v765 = vld [vmem:[#allocation5 + $0x200] sm:$0xff]
    %v766 = vld [vmem:[#allocation5 + $0x208] sm:$0xff]
    %v767 = vld [vmem:[#allocation5 + $0x210] sm:$0xff]
    %v768 = vld [vmem:[#allocation5 + $0x218] sm:$0xff]
    %v769 = vld [vmem:[#allocation5 + $0x220] sm:$0xff]
    %v770 = vld [vmem:[#allocation5 + $0x228] sm:$0xff]
    %v771 = vld [vmem:[#allocation5 + $0x230] sm:$0xff]
    %v772 = vld [vmem:[#allocation5 + $0x238] sm:$0xff]
    %v773 = vld [vmem:[#allocation5 + $0x240] sm:$0xff]
    %v774 = vld [vmem:[#allocation5 + $0x248] sm:$0xff]
    %v775 = vld [vmem:[#allocation5 + $0x250] sm:$0xff]
    %v776 = vld [vmem:[#allocation5 + $0x258] sm:$0xff]
    %v777 = vld [vmem:[#allocation5 + $0x260] sm:$0xff]
    %v778 = vld [vmem:[#allocation5 + $0x268] sm:$0xff]
    %v779 = vld [vmem:[#allocation5 + $0x270] sm:$0xff]
    %v780 = vld [vmem:[#allocation5 + $0x278] sm:$0xff]
    %v781 = vld [vmem:[#allocation5 + $0x280] sm:$0xff]
    %v782 = vld [vmem:[#allocation5 + $0x288] sm:$0xff]
    %v783 = vld [vmem:[#allocation5 + $0x290] sm:$0xff]
    %v784 = vld [vmem:[#allocation5 + $0x298] sm:$0xff]
    %v785 = vld [vmem:[#allocation5 + $0x2a0] sm:$0xff]
    %v786 = vld [vmem:[#allocation5 + $0x2a8] sm:$0xff]
    %v787 = vld [vmem:[#allocation5 + $0x2b0] sm:$0xff]
    %v788 = vld [vmem:[#allocation5 + $0x2b8] sm:$0xff]
    %v789 = vld [vmem:[#allocation5 + $0x2c0] sm:$0xff]
    %v790 = vld [vmem:[#allocation5 + $0x2c8] sm:$0xff]
    %v791 = vld [vmem:[#allocation5 + $0x2d0] sm:$0xff]
    %v792 = vld [vmem:[#allocation5 + $0x2d8] sm:$0xff]
    %v793 = vld [vmem:[#allocation5 + $0x2e0] sm:$0xff]
    %v794 = vld [vmem:[#allocation5 + $0x2e8] sm:$0xff]
    %v795 = vld [vmem:[#allocation5 + $0x2f0] sm:$0xff]
    %v796 = vld [vmem:[#allocation5 + $0x2f8] sm:$0xff]
    %v798 = vsel %vm314, %v761, 0
    %800 = vmatprep.subr.mxu0 0.0
    %801 = vmatpush1.msra.mxu0 0.0
    %802 = vmatprep.subr.mxu0 0.0
    %803 = vmatpush1.msra.mxu0 0.0
    %804 = vmatprep.subr.mxu0 0.0
    %805 = vmatpush1.msra.mxu0 0.0
    %806 = vmatprep.subr.mxu0 0.0
    %807 = vmatpush1.msra.mxu0 0.0
    %808 = vmatprep.subr.mxu0 0.0
    %809 = vmatpush1.msra.mxu0 0.0
    %810 = vmatprep.subr.mxu0 0.0
    %811 = vmatpush1.msra.mxu0 0.0
    %812 = vmatprep.subr.mxu0 0.0
    %813 = vmatpush1.msra.mxu0 0.0
    %814 = vmatprep.subr.mxu0 0.0
    %815 = vmatpush1.msra.mxu0 0.0
    %816 = vmatprep.subr.mxu0 %v794
    %817 = vmatpush1.msra.mxu0 %v793
    %818 = vmatprep.subr.mxu0 %v790
    %819 = vmatpush1.msra.mxu0 %v789
    %820 = vmatprep.subr.mxu0 %v786
    %821 = vmatpush1.msra.mxu0 %v785
    %822 = vmatprep.subr.mxu0 %v782
    %823 = vmatpush1.msra.mxu0 %v781
    %824 = vmatprep.subr.mxu0 %v778
    %825 = vmatpush1.msra.mxu0 %v777
    %826 = vmatprep.subr.mxu0 %v774
    %827 = vmatpush1.msra.mxu0 %v773
    %828 = vmatprep.subr.mxu0 %v770
    %829 = vmatpush1.msra.mxu0 %v769
    %830 = vmatprep.subr.mxu0 %v766
    %831 = vmatpush1.msra.mxu0 %v765
    %832 = vmatprep.subr.mxu0 0.0
    %833 = vmatpush2.msra.mxu0 0.0
    %834 = vmatprep.subr.mxu0 0.0
    %835 = vmatpush2.msra.mxu0 0.0
    %836 = vmatprep.subr.mxu0 0.0
    %837 = vmatpush2.msra.mxu0 0.0
    %838 = vmatprep.subr.mxu0 0.0
    %839 = vmatpush2.msra.mxu0 0.0
    %840 = vmatprep.subr.mxu0 0.0
    %841 = vmatpush2.msra.mxu0 0.0
    %842 = vmatprep.subr.mxu0 0.0
    %843 = vmatpush2.msra.mxu0 0.0
    %844 = vmatprep.subr.mxu0 0.0
    %845 = vmatpush2.msra.mxu0 0.0
    %846 = vmatprep.subr.mxu0 0.0
    %847 = vmatpush2.msra.mxu0 0.0
    %848 = vmatprep.subr.mxu0 0.0
    %849 = vmatpush2.msra.mxu0 0.0
    %850 = vmatprep.subr.mxu0 0.0
    %851 = vmatpush2.msra.mxu0 0.0
    %852 = vmatprep.subr.mxu0 0.0
    %853 = vmatpush2.msra.mxu0 0.0
    %854 = vmatprep.subr.mxu0 0.0
    %855 = vmatpush2.msra.mxu0 0.0
    %856 = vmatprep.subr.mxu0 0.0
    %857 = vmatpush2.msra.mxu0 0.0
    %858 = vmatprep.subr.mxu0 0.0
    %859 = vmatpush2.msra.mxu0 0.0
    %860 = vmatprep.subr.mxu0 0.0
    %861 = vmatpush2.msra.mxu0 0.0
    %862 = vmatprep.subr.mxu0 0.0
    %863 = vmatpush2.msra.mxu0 0.0
    %864 = vmatprep.mubr.f32.mxu0 0.0
    %865 = vmatmul.mubr.f32.gmra.mxu0 %v798
    %v866 = vpop.f32.mrf.mxu0
    %v867 = vadd.f32 0.0, %v866
    %v868 = vpop.f32.mrf.mxu0
    %v869 = vadd.f32 0.0, %v868
    %870 = vdwg.mxu0
    %871 = vmatprep.subr.mxu0 0.0
    %872 = vmatpush1.msra.mxu0 0.0
    %873 = vmatprep.subr.mxu0 0.0
    %874 = vmatpush1.msra.mxu0 0.0
    %875 = vmatprep.subr.mxu0 0.0
    %876 = vmatpush1.msra.mxu0 0.0
    %877 = vmatprep.subr.mxu0 0.0
    %878 = vmatpush1.msra.mxu0 0.0
    %879 = vmatprep.subr.mxu0 0.0
    %880 = vmatpush1.msra.mxu0 0.0
    %881 = vmatprep.subr.mxu0 0.0
    %882 = vmatpush1.msra.mxu0 0.0
    %883 = vmatprep.subr.mxu0 0.0
    %884 = vmatpush1.msra.mxu0 0.0
    %885 = vmatprep.subr.mxu0 0.0
    %886 = vmatpush1.msra.mxu0 0.0
    %887 = vmatprep.subr.mxu0 %v796
    %888 = vmatpush1.msra.mxu0 %v795
    %889 = vmatprep.subr.mxu0 %v792
    %890 = vmatpush1.msra.mxu0 %v791
    %891 = vmatprep.subr.mxu0 %v788
    %892 = vmatpush1.msra.mxu0 %v787
    %893 = vmatprep.subr.mxu0 %v784
    %894 = vmatpush1.msra.mxu0 %v783
    %895 = vmatprep.subr.mxu0 %v780
    %896 = vmatpush1.msra.mxu0 %v779
    %897 = vmatprep.subr.mxu0 %v776
    %898 = vmatpush1.msra.mxu0 %v775
    %899 = vmatprep.subr.mxu0 %v772
    %900 = vmatpush1.msra.mxu0 %v771
    %901 = vmatprep.subr.mxu0 %v768
    %902 = vmatpush1.msra.mxu0 %v767
    %903 = vmatprep.subr.mxu0 0.0
    %904 = vmatpush2.msra.mxu0 0.0
    %905 = vmatprep.subr.mxu0 0.0
    %906 = vmatpush2.msra.mxu0 0.0
    %907 = vmatprep.subr.mxu0 0.0
    %908 = vmatpush2.msra.mxu0 0.0
    %909 = vmatprep.subr.mxu0 0.0
    %910 = vmatpush2.msra.mxu0 0.0
    %911 = vmatprep.subr.mxu0 0.0
    %912 = vmatpush2.msra.mxu0 0.0
    %913 = vmatprep.subr.mxu0 0.0
    %914 = vmatpush2.msra.mxu0 0.0
    %915 = vmatprep.subr.mxu0 0.0
    %916 = vmatpush2.msra.mxu0 0.0
    %917 = vmatprep.subr.mxu0 0.0
    %918 = vmatpush2.msra.mxu0 0.0
    %919 = vmatprep.subr.mxu0 0.0
    %920 = vmatpush2.msra.mxu0 0.0
    %921 = vmatprep.subr.mxu0 0.0
    %922 = vmatpush2.msra.mxu0 0.0
    %923 = vmatprep.subr.mxu0 0.0
    %924 = vmatpush2.msra.mxu0 0.0
    %925 = vmatprep.subr.mxu0 0.0
    %926 = vmatpush2.msra.mxu0 0.0
    %927 = vmatprep.subr.mxu0 0.0
    %928 = vmatpush2.msra.mxu0 0.0
    %929 = vmatprep.subr.mxu0 0.0
    %930 = vmatpush2.msra.mxu0 0.0
    %931 = vmatprep.subr.mxu0 0.0
    %932 = vmatpush2.msra.mxu0 0.0
    %933 = vmatprep.subr.mxu0 0.0
    %934 = vmatpush2.msra.mxu0 0.0
    %935 = vmatprep.mubr.f32.mxu0 0.0
    %936 = vmatmul.mubr.f32.gmra.mxu0 %v798
    %v937 = vpop.f32.mrf.mxu0
    %v938 = vadd.f32 0.0, %v937
    %v939 = vpop.f32.mrf.mxu0
    %v940 = vadd.f32 0.0, %v939
    %941 = vdwg.mxu0
    %v946 = vcombine.low %v867, %v869
    %v947 = vcombine.low %v938, %v940
    %v949 = vunpack.c.l.s4 1966171168
    %v950 = vunpack.c.0.s8 %v949
    %v951 = vlaneseq
    %v952 = vshrl.u32 %v951, 7
    %v953 = vsub.s32 %v950, %v952
    %v954 = vrot.slane %v946, %v953
    %v956 = vunpack.c.l.s4 1966171168
    %v957 = vunpack.c.0.s8 %v956
    %v958 = vlaneseq
    %v959 = vshrl.u32 %v958, 7
    %v960 = vsub.s32 %v957, %v959
    %v961 = vrot.slane %v947, %v960
    %v962 = vcombine.low %v954, %v961
    %v964 = vunpack.c.l.s4 1966171168
    %v965 = vunpack.c.0.s8 %v964
    %v966 = vlaneseq
    %v967 = vshrl.u32 %v966, 7
    %v968 = vsub.s32 %v965, %v967
    %v969 = vrot.slane %v962, %v968
    %v971 = vadd.f32 %v764, %v969
    %v972 = vxor.u32 %v971, 2147483648
    %v973 = vmul.f32 %v972, 1.442695
    %v974 = vpow.pop %v973
    %v975 = vadd.f32 %v974, 1.0
    %v976 = vrcp.pop %v975
    %v977 = vmul.f32 1.0, %v976
    %v979 = vrot.slane %v971, 1
    %v981 = vxor.u32 %v979, 2147483648
    %v982 = vmul.f32 %v981, 1.442695
    %v983 = vpow.pop %v982
    %v984 = vadd.f32 %v983, 1.0
    %v985 = vrcp.pop %v984
    %v986 = vmul.f32 1.0, %v985
    %v987 = vrot.slane %v971, 2
    %v989 = vtanh.pop %v987
    %v990 = vrot.slane %v971, 3
    %v992 = vxor.u32 %v990, 2147483648
    %v993 = vmul.f32 %v992, 1.442695
    %v994 = vpow.pop %v993
    %v995 = vadd.f32 %v994, 1.0
    %v996 = vrcp.pop %v995
    %v997 = vmul.f32 1.0, %v996
    %v998 = vmul.f32 %v986, %v759
    %v999 = vmul.f32 %v977, %v989
    %v1000 = vadd.f32 %v998, %v999
    %v1001 = vtanh.pop %v1000
    %v1002 = vmul.f32 %v997, %v1001
    %1003 = vst [vmem:[#allocation3 + $0x2] sm:$0x1] %v1002
    %s1004 = scalar_lea.vmem [#allocation2], 3
    %v1005 = vld [vmem:[%s1004] ss:$8 sm:$0xf]
    %v1006 = vld [vmem:[#allocation5 + $0x200] sm:$0xff]
    %v1007 = vld [vmem:[#allocation5 + $0x208] sm:$0xff]
    %v1008 = vld [vmem:[#allocation5 + $0x210] sm:$0xff]
    %v1009 = vld [vmem:[#allocation5 + $0x218] sm:$0xff]
    %v1010 = vld [vmem:[#allocation5 + $0x220] sm:$0xff]
    %v1011 = vld [vmem:[#allocation5 + $0x228] sm:$0xff]
    %v1012 = vld [vmem:[#allocation5 + $0x230] sm:$0xff]
    %v1013 = vld [vmem:[#allocation5 + $0x238] sm:$0xff]
    %v1014 = vld [vmem:[#allocation5 + $0x240] sm:$0xff]
    %v1015 = vld [vmem:[#allocation5 + $0x248] sm:$0xff]
    %v1016 = vld [vmem:[#allocation5 + $0x250] sm:$0xff]
    %v1017 = vld [vmem:[#allocation5 + $0x258] sm:$0xff]
    %v1018 = vld [vmem:[#allocation5 + $0x260] sm:$0xff]
    %v1019 = vld [vmem:[#allocation5 + $0x268] sm:$0xff]
    %v1020 = vld [vmem:[#allocation5 + $0x270] sm:$0xff]
    %v1021 = vld [vmem:[#allocation5 + $0x278] sm:$0xff]
    %v1022 = vld [vmem:[#allocation5 + $0x280] sm:$0xff]
    %v1023 = vld [vmem:[#allocation5 + $0x288] sm:$0xff]
    %v1024 = vld [vmem:[#allocation5 + $0x290] sm:$0xff]
    %v1025 = vld [vmem:[#allocation5 + $0x298] sm:$0xff]
    %v1026 = vld [vmem:[#allocation5 + $0x2a0] sm:$0xff]
    %v1027 = vld [vmem:[#allocation5 + $0x2a8] sm:$0xff]
    %v1028 = vld [vmem:[#allocation5 + $0x2b0] sm:$0xff]
    %v1029 = vld [vmem:[#allocation5 + $0x2b8] sm:$0xff]
    %v1030 = vld [vmem:[#allocation5 + $0x2c0] sm:$0xff]
    %v1031 = vld [vmem:[#allocation5 + $0x2c8] sm:$0xff]
    %v1032 = vld [vmem:[#allocation5 + $0x2d0] sm:$0xff]
    %v1033 = vld [vmem:[#allocation5 + $0x2d8] sm:$0xff]
    %v1034 = vld [vmem:[#allocation5 + $0x2e0] sm:$0xff]
    %v1035 = vld [vmem:[#allocation5 + $0x2e8] sm:$0xff]
    %v1036 = vld [vmem:[#allocation5 + $0x2f0] sm:$0xff]
    %v1037 = vld [vmem:[#allocation5 + $0x2f8] sm:$0xff]
    %v1039 = vsel %vm314, %v1002, 0
    %1041 = vmatprep.subr.mxu0 0.0
    %1042 = vmatpush1.msra.mxu0 0.0
    %1043 = vmatprep.subr.mxu0 0.0
    %1044 = vmatpush1.msra.mxu0 0.0
    %1045 = vmatprep.subr.mxu0 0.0
    %1046 = vmatpush1.msra.mxu0 0.0
    %1047 = vmatprep.subr.mxu0 0.0
    %1048 = vmatpush1.msra.mxu0 0.0
    %1049 = vmatprep.subr.mxu0 0.0
    %1050 = vmatpush1.msra.mxu0 0.0
    %1051 = vmatprep.subr.mxu0 0.0
    %1052 = vmatpush1.msra.mxu0 0.0
    %1053 = vmatprep.subr.mxu0 0.0
    %1054 = vmatpush1.msra.mxu0 0.0
    %1055 = vmatprep.subr.mxu0 0.0
    %1056 = vmatpush1.msra.mxu0 0.0
    %1057 = vmatprep.subr.mxu0 %v1035
    %1058 = vmatpush1.msra.mxu0 %v1034
    %1059 = vmatprep.subr.mxu0 %v1031
    %1060 = vmatpush1.msra.mxu0 %v1030
    %1061 = vmatprep.subr.mxu0 %v1027
    %1062 = vmatpush1.msra.mxu0 %v1026
    %1063 = vmatprep.subr.mxu0 %v1023
    %1064 = vmatpush1.msra.mxu0 %v1022
    %1065 = vmatprep.subr.mxu0 %v1019
    %1066 = vmatpush1.msra.mxu0 %v1018
    %1067 = vmatprep.subr.mxu0 %v1015
    %1068 = vmatpush1.msra.mxu0 %v1014
    %1069 = vmatprep.subr.mxu0 %v1011
    %1070 = vmatpush1.msra.mxu0 %v1010
    %1071 = vmatprep.subr.mxu0 %v1007
    %1072 = vmatpush1.msra.mxu0 %v1006
    %1073 = vmatprep.subr.mxu0 0.0
    %1074 = vmatpush2.msra.mxu0 0.0
    %1075 = vmatprep.subr.mxu0 0.0
    %1076 = vmatpush2.msra.mxu0 0.0
    %1077 = vmatprep.subr.mxu0 0.0
    %1078 = vmatpush2.msra.mxu0 0.0
    %1079 = vmatprep.subr.mxu0 0.0
    %1080 = vmatpush2.msra.mxu0 0.0
    %1081 = vmatprep.subr.mxu0 0.0
    %1082 = vmatpush2.msra.mxu0 0.0
    %1083 = vmatprep.subr.mxu0 0.0
    %1084 = vmatpush2.msra.mxu0 0.0
    %1085 = vmatprep.subr.mxu0 0.0
    %1086 = vmatpush2.msra.mxu0 0.0
    %1087 = vmatprep.subr.mxu0 0.0
    %1088 = vmatpush2.msra.mxu0 0.0
    %1089 = vmatprep.subr.mxu0 0.0
    %1090 = vmatpush2.msra.mxu0 0.0
    %1091 = vmatprep.subr.mxu0 0.0
    %1092 = vmatpush2.msra.mxu0 0.0
    %1093 = vmatprep.subr.mxu0 0.0
    %1094 = vmatpush2.msra.mxu0 0.0
    %1095 = vmatprep.subr.mxu0 0.0
    %1096 = vmatpush2.msra.mxu0 0.0
    %1097 = vmatprep.subr.mxu0 0.0
    %1098 = vmatpush2.msra.mxu0 0.0
    %1099 = vmatprep.subr.mxu0 0.0
    %1100 = vmatpush2.msra.mxu0 0.0
    %1101 = vmatprep.subr.mxu0 0.0
    %1102 = vmatpush2.msra.mxu0 0.0
    %1103 = vmatprep.subr.mxu0 0.0
    %1104 = vmatpush2.msra.mxu0 0.0
    %1105 = vmatprep.mubr.f32.mxu0 0.0
    %1106 = vmatmul.mubr.f32.gmra.mxu0 %v1039
    %v1107 = vpop.f32.mrf.mxu0
    %v1108 = vadd.f32 0.0, %v1107
    %v1109 = vpop.f32.mrf.mxu0
    %v1110 = vadd.f32 0.0, %v1109
    %1111 = vdwg.mxu0
    %1112 = vmatprep.subr.mxu0 0.0
    %1113 = vmatpush1.msra.mxu0 0.0
    %1114 = vmatprep.subr.mxu0 0.0
    %1115 = vmatpush1.msra.mxu0 0.0
    %1116 = vmatprep.subr.mxu0 0.0
    %1117 = vmatpush1.msra.mxu0 0.0
    %1118 = vmatprep.subr.mxu0 0.0
    %1119 = vmatpush1.msra.mxu0 0.0
    %1120 = vmatprep.subr.mxu0 0.0
    %1121 = vmatpush1.msra.mxu0 0.0
    %1122 = vmatprep.subr.mxu0 0.0
    %1123 = vmatpush1.msra.mxu0 0.0
    %1124 = vmatprep.subr.mxu0 0.0
    %1125 = vmatpush1.msra.mxu0 0.0
    %1126 = vmatprep.subr.mxu0 0.0
    %1127 = vmatpush1.msra.mxu0 0.0
    %1128 = vmatprep.subr.mxu0 %v1037
    %1129 = vmatpush1.msra.mxu0 %v1036
    %1130 = vmatprep.subr.mxu0 %v1033
    %1131 = vmatpush1.msra.mxu0 %v1032
    %1132 = vmatprep.subr.mxu0 %v1029
    %1133 = vmatpush1.msra.mxu0 %v1028
    %1134 = vmatprep.subr.mxu0 %v1025
    %1135 = vmatpush1.msra.mxu0 %v1024
    %1136 = vmatprep.subr.mxu0 %v1021
    %1137 = vmatpush1.msra.mxu0 %v1020
    %1138 = vmatprep.subr.mxu0 %v1017
    %1139 = vmatpush1.msra.mxu0 %v1016
    %1140 = vmatprep.subr.mxu0 %v1013
    %1141 = vmatpush1.msra.mxu0 %v1012
    %1142 = vmatprep.subr.mxu0 %v1009
    %1143 = vmatpush1.msra.mxu0 %v1008
    %1144 = vmatprep.subr.mxu0 0.0
    %1145 = vmatpush2.msra.mxu0 0.0
    %1146 = vmatprep.subr.mxu0 0.0
    %1147 = vmatpush2.msra.mxu0 0.0
    %1148 = vmatprep.subr.mxu0 0.0
    %1149 = vmatpush2.msra.mxu0 0.0
    %1150 = vmatprep.subr.mxu0 0.0
    %1151 = vmatpush2.msra.mxu0 0.0
    %1152 = vmatprep.subr.mxu0 0.0
    %1153 = vmatpush2.msra.mxu0 0.0
    %1154 = vmatprep.subr.mxu0 0.0
    %1155 = vmatpush2.msra.mxu0 0.0
    %1156 = vmatprep.subr.mxu0 0.0
    %1157 = vmatpush2.msra.mxu0 0.0
    %1158 = vmatprep.subr.mxu0 0.0
    %1159 = vmatpush2.msra.mxu0 0.0
    %1160 = vmatprep.subr.mxu0 0.0
    %1161 = vmatpush2.msra.mxu0 0.0
    %1162 = vmatprep.subr.mxu0 0.0
    %1163 = vmatpush2.msra.mxu0 0.0
    %1164 = vmatprep.subr.mxu0 0.0
    %1165 = vmatpush2.msra.mxu0 0.0
    %1166 = vmatprep.subr.mxu0 0.0
    %1167 = vmatpush2.msra.mxu0 0.0
    %1168 = vmatprep.subr.mxu0 0.0
    %1169 = vmatpush2.msra.mxu0 0.0
    %1170 = vmatprep.subr.mxu0 0.0
    %1171 = vmatpush2.msra.mxu0 0.0
    %1172 = vmatprep.subr.mxu0 0.0
    %1173 = vmatpush2.msra.mxu0 0.0
    %1174 = vmatprep.subr.mxu0 0.0
    %1175 = vmatpush2.msra.mxu0 0.0
    %1176 = vmatprep.mubr.f32.mxu0 0.0
    %1177 = vmatmul.mubr.f32.gmra.mxu0 %v1039
    %v1178 = vpop.f32.mrf.mxu0
    %v1179 = vadd.f32 0.0, %v1178
    %v1180 = vpop.f32.mrf.mxu0
    %v1181 = vadd.f32 0.0, %v1180
    %1182 = vdwg.mxu0
    %v1187 = vcombine.low %v1108, %v1110
    %v1188 = vcombine.low %v1179, %v1181
    %v1190 = vunpack.c.l.s4 1966171168
    %v1191 = vunpack.c.0.s8 %v1190
    %v1192 = vlaneseq
    %v1193 = vshrl.u32 %v1192, 7
    %v1194 = vsub.s32 %v1191, %v1193
    %v1195 = vrot.slane %v1187, %v1194
    %v1197 = vunpack.c.l.s4 1966171168
    %v1198 = vunpack.c.0.s8 %v1197
    %v1199 = vlaneseq
    %v1200 = vshrl.u32 %v1199, 7
    %v1201 = vsub.s32 %v1198, %v1200
    %v1202 = vrot.slane %v1188, %v1201
    %v1203 = vcombine.low %v1195, %v1202
    %v1205 = vunpack.c.l.s4 1966171168
    %v1206 = vunpack.c.0.s8 %v1205
    %v1207 = vlaneseq
    %v1208 = vshrl.u32 %v1207, 7
    %v1209 = vsub.s32 %v1206, %v1208
    %v1210 = vrot.slane %v1203, %v1209
    %v1212 = vadd.f32 %v1005, %v1210
    %v1213 = vxor.u32 %v1212, 2147483648
    %v1214 = vmul.f32 %v1213, 1.442695
    %v1215 = vpow.pop %v1214
    %v1216 = vadd.f32 %v1215, 1.0
    %v1217 = vrcp.pop %v1216
    %v1218 = vmul.f32 1.0, %v1217
    %v1220 = vrot.slane %v1212, 1
    %v1222 = vxor.u32 %v1220, 2147483648
    %v1223 = vmul.f32 %v1222, 1.442695
    %v1224 = vpow.pop %v1223
    %v1225 = vadd.f32 %v1224, 1.0
    %v1226 = vrcp.pop %v1225
    %v1227 = vmul.f32 1.0, %v1226
    %v1228 = vrot.slane %v1212, 2
    %v1230 = vtanh.pop %v1228
    %v1231 = vrot.slane %v1212, 3
    %v1233 = vxor.u32 %v1231, 2147483648
    %v1234 = vmul.f32 %v1233, 1.442695
    %v1235 = vpow.pop %v1234
    %v1236 = vadd.f32 %v1235, 1.0
    %v1237 = vrcp.pop %v1236
    %v1238 = vmul.f32 1.0, %v1237
    %v1239 = vmul.f32 %v1227, %v1000
    %v1240 = vmul.f32 %v1218, %v1230
    %v1241 = vadd.f32 %v1239, %v1240
    %v1242 = vtanh.pop %v1241
    %v1243 = vmul.f32 %v1238, %v1242
    %1244 = vst [vmem:[#allocation3 + $0x3] sm:$0x1] %v1243
    %s1245 = scalar_lea.vmem [#allocation2], 4
    %v1246 = vld [vmem:[%s1245] ss:$8 sm:$0xf]
    %v1247 = vld [vmem:[#allocation5 + $0x200] sm:$0xff]
    %v1248 = vld [vmem:[#allocation5 + $0x208] sm:$0xff]
    %v1249 = vld [vmem:[#allocation5 + $0x210] sm:$0xff]
    %v1250 = vld [vmem:[#allocation5 + $0x218] sm:$0xff]
    %v1251 = vld [vmem:[#allocation5 + $0x220] sm:$0xff]
    %v1252 = vld [vmem:[#allocation5 + $0x228] sm:$0xff]
    %v1253 = vld [vmem:[#allocation5 + $0x230] sm:$0xff]
    %v1254 = vld [vmem:[#allocation5 + $0x238] sm:$0xff]
    %v1255 = vld [vmem:[#allocation5 + $0x240] sm:$0xff]
    %v1256 = vld [vmem:[#allocation5 + $0x248] sm:$0xff]
    %v1257 = vld [vmem:[#allocation5 + $0x250] sm:$0xff]
    %v1258 = vld [vmem:[#allocation5 + $0x258] sm:$0xff]
    %v1259 = vld [vmem:[#allocation5 + $0x260] sm:$0xff]
    %v1260 = vld [vmem:[#allocation5 + $0x268] sm:$0xff]
    %v1261 = vld [vmem:[#allocation5 + $0x270] sm:$0xff]
    %v1262 = vld [vmem:[#allocation5 + $0x278] sm:$0xff]
    %v1263 = vld [vmem:[#allocation5 + $0x280] sm:$0xff]
    %v1264 = vld [vmem:[#allocation5 + $0x288] sm:$0xff]
    %v1265 = vld [vmem:[#allocation5 + $0x290] sm:$0xff]
    %v1266 = vld [vmem:[#allocation5 + $0x298] sm:$0xff]
    %v1267 = vld [vmem:[#allocation5 + $0x2a0] sm:$0xff]
    %v1268 = vld [vmem:[#allocation5 + $0x2a8] sm:$0xff]
    %v1269 = vld [vmem:[#allocation5 + $0x2b0] sm:$0xff]
    %v1270 = vld [vmem:[#allocation5 + $0x2b8] sm:$0xff]
    %v1271 = vld [vmem:[#allocation5 + $0x2c0] sm:$0xff]
    %v1272 = vld [vmem:[#allocation5 + $0x2c8] sm:$0xff]
    %v1273 = vld [vmem:[#allocation5 + $0x2d0] sm:$0xff]
    %v1274 = vld [vmem:[#allocation5 + $0x2d8] sm:$0xff]
    %v1275 = vld [vmem:[#allocation5 + $0x2e0] sm:$0xff]
    %v1276 = vld [vmem:[#allocation5 + $0x2e8] sm:$0xff]
    %v1277 = vld [vmem:[#allocation5 + $0x2f0] sm:$0xff]
    %v1278 = vld [vmem:[#allocation5 + $0x2f8] sm:$0xff]
    %v1280 = vsel %vm314, %v1243, 0
    %1282 = vmatprep.subr.mxu0 0.0
    %1283 = vmatpush1.msra.mxu0 0.0
    %1284 = vmatprep.subr.mxu0 0.0
    %1285 = vmatpush1.msra.mxu0 0.0
    %1286 = vmatprep.subr.mxu0 0.0
    %1287 = vmatpush1.msra.mxu0 0.0
    %1288 = vmatprep.subr.mxu0 0.0
    %1289 = vmatpush1.msra.mxu0 0.0
    %1290 = vmatprep.subr.mxu0 0.0
    %1291 = vmatpush1.msra.mxu0 0.0
    %1292 = vmatprep.subr.mxu0 0.0
    %1293 = vmatpush1.msra.mxu0 0.0
    %1294 = vmatprep.subr.mxu0 0.0
    %1295 = vmatpush1.msra.mxu0 0.0
    %1296 = vmatprep.subr.mxu0 0.0
    %1297 = vmatpush1.msra.mxu0 0.0
    %1298 = vmatprep.subr.mxu0 %v1276
    %1299 = vmatpush1.msra.mxu0 %v1275
    %1300 = vmatprep.subr.mxu0 %v1272
    %1301 = vmatpush1.msra.mxu0 %v1271
    %1302 = vmatprep.subr.mxu0 %v1268
    %1303 = vmatpush1.msra.mxu0 %v1267
    %1304 = vmatprep.subr.mxu0 %v1264
    %1305 = vmatpush1.msra.mxu0 %v1263
    %1306 = vmatprep.subr.mxu0 %v1260
    %1307 = vmatpush1.msra.mxu0 %v1259
    %1308 = vmatprep.subr.mxu0 %v1256
    %1309 = vmatpush1.msra.mxu0 %v1255
    %1310 = vmatprep.subr.mxu0 %v1252
    %1311 = vmatpush1.msra.mxu0 %v1251
    %1312 = vmatprep.subr.mxu0 %v1248
    %1313 = vmatpush1.msra.mxu0 %v1247
    %1314 = vmatprep.subr.mxu0 0.0
    %1315 = vmatpush2.msra.mxu0 0.0
    %1316 = vmatprep.subr.mxu0 0.0
    %1317 = vmatpush2.msra.mxu0 0.0
    %1318 = vmatprep.subr.mxu0 0.0
    %1319 = vmatpush2.msra.mxu0 0.0
    %1320 = vmatprep.subr.mxu0 0.0
    %1321 = vmatpush2.msra.mxu0 0.0
    %1322 = vmatprep.subr.mxu0 0.0
    %1323 = vmatpush2.msra.mxu0 0.0
    %1324 = vmatprep.subr.mxu0 0.0
    %1325 = vmatpush2.msra.mxu0 0.0
    %1326 = vmatprep.subr.mxu0 0.0
    %1327 = vmatpush2.msra.mxu0 0.0
    %1328 = vmatprep.subr.mxu0 0.0
    %1329 = vmatpush2.msra.mxu0 0.0
    %1330 = vmatprep.subr.mxu0 0.0
    %1331 = vmatpush2.msra.mxu0 0.0
    %1332 = vmatprep.subr.mxu0 0.0
    %1333 = vmatpush2.msra.mxu0 0.0
    %1334 = vmatprep.subr.mxu0 0.0
    %1335 = vmatpush2.msra.mxu0 0.0
    %1336 = vmatprep.subr.mxu0 0.0
    %1337 = vmatpush2.msra.mxu0 0.0
    %1338 = vmatprep.subr.mxu0 0.0
    %1339 = vmatpush2.msra.mxu0 0.0
    %1340 = vmatprep.subr.mxu0 0.0
    %1341 = vmatpush2.msra.mxu0 0.0
    %1342 = vmatprep.subr.mxu0 0.0
    %1343 = vmatpush2.msra.mxu0 0.0
    %1344 = vmatprep.subr.mxu0 0.0
    %1345 = vmatpush2.msra.mxu0 0.0
    %1346 = vmatprep.mubr.f32.mxu0 0.0
    %1347 = vmatmul.mubr.f32.gmra.mxu0 %v1280
    %v1348 = vpop.f32.mrf.mxu0
    %v1349 = vadd.f32 0.0, %v1348
    %v1350 = vpop.f32.mrf.mxu0
    %v1351 = vadd.f32 0.0, %v1350
    %1352 = vdwg.mxu0
    %1353 = vmatprep.subr.mxu0 0.0
    %1354 = vmatpush1.msra.mxu0 0.0
    %1355 = vmatprep.subr.mxu0 0.0
    %1356 = vmatpush1.msra.mxu0 0.0
    %1357 = vmatprep.subr.mxu0 0.0
    %1358 = vmatpush1.msra.mxu0 0.0
    %1359 = vmatprep.subr.mxu0 0.0
    %1360 = vmatpush1.msra.mxu0 0.0
    %1361 = vmatprep.subr.mxu0 0.0
    %1362 = vmatpush1.msra.mxu0 0.0
    %1363 = vmatprep.subr.mxu0 0.0
    %1364 = vmatpush1.msra.mxu0 0.0
    %1365 = vmatprep.subr.mxu0 0.0
    %1366 = vmatpush1.msra.mxu0 0.0
    %1367 = vmatprep.subr.mxu0 0.0
    %1368 = vmatpush1.msra.mxu0 0.0
    %1369 = vmatprep.subr.mxu0 %v1278
    %1370 = vmatpush1.msra.mxu0 %v1277
    %1371 = vmatprep.subr.mxu0 %v1274
    %1372 = vmatpush1.msra.mxu0 %v1273
    %1373 = vmatprep.subr.mxu0 %v1270
    %1374 = vmatpush1.msra.mxu0 %v1269
    %1375 = vmatprep.subr.mxu0 %v1266
    %1376 = vmatpush1.msra.mxu0 %v1265
    %1377 = vmatprep.subr.mxu0 %v1262
    %1378 = vmatpush1.msra.mxu0 %v1261
    %1379 = vmatprep.subr.mxu0 %v1258
    %1380 = vmatpush1.msra.mxu0 %v1257
    %1381 = vmatprep.subr.mxu0 %v1254
    %1382 = vmatpush1.msra.mxu0 %v1253
    %1383 = vmatprep.subr.mxu0 %v1250
    %1384 = vmatpush1.msra.mxu0 %v1249
    %1385 = vmatprep.subr.mxu0 0.0
    %1386 = vmatpush2.msra.mxu0 0.0
    %1387 = vmatprep.subr.mxu0 0.0
    %1388 = vmatpush2.msra.mxu0 0.0
    %1389 = vmatprep.subr.mxu0 0.0
    %1390 = vmatpush2.msra.mxu0 0.0
    %1391 = vmatprep.subr.mxu0 0.0
    %1392 = vmatpush2.msra.mxu0 0.0
    %1393 = vmatprep.subr.mxu0 0.0
    %1394 = vmatpush2.msra.mxu0 0.0
    %1395 = vmatprep.subr.mxu0 0.0
    %1396 = vmatpush2.msra.mxu0 0.0
    %1397 = vmatprep.subr.mxu0 0.0
    %1398 = vmatpush2.msra.mxu0 0.0
    %1399 = vmatprep.subr.mxu0 0.0
    %1400 = vmatpush2.msra.mxu0 0.0
    %1401 = vmatprep.subr.mxu0 0.0
    %1402 = vmatpush2.msra.mxu0 0.0
    %1403 = vmatprep.subr.mxu0 0.0
    %1404 = vmatpush2.msra.mxu0 0.0
    %1405 = vmatprep.subr.mxu0 0.0
    %1406 = vmatpush2.msra.mxu0 0.0
    %1407 = vmatprep.subr.mxu0 0.0
    %1408 = vmatpush2.msra.mxu0 0.0
    %1409 = vmatprep.subr.mxu0 0.0
    %1410 = vmatpush2.msra.mxu0 0.0
    %1411 = vmatprep.subr.mxu0 0.0
    %1412 = vmatpush2.msra.mxu0 0.0
    %1413 = vmatprep.subr.mxu0 0.0
    %1414 = vmatpush2.msra.mxu0 0.0
    %1415 = vmatprep.subr.mxu0 0.0
    %1416 = vmatpush2.msra.mxu0 0.0
    %1417 = vmatprep.mubr.f32.mxu0 0.0
    %1418 = vmatmul.mubr.f32.gmra.mxu0 %v1280
    %v1419 = vpop.f32.mrf.mxu0
    %v1420 = vadd.f32 0.0, %v1419
    %v1421 = vpop.f32.mrf.mxu0
    %v1422 = vadd.f32 0.0, %v1421
    %1423 = vdwg.mxu0
    %v1428 = vcombine.low %v1349, %v1351
    %v1429 = vcombine.low %v1420, %v1422
    %v1431 = vunpack.c.l.s4 1966171168
    %v1432 = vunpack.c.0.s8 %v1431
    %v1433 = vlaneseq
    %v1434 = vshrl.u32 %v1433, 7
    %v1435 = vsub.s32 %v1432, %v1434
    %v1436 = vrot.slane %v1428, %v1435
    %v1438 = vunpack.c.l.s4 1966171168
    %v1439 = vunpack.c.0.s8 %v1438
    %v1440 = vlaneseq
    %v1441 = vshrl.u32 %v1440, 7
    %v1442 = vsub.s32 %v1439, %v1441
    %v1443 = vrot.slane %v1429, %v1442
    %v1444 = vcombine.low %v1436, %v1443
    %v1446 = vunpack.c.l.s4 1966171168
    %v1447 = vunpack.c.0.s8 %v1446
    %v1448 = vlaneseq
    %v1449 = vshrl.u32 %v1448, 7
    %v1450 = vsub.s32 %v1447, %v1449
    %v1451 = vrot.slane %v1444, %v1450
    %v1453 = vadd.f32 %v1246, %v1451
    %v1454 = vxor.u32 %v1453, 2147483648
    %v1455 = vmul.f32 %v1454, 1.442695
    %v1456 = vpow.pop %v1455
    %v1457 = vadd.f32 %v1456, 1.0
    %v1458 = vrcp.pop %v1457
    %v1459 = vmul.f32 1.0, %v1458
    %v1461 = vrot.slane %v1453, 1
    %v1463 = vxor.u32 %v1461, 2147483648
    %v1464 = vmul.f32 %v1463, 1.442695
    %v1465 = vpow.pop %v1464
    %v1466 = vadd.f32 %v1465, 1.0
    %v1467 = vrcp.pop %v1466
    %v1468 = vmul.f32 1.0, %v1467
    %v1469 = vrot.slane %v1453, 2
    %v1471 = vtanh.pop %v1469
    %v1472 = vrot.slane %v1453, 3
    %v1474 = vxor.u32 %v1472, 2147483648
    %v1475 = vmul.f32 %v1474, 1.442695
    %v1476 = vpow.pop %v1475
    %v1477 = vadd.f32 %v1476, 1.0
    %v1478 = vrcp.pop %v1477
    %v1479 = vmul.f32 1.0, %v1478
    %v1480 = vmul.f32 %v1468, %v1241
    %v1481 = vmul.f32 %v1459, %v1471
    %v1482 = vadd.f32 %v1480, %v1481
    %v1483 = vtanh.pop %v1482
    %v1484 = vmul.f32 %v1479, %v1483
    %1485 = vst [vmem:[#allocation3 + $0x4] sm:$0x1] %v1484
    %s1486 = scalar_lea.vmem [#allocation2], 5
    %v1487 = vld [vmem:[%s1486] ss:$8 sm:$0xf]
    %v1488 = vld [vmem:[#allocation5 + $0x200] sm:$0xff]
    %v1489 = vld [vmem:[#allocation5 + $0x208] sm:$0xff]
    %v1490 = vld [vmem:[#allocation5 + $0x210] sm:$0xff]
    %v1491 = vld [vmem:[#allocation5 + $0x218] sm:$0xff]
    %v1492 = vld [vmem:[#allocation5 + $0x220] sm:$0xff]
    %v1493 = vld [vmem:[#allocation5 + $0x228] sm:$0xff]
    %v1494 = vld [vmem:[#allocation5 + $0x230] sm:$0xff]
    %v1495 = vld [vmem:[#allocation5 + $0x238] sm:$0xff]
    %v1496 = vld [vmem:[#allocation5 + $0x240] sm:$0xff]
    %v1497 = vld [vmem:[#allocation5 + $0x248] sm:$0xff]
    %v1498 = vld [vmem:[#allocation5 + $0x250] sm:$0xff]
    %v1499 = vld [vmem:[#allocation5 + $0x258] sm:$0xff]
    %v1500 = vld [vmem:[#allocation5 + $0x260] sm:$0xff]
    %v1501 = vld [vmem:[#allocation5 + $0x268] sm:$0xff]
    %v1502 = vld [vmem:[#allocation5 + $0x270] sm:$0xff]
    %v1503 = vld [vmem:[#allocation5 + $0x278] sm:$0xff]
    %v1504 = vld [vmem:[#allocation5 + $0x280] sm:$0xff]
    %v1505 = vld [vmem:[#allocation5 + $0x288] sm:$0xff]
    %v1506 = vld [vmem:[#allocation5 + $0x290] sm:$0xff]
    %v1507 = vld [vmem:[#allocation5 + $0x298] sm:$0xff]
    %v1508 = vld [vmem:[#allocation5 + $0x2a0] sm:$0xff]
    %v1509 = vld [vmem:[#allocation5 + $0x2a8] sm:$0xff]
    %v1510 = vld [vmem:[#allocation5 + $0x2b0] sm:$0xff]
    %v1511 = vld [vmem:[#allocation5 + $0x2b8] sm:$0xff]
    %v1512 = vld [vmem:[#allocation5 + $0x2c0] sm:$0xff]
    %v1513 = vld [vmem:[#allocation5 + $0x2c8] sm:$0xff]
    %v1514 = vld [vmem:[#allocation5 + $0x2d0] sm:$0xff]
    %v1515 = vld [vmem:[#allocation5 + $0x2d8] sm:$0xff]
    %v1516 = vld [vmem:[#allocation5 + $0x2e0] sm:$0xff]
    %v1517 = vld [vmem:[#allocation5 + $0x2e8] sm:$0xff]
    %v1518 = vld [vmem:[#allocation5 + $0x2f0] sm:$0xff]
    %v1519 = vld [vmem:[#allocation5 + $0x2f8] sm:$0xff]
    %v1521 = vsel %vm314, %v1484, 0
    %1523 = vmatprep.subr.mxu0 0.0
    %1524 = vmatpush1.msra.mxu0 0.0
    %1525 = vmatprep.subr.mxu0 0.0
    %1526 = vmatpush1.msra.mxu0 0.0
    %1527 = vmatprep.subr.mxu0 0.0
    %1528 = vmatpush1.msra.mxu0 0.0
    %1529 = vmatprep.subr.mxu0 0.0
    %1530 = vmatpush1.msra.mxu0 0.0
    %1531 = vmatprep.subr.mxu0 0.0
    %1532 = vmatpush1.msra.mxu0 0.0
    %1533 = vmatprep.subr.mxu0 0.0
    %1534 = vmatpush1.msra.mxu0 0.0
    %1535 = vmatprep.subr.mxu0 0.0
    %1536 = vmatpush1.msra.mxu0 0.0
    %1537 = vmatprep.subr.mxu0 0.0
    %1538 = vmatpush1.msra.mxu0 0.0
    %1539 = vmatprep.subr.mxu0 %v1517
    %1540 = vmatpush1.msra.mxu0 %v1516
    %1541 = vmatprep.subr.mxu0 %v1513
    %1542 = vmatpush1.msra.mxu0 %v1512
    %1543 = vmatprep.subr.mxu0 %v1509
    %1544 = vmatpush1.msra.mxu0 %v1508
    %1545 = vmatprep.subr.mxu0 %v1505
    %1546 = vmatpush1.msra.mxu0 %v1504
    %1547 = vmatprep.subr.mxu0 %v1501
    %1548 = vmatpush1.msra.mxu0 %v1500
    %1549 = vmatprep.subr.mxu0 %v1497
    %1550 = vmatpush1.msra.mxu0 %v1496
    %1551 = vmatprep.subr.mxu0 %v1493
    %1552 = vmatpush1.msra.mxu0 %v1492
    %1553 = vmatprep.subr.mxu0 %v1489
    %1554 = vmatpush1.msra.mxu0 %v1488
    %1555 = vmatprep.subr.mxu0 0.0
    %1556 = vmatpush2.msra.mxu0 0.0
    %1557 = vmatprep.subr.mxu0 0.0
    %1558 = vmatpush2.msra.mxu0 0.0
    %1559 = vmatprep.subr.mxu0 0.0
    %1560 = vmatpush2.msra.mxu0 0.0
    %1561 = vmatprep.subr.mxu0 0.0
    %1562 = vmatpush2.msra.mxu0 0.0
    %1563 = vmatprep.subr.mxu0 0.0
    %1564 = vmatpush2.msra.mxu0 0.0
    %1565 = vmatprep.subr.mxu0 0.0
    %1566 = vmatpush2.msra.mxu0 0.0
    %1567 = vmatprep.subr.mxu0 0.0
    %1568 = vmatpush2.msra.mxu0 0.0
    %1569 = vmatprep.subr.mxu0 0.0
    %1570 = vmatpush2.msra.mxu0 0.0
    %1571 = vmatprep.subr.mxu0 0.0
    %1572 = vmatpush2.msra.mxu0 0.0
    %1573 = vmatprep.subr.mxu0 0.0
    %1574 = vmatpush2.msra.mxu0 0.0
    %1575 = vmatprep.subr.mxu0 0.0
    %1576 = vmatpush2.msra.mxu0 0.0
    %1577 = vmatprep.subr.mxu0 0.0
    %1578 = vmatpush2.msra.mxu0 0.0
    %1579 = vmatprep.subr.mxu0 0.0
    %1580 = vmatpush2.msra.mxu0 0.0
    %1581 = vmatprep.subr.mxu0 0.0
    %1582 = vmatpush2.msra.mxu0 0.0
    %1583 = vmatprep.subr.mxu0 0.0
    %1584 = vmatpush2.msra.mxu0 0.0
    %1585 = vmatprep.subr.mxu0 0.0
    %1586 = vmatpush2.msra.mxu0 0.0
    %1587 = vmatprep.mubr.f32.mxu0 0.0
    %1588 = vmatmul.mubr.f32.gmra.mxu0 %v1521
    %v1589 = vpop.f32.mrf.mxu0
    %v1590 = vadd.f32 0.0, %v1589
    %v1591 = vpop.f32.mrf.mxu0
    %v1592 = vadd.f32 0.0, %v1591
    %1593 = vdwg.mxu0
    %1594 = vmatprep.subr.mxu0 0.0
    %1595 = vmatpush1.msra.mxu0 0.0
    %1596 = vmatprep.subr.mxu0 0.0
    %1597 = vmatpush1.msra.mxu0 0.0
    %1598 = vmatprep.subr.mxu0 0.0
    %1599 = vmatpush1.msra.mxu0 0.0
    %1600 = vmatprep.subr.mxu0 0.0
    %1601 = vmatpush1.msra.mxu0 0.0
    %1602 = vmatprep.subr.mxu0 0.0
    %1603 = vmatpush1.msra.mxu0 0.0
    %1604 = vmatprep.subr.mxu0 0.0
    %1605 = vmatpush1.msra.mxu0 0.0
    %1606 = vmatprep.subr.mxu0 0.0
    %1607 = vmatpush1.msra.mxu0 0.0
    %1608 = vmatprep.subr.mxu0 0.0
    %1609 = vmatpush1.msra.mxu0 0.0
    %1610 = vmatprep.subr.mxu0 %v1519
    %1611 = vmatpush1.msra.mxu0 %v1518
    %1612 = vmatprep.subr.mxu0 %v1515
    %1613 = vmatpush1.msra.mxu0 %v1514
    %1614 = vmatprep.subr.mxu0 %v1511
    %1615 = vmatpush1.msra.mxu0 %v1510
    %1616 = vmatprep.subr.mxu0 %v1507
    %1617 = vmatpush1.msra.mxu0 %v1506
    %1618 = vmatprep.subr.mxu0 %v1503
    %1619 = vmatpush1.msra.mxu0 %v1502
    %1620 = vmatprep.subr.mxu0 %v1499
    %1621 = vmatpush1.msra.mxu0 %v1498
    %1622 = vmatprep.subr.mxu0 %v1495
    %1623 = vmatpush1.msra.mxu0 %v1494
    %1624 = vmatprep.subr.mxu0 %v1491
    %1625 = vmatpush1.msra.mxu0 %v1490
    %1626 = vmatprep.subr.mxu0 0.0
    %1627 = vmatpush2.msra.mxu0 0.0
    %1628 = vmatprep.subr.mxu0 0.0
    %1629 = vmatpush2.msra.mxu0 0.0
    %1630 = vmatprep.subr.mxu0 0.0
    %1631 = vmatpush2.msra.mxu0 0.0
    %1632 = vmatprep.subr.mxu0 0.0
    %1633 = vmatpush2.msra.mxu0 0.0
    %1634 = vmatprep.subr.mxu0 0.0
    %1635 = vmatpush2.msra.mxu0 0.0
    %1636 = vmatprep.subr.mxu0 0.0
    %1637 = vmatpush2.msra.mxu0 0.0
    %1638 = vmatprep.subr.mxu0 0.0
    %1639 = vmatpush2.msra.mxu0 0.0
    %1640 = vmatprep.subr.mxu0 0.0
    %1641 = vmatpush2.msra.mxu0 0.0
    %1642 = vmatprep.subr.mxu0 0.0
    %1643 = vmatpush2.msra.mxu0 0.0
    %1644 = vmatprep.subr.mxu0 0.0
    %1645 = vmatpush2.msra.mxu0 0.0
    %1646 = vmatprep.subr.mxu0 0.0
    %1647 = vmatpush2.msra.mxu0 0.0
    %1648 = vmatprep.subr.mxu0 0.0
    %1649 = vmatpush2.msra.mxu0 0.0
    %1650 = vmatprep.subr.mxu0 0.0
    %1651 = vmatpush2.msra.mxu0 0.0
    %1652 = vmatprep.subr.mxu0 0.0
    %1653 = vmatpush2.msra.mxu0 0.0
    %1654 = vmatprep.subr.mxu0 0.0
    %1655 = vmatpush2.msra.mxu0 0.0
    %1656 = vmatprep.subr.mxu0 0.0
    %1657 = vmatpush2.msra.mxu0 0.0
    %1658 = vmatprep.mubr.f32.mxu0 0.0
    %1659 = vmatmul.mubr.f32.gmra.mxu0 %v1521
    %v1660 = vpop.f32.mrf.mxu0
    %v1661 = vadd.f32 0.0, %v1660
    %v1662 = vpop.f32.mrf.mxu0
    %v1663 = vadd.f32 0.0, %v1662
    %1664 = vdwg.mxu0
    %v1669 = vcombine.low %v1590, %v1592
    %v1670 = vcombine.low %v1661, %v1663
    %v1672 = vunpack.c.l.s4 1966171168
    %v1673 = vunpack.c.0.s8 %v1672
    %v1674 = vlaneseq
    %v1675 = vshrl.u32 %v1674, 7
    %v1676 = vsub.s32 %v1673, %v1675
    %v1677 = vrot.slane %v1669, %v1676
    %v1679 = vunpack.c.l.s4 1966171168
    %v1680 = vunpack.c.0.s8 %v1679
    %v1681 = vlaneseq
    %v1682 = vshrl.u32 %v1681, 7
    %v1683 = vsub.s32 %v1680, %v1682
    %v1684 = vrot.slane %v1670, %v1683
    %v1685 = vcombine.low %v1677, %v1684
    %v1687 = vunpack.c.l.s4 1966171168
    %v1688 = vunpack.c.0.s8 %v1687
    %v1689 = vlaneseq
    %v1690 = vshrl.u32 %v1689, 7
    %v1691 = vsub.s32 %v1688, %v1690
    %v1692 = vrot.slane %v1685, %v1691
    %v1694 = vadd.f32 %v1487, %v1692
    %v1695 = vxor.u32 %v1694, 2147483648
    %v1696 = vmul.f32 %v1695, 1.442695
    %v1697 = vpow.pop %v1696
    %v1698 = vadd.f32 %v1697, 1.0
    %v1699 = vrcp.pop %v1698
    %v1700 = vmul.f32 1.0, %v1699
    %v1702 = vrot.slane %v1694, 1
    %v1704 = vxor.u32 %v1702, 2147483648
    %v1705 = vmul.f32 %v1704, 1.442695
    %v1706 = vpow.pop %v1705
    %v1707 = vadd.f32 %v1706, 1.0
    %v1708 = vrcp.pop %v1707
    %v1709 = vmul.f32 1.0, %v1708
    %v1710 = vrot.slane %v1694, 2
    %v1712 = vtanh.pop %v1710
    %v1713 = vrot.slane %v1694, 3
    %v1715 = vxor.u32 %v1713, 2147483648
    %v1716 = vmul.f32 %v1715, 1.442695
    %v1717 = vpow.pop %v1716
    %v1718 = vadd.f32 %v1717, 1.0
    %v1719 = vrcp.pop %v1718
    %v1720 = vmul.f32 1.0, %v1719
    %v1721 = vmul.f32 %v1709, %v1482
    %v1722 = vmul.f32 %v1700, %v1712
    %v1723 = vadd.f32 %v1721, %v1722
    %v1724 = vtanh.pop %v1723
    %v1725 = vmul.f32 %v1720, %v1724
    %1726 = vst [vmem:[#allocation3 + $0x5] sm:$0x1] %v1725
    %s1727 = scalar_lea.vmem [#allocation2], 6
    %v1728 = vld [vmem:[%s1727] ss:$8 sm:$0xf]
    %v1729 = vld [vmem:[#allocation5 + $0x200] sm:$0xff]
    %v1730 = vld [vmem:[#allocation5 + $0x208] sm:$0xff]
    %v1731 = vld [vmem:[#allocation5 + $0x210] sm:$0xff]
    %v1732 = vld [vmem:[#allocation5 + $0x218] sm:$0xff]
    %v1733 = vld [vmem:[#allocation5 + $0x220] sm:$0xff]
    %v1734 = vld [vmem:[#allocation5 + $0x228] sm:$0xff]
    %v1735 = vld [vmem:[#allocation5 + $0x230] sm:$0xff]
    %v1736 = vld [vmem:[#allocation5 + $0x238] sm:$0xff]
    %v1737 = vld [vmem:[#allocation5 + $0x240] sm:$0xff]
    %v1738 = vld [vmem:[#allocation5 + $0x248] sm:$0xff]
    %v1739 = vld [vmem:[#allocation5 + $0x250] sm:$0xff]
    %v1740 = vld [vmem:[#allocation5 + $0x258] sm:$0xff]
    %v1741 = vld [vmem:[#allocation5 + $0x260] sm:$0xff]
    %v1742 = vld [vmem:[#allocation5 + $0x268] sm:$0xff]
    %v1743 = vld [vmem:[#allocation5 + $0x270] sm:$0xff]
    %v1744 = vld [vmem:[#allocation5 + $0x278] sm:$0xff]
    %v1745 = vld [vmem:[#allocation5 + $0x280] sm:$0xff]
    %v1746 = vld [vmem:[#allocation5 + $0x288] sm:$0xff]
    %v1747 = vld [vmem:[#allocation5 + $0x290] sm:$0xff]
    %v1748 = vld [vmem:[#allocation5 + $0x298] sm:$0xff]
    %v1749 = vld [vmem:[#allocation5 + $0x2a0] sm:$0xff]
    %v1750 = vld [vmem:[#allocation5 + $0x2a8] sm:$0xff]
    %v1751 = vld [vmem:[#allocation5 + $0x2b0] sm:$0xff]
    %v1752 = vld [vmem:[#allocation5 + $0x2b8] sm:$0xff]
    %v1753 = vld [vmem:[#allocation5 + $0x2c0] sm:$0xff]
    %v1754 = vld [vmem:[#allocation5 + $0x2c8] sm:$0xff]
    %v1755 = vld [vmem:[#allocation5 + $0x2d0] sm:$0xff]
    %v1756 = vld [vmem:[#allocation5 + $0x2d8] sm:$0xff]
    %v1757 = vld [vmem:[#allocation5 + $0x2e0] sm:$0xff]
    %v1758 = vld [vmem:[#allocation5 + $0x2e8] sm:$0xff]
    %v1759 = vld [vmem:[#allocation5 + $0x2f0] sm:$0xff]
    %v1760 = vld [vmem:[#allocation5 + $0x2f8] sm:$0xff]
    %v1762 = vsel %vm314, %v1725, 0
    %1764 = vmatprep.subr.mxu0 0.0
    %1765 = vmatpush1.msra.mxu0 0.0
    %1766 = vmatprep.subr.mxu0 0.0
    %1767 = vmatpush1.msra.mxu0 0.0
    %1768 = vmatprep.subr.mxu0 0.0
    %1769 = vmatpush1.msra.mxu0 0.0
    %1770 = vmatprep.subr.mxu0 0.0
    %1771 = vmatpush1.msra.mxu0 0.0
    %1772 = vmatprep.subr.mxu0 0.0
    %1773 = vmatpush1.msra.mxu0 0.0
    %1774 = vmatprep.subr.mxu0 0.0
    %1775 = vmatpush1.msra.mxu0 0.0
    %1776 = vmatprep.subr.mxu0 0.0
    %1777 = vmatpush1.msra.mxu0 0.0
    %1778 = vmatprep.subr.mxu0 0.0
    %1779 = vmatpush1.msra.mxu0 0.0
    %1780 = vmatprep.subr.mxu0 %v1758
    %1781 = vmatpush1.msra.mxu0 %v1757
    %1782 = vmatprep.subr.mxu0 %v1754
    %1783 = vmatpush1.msra.mxu0 %v1753
    %1784 = vmatprep.subr.mxu0 %v1750
    %1785 = vmatpush1.msra.mxu0 %v1749
    %1786 = vmatprep.subr.mxu0 %v1746
    %1787 = vmatpush1.msra.mxu0 %v1745
    %1788 = vmatprep.subr.mxu0 %v1742
    %1789 = vmatpush1.msra.mxu0 %v1741
    %1790 = vmatprep.subr.mxu0 %v1738
    %1791 = vmatpush1.msra.mxu0 %v1737
    %1792 = vmatprep.subr.mxu0 %v1734
    %1793 = vmatpush1.msra.mxu0 %v1733
    %1794 = vmatprep.subr.mxu0 %v1730
    %1795 = vmatpush1.msra.mxu0 %v1729
    %1796 = vmatprep.subr.mxu0 0.0
    %1797 = vmatpush2.msra.mxu0 0.0
    %1798 = vmatprep.subr.mxu0 0.0
    %1799 = vmatpush2.msra.mxu0 0.0
    %1800 = vmatprep.subr.mxu0 0.0
    %1801 = vmatpush2.msra.mxu0 0.0
    %1802 = vmatprep.subr.mxu0 0.0
    %1803 = vmatpush2.msra.mxu0 0.0
    %1804 = vmatprep.subr.mxu0 0.0
    %1805 = vmatpush2.msra.mxu0 0.0
    %1806 = vmatprep.subr.mxu0 0.0
    %1807 = vmatpush2.msra.mxu0 0.0
    %1808 = vmatprep.subr.mxu0 0.0
    %1809 = vmatpush2.msra.mxu0 0.0
    %1810 = vmatprep.subr.mxu0 0.0
    %1811 = vmatpush2.msra.mxu0 0.0
    %1812 = vmatprep.subr.mxu0 0.0
    %1813 = vmatpush2.msra.mxu0 0.0
    %1814 = vmatprep.subr.mxu0 0.0
    %1815 = vmatpush2.msra.mxu0 0.0
    %1816 = vmatprep.subr.mxu0 0.0
    %1817 = vmatpush2.msra.mxu0 0.0
    %1818 = vmatprep.subr.mxu0 0.0
    %1819 = vmatpush2.msra.mxu0 0.0
    %1820 = vmatprep.subr.mxu0 0.0
    %1821 = vmatpush2.msra.mxu0 0.0
    %1822 = vmatprep.subr.mxu0 0.0
    %1823 = vmatpush2.msra.mxu0 0.0
    %1824 = vmatprep.subr.mxu0 0.0
    %1825 = vmatpush2.msra.mxu0 0.0
    %1826 = vmatprep.subr.mxu0 0.0
    %1827 = vmatpush2.msra.mxu0 0.0
    %1828 = vmatprep.mubr.f32.mxu0 0.0
    %1829 = vmatmul.mubr.f32.gmra.mxu0 %v1762
    %v1830 = vpop.f32.mrf.mxu0
    %v1831 = vadd.f32 0.0, %v1830
    %v1832 = vpop.f32.mrf.mxu0
    %v1833 = vadd.f32 0.0, %v1832
    %1834 = vdwg.mxu0
    %1835 = vmatprep.subr.mxu0 0.0
    %1836 = vmatpush1.msra.mxu0 0.0
    %1837 = vmatprep.subr.mxu0 0.0
    %1838 = vmatpush1.msra.mxu0 0.0
    %1839 = vmatprep.subr.mxu0 0.0
    %1840 = vmatpush1.msra.mxu0 0.0
    %1841 = vmatprep.subr.mxu0 0.0
    %1842 = vmatpush1.msra.mxu0 0.0
    %1843 = vmatprep.subr.mxu0 0.0
    %1844 = vmatpush1.msra.mxu0 0.0
    %1845 = vmatprep.subr.mxu0 0.0
    %1846 = vmatpush1.msra.mxu0 0.0
    %1847 = vmatprep.subr.mxu0 0.0
    %1848 = vmatpush1.msra.mxu0 0.0
    %1849 = vmatprep.subr.mxu0 0.0
    %1850 = vmatpush1.msra.mxu0 0.0
    %1851 = vmatprep.subr.mxu0 %v1760
    %1852 = vmatpush1.msra.mxu0 %v1759
    %1853 = vmatprep.subr.mxu0 %v1756
    %1854 = vmatpush1.msra.mxu0 %v1755
    %1855 = vmatprep.subr.mxu0 %v1752
    %1856 = vmatpush1.msra.mxu0 %v1751
    %1857 = vmatprep.subr.mxu0 %v1748
    %1858 = vmatpush1.msra.mxu0 %v1747
    %1859 = vmatprep.subr.mxu0 %v1744
    %1860 = vmatpush1.msra.mxu0 %v1743
    %1861 = vmatprep.subr.mxu0 %v1740
    %1862 = vmatpush1.msra.mxu0 %v1739
    %1863 = vmatprep.subr.mxu0 %v1736
    %1864 = vmatpush1.msra.mxu0 %v1735
    %1865 = vmatprep.subr.mxu0 %v1732
    %1866 = vmatpush1.msra.mxu0 %v1731
    %1867 = vmatprep.subr.mxu0 0.0
    %1868 = vmatpush2.msra.mxu0 0.0
    %1869 = vmatprep.subr.mxu0 0.0
    %1870 = vmatpush2.msra.mxu0 0.0
    %1871 = vmatprep.subr.mxu0 0.0
    %1872 = vmatpush2.msra.mxu0 0.0
    %1873 = vmatprep.subr.mxu0 0.0
    %1874 = vmatpush2.msra.mxu0 0.0
    %1875 = vmatprep.subr.mxu0 0.0
    %1876 = vmatpush2.msra.mxu0 0.0
    %1877 = vmatprep.subr.mxu0 0.0
    %1878 = vmatpush2.msra.mxu0 0.0
    %1879 = vmatprep.subr.mxu0 0.0
    %1880 = vmatpush2.msra.mxu0 0.0
    %1881 = vmatprep.subr.mxu0 0.0
    %1882 = vmatpush2.msra.mxu0 0.0
    %1883 = vmatprep.subr.mxu0 0.0
    %1884 = vmatpush2.msra.mxu0 0.0
    %1885 = vmatprep.subr.mxu0 0.0
    %1886 = vmatpush2.msra.mxu0 0.0
    %1887 = vmatprep.subr.mxu0 0.0
    %1888 = vmatpush2.msra.mxu0 0.0
    %1889 = vmatprep.subr.mxu0 0.0
    %1890 = vmatpush2.msra.mxu0 0.0
    %1891 = vmatprep.subr.mxu0 0.0
    %1892 = vmatpush2.msra.mxu0 0.0
    %1893 = vmatprep.subr.mxu0 0.0
    %1894 = vmatpush2.msra.mxu0 0.0
    %1895 = vmatprep.subr.mxu0 0.0
    %1896 = vmatpush2.msra.mxu0 0.0
    %1897 = vmatprep.subr.mxu0 0.0
    %1898 = vmatpush2.msra.mxu0 0.0
    %1899 = vmatprep.mubr.f32.mxu0 0.0
    %1900 = vmatmul.mubr.f32.gmra.mxu0 %v1762
    %v1901 = vpop.f32.mrf.mxu0
    %v1902 = vadd.f32 0.0, %v1901
    %v1903 = vpop.f32.mrf.mxu0
    %v1904 = vadd.f32 0.0, %v1903
    %1905 = vdwg.mxu0
    %v1910 = vcombine.low %v1831, %v1833
    %v1911 = vcombine.low %v1902, %v1904
    %v1913 = vunpack.c.l.s4 1966171168
    %v1914 = vunpack.c.0.s8 %v1913
    %v1915 = vlaneseq
    %v1916 = vshrl.u32 %v1915, 7
    %v1917 = vsub.s32 %v1914, %v1916
    %v1918 = vrot.slane %v1910, %v1917
    %v1920 = vunpack.c.l.s4 1966171168
    %v1921 = vunpack.c.0.s8 %v1920
    %v1922 = vlaneseq
    %v1923 = vshrl.u32 %v1922, 7
    %v1924 = vsub.s32 %v1921, %v1923
    %v1925 = vrot.slane %v1911, %v1924
    %v1926 = vcombine.low %v1918, %v1925
    %v1928 = vunpack.c.l.s4 1966171168
    %v1929 = vunpack.c.0.s8 %v1928
    %v1930 = vlaneseq
    %v1931 = vshrl.u32 %v1930, 7
    %v1932 = vsub.s32 %v1929, %v1931
    %v1933 = vrot.slane %v1926, %v1932
    %v1935 = vadd.f32 %v1728, %v1933
    %v1936 = vxor.u32 %v1935, 2147483648
    %v1937 = vmul.f32 %v1936, 1.442695
    %v1938 = vpow.pop %v1937
    %v1939 = vadd.f32 %v1938, 1.0
    %v1940 = vrcp.pop %v1939
    %v1941 = vmul.f32 1.0, %v1940
    %v1943 = vrot.slane %v1935, 1
    %v1945 = vxor.u32 %v1943, 2147483648
    %v1946 = vmul.f32 %v1945, 1.442695
    %v1947 = vpow.pop %v1946
    %v1948 = vadd.f32 %v1947, 1.0
    %v1949 = vrcp.pop %v1948
    %v1950 = vmul.f32 1.0, %v1949
    %v1951 = vrot.slane %v1935, 2
    %v1953 = vtanh.pop %v1951
    %v1954 = vrot.slane %v1935, 3
    %v1956 = vxor.u32 %v1954, 2147483648
    %v1957 = vmul.f32 %v1956, 1.442695
    %v1958 = vpow.pop %v1957
    %v1959 = vadd.f32 %v1958, 1.0
    %v1960 = vrcp.pop %v1959
    %v1961 = vmul.f32 1.0, %v1960
    %v1962 = vmul.f32 %v1950, %v1723
    %v1963 = vmul.f32 %v1941, %v1953
    %v1964 = vadd.f32 %v1962, %v1963
    %v1965 = vtanh.pop %v1964
    %v1966 = vmul.f32 %v1961, %v1965
    %1967 = vst [vmem:[#allocation3 + $0x6] sm:$0x1] %v1966
    %s1968 = scalar_lea.vmem [#allocation2], 7
    %v1969 = vld [vmem:[%s1968] ss:$8 sm:$0xf]
    %v1970 = vld [vmem:[#allocation5 + $0x200] sm:$0xff]
    %v1971 = vld [vmem:[#allocation5 + $0x208] sm:$0xff]
    %v1972 = vld [vmem:[#allocation5 + $0x210] sm:$0xff]
    %v1973 = vld [vmem:[#allocation5 + $0x218] sm:$0xff]
    %v1974 = vld [vmem:[#allocation5 + $0x220] sm:$0xff]
    %v1975 = vld [vmem:[#allocation5 + $0x228] sm:$0xff]
    %v1976 = vld [vmem:[#allocation5 + $0x230] sm:$0xff]
    %v1977 = vld [vmem:[#allocation5 + $0x238] sm:$0xff]
    %v1978 = vld [vmem:[#allocation5 + $0x240] sm:$0xff]
    %v1979 = vld [vmem:[#allocation5 + $0x248] sm:$0xff]
    %v1980 = vld [vmem:[#allocation5 + $0x250] sm:$0xff]
    %v1981 = vld [vmem:[#allocation5 + $0x258] sm:$0xff]
    %v1982 = vld [vmem:[#allocation5 + $0x260] sm:$0xff]
    %v1983 = vld [vmem:[#allocation5 + $0x268] sm:$0xff]
    %v1984 = vld [vmem:[#allocation5 + $0x270] sm:$0xff]
    %v1985 = vld [vmem:[#allocation5 + $0x278] sm:$0xff]
    %v1986 = vld [vmem:[#allocation5 + $0x280] sm:$0xff]
    %v1987 = vld [vmem:[#allocation5 + $0x288] sm:$0xff]
    %v1988 = vld [vmem:[#allocation5 + $0x290] sm:$0xff]
    %v1989 = vld [vmem:[#allocation5 + $0x298] sm:$0xff]
    %v1990 = vld [vmem:[#allocation5 + $0x2a0] sm:$0xff]
    %v1991 = vld [vmem:[#allocation5 + $0x2a8] sm:$0xff]
    %v1992 = vld [vmem:[#allocation5 + $0x2b0] sm:$0xff]
    %v1993 = vld [vmem:[#allocation5 + $0x2b8] sm:$0xff]
    %v1994 = vld [vmem:[#allocation5 + $0x2c0] sm:$0xff]
    %v1995 = vld [vmem:[#allocation5 + $0x2c8] sm:$0xff]
    %v1996 = vld [vmem:[#allocation5 + $0x2d0] sm:$0xff]
    %v1997 = vld [vmem:[#allocation5 + $0x2d8] sm:$0xff]
    %v1998 = vld [vmem:[#allocation5 + $0x2e0] sm:$0xff]
    %v1999 = vld [vmem:[#allocation5 + $0x2e8] sm:$0xff]
    %v2000 = vld [vmem:[#allocation5 + $0x2f0] sm:$0xff]
    %v2001 = vld [vmem:[#allocation5 + $0x2f8] sm:$0xff]
    %v2003 = vsel %vm314, %v1966, 0
    %2005 = vmatprep.subr.mxu0 0.0
    %2006 = vmatpush1.msra.mxu0 0.0
    %2007 = vmatprep.subr.mxu0 0.0
    %2008 = vmatpush1.msra.mxu0 0.0
    %2009 = vmatprep.subr.mxu0 0.0
    %2010 = vmatpush1.msra.mxu0 0.0
    %2011 = vmatprep.subr.mxu0 0.0
    %2012 = vmatpush1.msra.mxu0 0.0
    %2013 = vmatprep.subr.mxu0 0.0
    %2014 = vmatpush1.msra.mxu0 0.0
    %2015 = vmatprep.subr.mxu0 0.0
    %2016 = vmatpush1.msra.mxu0 0.0
    %2017 = vmatprep.subr.mxu0 0.0
    %2018 = vmatpush1.msra.mxu0 0.0
    %2019 = vmatprep.subr.mxu0 0.0
    %2020 = vmatpush1.msra.mxu0 0.0
    %2021 = vmatprep.subr.mxu0 %v1999
    %2022 = vmatpush1.msra.mxu0 %v1998
    %2023 = vmatprep.subr.mxu0 %v1995
    %2024 = vmatpush1.msra.mxu0 %v1994
    %2025 = vmatprep.subr.mxu0 %v1991
    %2026 = vmatpush1.msra.mxu0 %v1990
    %2027 = vmatprep.subr.mxu0 %v1987
    %2028 = vmatpush1.msra.mxu0 %v1986
    %2029 = vmatprep.subr.mxu0 %v1983
    %2030 = vmatpush1.msra.mxu0 %v1982
    %2031 = vmatprep.subr.mxu0 %v1979
    %2032 = vmatpush1.msra.mxu0 %v1978
    %2033 = vmatprep.subr.mxu0 %v1975
    %2034 = vmatpush1.msra.mxu0 %v1974
    %2035 = vmatprep.subr.mxu0 %v1971
    %2036 = vmatpush1.msra.mxu0 %v1970
    %2037 = vmatprep.subr.mxu0 0.0
    %2038 = vmatpush2.msra.mxu0 0.0
    %2039 = vmatprep.subr.mxu0 0.0
    %2040 = vmatpush2.msra.mxu0 0.0
    %2041 = vmatprep.subr.mxu0 0.0
    %2042 = vmatpush2.msra.mxu0 0.0
    %2043 = vmatprep.subr.mxu0 0.0
    %2044 = vmatpush2.msra.mxu0 0.0
    %2045 = vmatprep.subr.mxu0 0.0
    %2046 = vmatpush2.msra.mxu0 0.0
    %2047 = vmatprep.subr.mxu0 0.0
    %2048 = vmatpush2.msra.mxu0 0.0
    %2049 = vmatprep.subr.mxu0 0.0
    %2050 = vmatpush2.msra.mxu0 0.0
    %2051 = vmatprep.subr.mxu0 0.0
    %2052 = vmatpush2.msra.mxu0 0.0
    %2053 = vmatprep.subr.mxu0 0.0
    %2054 = vmatpush2.msra.mxu0 0.0
    %2055 = vmatprep.subr.mxu0 0.0
    %2056 = vmatpush2.msra.mxu0 0.0
    %2057 = vmatprep.subr.mxu0 0.0
    %2058 = vmatpush2.msra.mxu0 0.0
    %2059 = vmatprep.subr.mxu0 0.0
    %2060 = vmatpush2.msra.mxu0 0.0
    %2061 = vmatprep.subr.mxu0 0.0
    %2062 = vmatpush2.msra.mxu0 0.0
    %2063 = vmatprep.subr.mxu0 0.0
    %2064 = vmatpush2.msra.mxu0 0.0
    %2065 = vmatprep.subr.mxu0 0.0
    %2066 = vmatpush2.msra.mxu0 0.0
    %2067 = vmatprep.subr.mxu0 0.0
    %2068 = vmatpush2.msra.mxu0 0.0
    %2069 = vmatprep.mubr.f32.mxu0 0.0
    %2070 = vmatmul.mubr.f32.gmra.mxu0 %v2003
    %v2071 = vpop.f32.mrf.mxu0
    %v2072 = vadd.f32 0.0, %v2071
    %v2073 = vpop.f32.mrf.mxu0
    %v2074 = vadd.f32 0.0, %v2073
    %2075 = vdwg.mxu0
    %2076 = vmatprep.subr.mxu0 0.0
    %2077 = vmatpush1.msra.mxu0 0.0
    %2078 = vmatprep.subr.mxu0 0.0
    %2079 = vmatpush1.msra.mxu0 0.0
    %2080 = vmatprep.subr.mxu0 0.0
    %2081 = vmatpush1.msra.mxu0 0.0
    %2082 = vmatprep.subr.mxu0 0.0
    %2083 = vmatpush1.msra.mxu0 0.0
    %2084 = vmatprep.subr.mxu0 0.0
    %2085 = vmatpush1.msra.mxu0 0.0
    %2086 = vmatprep.subr.mxu0 0.0
    %2087 = vmatpush1.msra.mxu0 0.0
    %2088 = vmatprep.subr.mxu0 0.0
    %2089 = vmatpush1.msra.mxu0 0.0
    %2090 = vmatprep.subr.mxu0 0.0
    %2091 = vmatpush1.msra.mxu0 0.0
    %2092 = vmatprep.subr.mxu0 %v2001
    %2093 = vmatpush1.msra.mxu0 %v2000
    %2094 = vmatprep.subr.mxu0 %v1997
    %2095 = vmatpush1.msra.mxu0 %v1996
    %2096 = vmatprep.subr.mxu0 %v1993
    %2097 = vmatpush1.msra.mxu0 %v1992
    %2098 = vmatprep.subr.mxu0 %v1989
    %2099 = vmatpush1.msra.mxu0 %v1988
    %2100 = vmatprep.subr.mxu0 %v1985
    %2101 = vmatpush1.msra.mxu0 %v1984
    %2102 = vmatprep.subr.mxu0 %v1981
    %2103 = vmatpush1.msra.mxu0 %v1980
    %2104 = vmatprep.subr.mxu0 %v1977
    %2105 = vmatpush1.msra.mxu0 %v1976
    %2106 = vmatprep.subr.mxu0 %v1973
    %2107 = vmatpush1.msra.mxu0 %v1972
    %2108 = vmatprep.subr.mxu0 0.0
    %2109 = vmatpush2.msra.mxu0 0.0
    %2110 = vmatprep.subr.mxu0 0.0
    %2111 = vmatpush2.msra.mxu0 0.0
    %2112 = vmatprep.subr.mxu0 0.0
    %2113 = vmatpush2.msra.mxu0 0.0
    %2114 = vmatprep.subr.mxu0 0.0
    %2115 = vmatpush2.msra.mxu0 0.0
    %2116 = vmatprep.subr.mxu0 0.0
    %2117 = vmatpush2.msra.mxu0 0.0
    %2118 = vmatprep.subr.mxu0 0.0
    %2119 = vmatpush2.msra.mxu0 0.0
    %2120 = vmatprep.subr.mxu0 0.0
    %2121 = vmatpush2.msra.mxu0 0.0
    %2122 = vmatprep.subr.mxu0 0.0
    %2123 = vmatpush2.msra.mxu0 0.0
    %2124 = vmatprep.subr.mxu0 0.0
    %2125 = vmatpush2.msra.mxu0 0.0
    %2126 = vmatprep.subr.mxu0 0.0
    %2127 = vmatpush2.msra.mxu0 0.0
    %2128 = vmatprep.subr.mxu0 0.0
    %2129 = vmatpush2.msra.mxu0 0.0
    %2130 = vmatprep.subr.mxu0 0.0
    %2131 = vmatpush2.msra.mxu0 0.0
    %2132 = vmatprep.subr.mxu0 0.0
    %2133 = vmatpush2.msra.mxu0 0.0
    %2134 = vmatprep.subr.mxu0 0.0
    %2135 = vmatpush2.msra.mxu0 0.0
    %2136 = vmatprep.subr.mxu0 0.0
    %2137 = vmatpush2.msra.mxu0 0.0
    %2138 = vmatprep.subr.mxu0 0.0
    %2139 = vmatpush2.msra.mxu0 0.0
    %2140 = vmatprep.mubr.f32.mxu0 0.0
    %2141 = vmatmul.mubr.f32.gmra.mxu0 %v2003
    %v2142 = vpop.f32.mrf.mxu0
    %v2143 = vadd.f32 0.0, %v2142
    %v2144 = vpop.f32.mrf.mxu0
    %v2145 = vadd.f32 0.0, %v2144
    %2146 = vdwg.mxu0
    %v2151 = vcombine.low %v2072, %v2074
    %v2152 = vcombine.low %v2143, %v2145
    %v2154 = vunpack.c.l.s4 1966171168
    %v2155 = vunpack.c.0.s8 %v2154
    %v2156 = vlaneseq
    %v2157 = vshrl.u32 %v2156, 7
    %v2158 = vsub.s32 %v2155, %v2157
    %v2159 = vrot.slane %v2151, %v2158
    %v2161 = vunpack.c.l.s4 1966171168
    %v2162 = vunpack.c.0.s8 %v2161
    %v2163 = vlaneseq
    %v2164 = vshrl.u32 %v2163, 7
    %v2165 = vsub.s32 %v2162, %v2164
    %v2166 = vrot.slane %v2152, %v2165
    %v2167 = vcombine.low %v2159, %v2166
    %v2169 = vunpack.c.l.s4 1966171168
    %v2170 = vunpack.c.0.s8 %v2169
    %v2171 = vlaneseq
    %v2172 = vshrl.u32 %v2171, 7
    %v2173 = vsub.s32 %v2170, %v2172
    %v2174 = vrot.slane %v2167, %v2173
    %v2176 = vadd.f32 %v1969, %v2174
    %v2177 = vxor.u32 %v2176, 2147483648
    %v2178 = vmul.f32 %v2177, 1.442695
    %v2179 = vpow.pop %v2178
    %v2180 = vadd.f32 %v2179, 1.0
    %v2181 = vrcp.pop %v2180
    %v2182 = vmul.f32 1.0, %v2181
    %v2184 = vrot.slane %v2176, 1
    %v2186 = vxor.u32 %v2184, 2147483648
    %v2187 = vmul.f32 %v2186, 1.442695
    %v2188 = vpow.pop %v2187
    %v2189 = vadd.f32 %v2188, 1.0
    %v2190 = vrcp.pop %v2189
    %v2191 = vmul.f32 1.0, %v2190
    %v2192 = vrot.slane %v2176, 2
    %v2194 = vtanh.pop %v2192
    %v2195 = vrot.slane %v2176, 3
    %v2197 = vxor.u32 %v2195, 2147483648
    %v2198 = vmul.f32 %v2197, 1.442695
    %v2199 = vpow.pop %v2198
    %v2200 = vadd.f32 %v2199, 1.0
    %v2201 = vrcp.pop %v2200
    %v2202 = vmul.f32 1.0, %v2201
    %v2203 = vmul.f32 %v2191, %v1964
    %v2204 = vmul.f32 %v2182, %v2194
    %v2205 = vadd.f32 %v2203, %v2204
    %v2206 = vtanh.pop %v2205
    %v2207 = vmul.f32 %v2202, %v2206
    %2208 = vst [vmem:[#allocation3 + $0x7] sm:$0x1] %v2207
    %v2209 = vmul.f32 %v2207, %v42
    %vm2210 = vcmask 1040384
    %v2211 = vsel %vm2210, %v2209, 0.0
    %2212 = vadd.xlane.f32.xlu0 %v2211
    %v2213 = vpop.xlane.xlu0 %2212
    %v2214 = vadd.f32 %v2213, %v43
    %2216 = vset.pattern.permute.xlu0 0
    %2217 = vperm.xlu0 %2216, %v2214
    %v2218 = vpop.permute.xlu0 %2217
    %v2220 = vmul.f32 %v2218, %v40
    %v2221 = vadd.f32 %v2220, %v41
    %v2222 = vxor.u32 %v2221, 2147483648
    %v2223 = vmul.f32 %v2222, 1.442695
    %v2224 = vpow.pop %v2223
    %v2225 = vadd.f32 %v2224, 1.0
    %v2226 = vrcp.pop %v2225
    %v2227 = vmul.f32 1.0, %v2226
    %v2228 = vld [vmem:[#allocation5] sm:$0xff]
    %v2229 = vld [vmem:[#allocation5 + $0x8] sm:$0xff]
    %v2230 = vld [vmem:[#allocation5 + $0x10] sm:$0xff]
    %v2231 = vld [vmem:[#allocation5 + $0x18] sm:$0xff]
    %v2232 = vld [vmem:[#allocation5 + $0x20] sm:$0xff]
    %v2233 = vld [vmem:[#allocation5 + $0x28] sm:$0xff]
    %v2234 = vld [vmem:[#allocation5 + $0x30] sm:$0xff]
    %v2235 = vld [vmem:[#allocation5 + $0x38] sm:$0xff]
    %v2236 = vld [vmem:[#allocation5 + $0x40] sm:$0xff]
    %v2237 = vld [vmem:[#allocation5 + $0x48] sm:$0xff]
    %v2238 = vld [vmem:[#allocation5 + $0x50] sm:$0xff]
    %v2239 = vld [vmem:[#allocation5 + $0x58] sm:$0xff]
    %v2240 = vld [vmem:[#allocation5 + $0x60] sm:$0xff]
    %v2241 = vld [vmem:[#allocation5 + $0x68] sm:$0xff]
    %v2242 = vld [vmem:[#allocation5 + $0x70] sm:$0xff]
    %v2243 = vld [vmem:[#allocation5 + $0x78] sm:$0xff]
    %v2244 = vld [vmem:[#allocation5 + $0x80] sm:$0xff]
    %v2245 = vld [vmem:[#allocation5 + $0x88] sm:$0xff]
    %v2246 = vld [vmem:[#allocation5 + $0x90] sm:$0xff]
    %v2247 = vld [vmem:[#allocation5 + $0x98] sm:$0xff]
    %v2248 = vld [vmem:[#allocation5 + $0xa0] sm:$0xff]
    %v2249 = vld [vmem:[#allocation5 + $0xa8] sm:$0xff]
    %v2250 = vld [vmem:[#allocation5 + $0xb0] sm:$0xff]
    %v2251 = vld [vmem:[#allocation5 + $0xb8] sm:$0xff]
    %v2252 = vld [vmem:[#allocation5 + $0xc0] sm:$0xff]
    %v2253 = vld [vmem:[#allocation5 + $0xc8] sm:$0xff]
    %v2254 = vld [vmem:[#allocation5 + $0xd0] sm:$0xff]
    %v2255 = vld [vmem:[#allocation5 + $0xd8] sm:$0xff]
    %v2256 = vld [vmem:[#allocation5 + $0xe0] sm:$0xff]
    %v2257 = vld [vmem:[#allocation5 + $0xe8] sm:$0xff]
    %v2258 = vld [vmem:[#allocation5 + $0xf0] sm:$0xff]
    %v2259 = vld [vmem:[#allocation5 + $0xf8] sm:$0xff]
    %v2260 = vld [vmem:[#allocation5 + $0x100] sm:$0xff]
    %v2261 = vld [vmem:[#allocation5 + $0x108] sm:$0xff]
    %v2262 = vld [vmem:[#allocation5 + $0x110] sm:$0xff]
    %v2263 = vld [vmem:[#allocation5 + $0x118] sm:$0xff]
    %v2264 = vld [vmem:[#allocation5 + $0x120] sm:$0xff]
    %v2265 = vld [vmem:[#allocation5 + $0x128] sm:$0xff]
    %v2266 = vld [vmem:[#allocation5 + $0x130] sm:$0xff]
    %v2267 = vld [vmem:[#allocation5 + $0x138] sm:$0xff]
    %v2268 = vld [vmem:[#allocation5 + $0x140] sm:$0xff]
    %v2269 = vld [vmem:[#allocation5 + $0x148] sm:$0xff]
    %v2270 = vld [vmem:[#allocation5 + $0x150] sm:$0xff]
    %v2271 = vld [vmem:[#allocation5 + $0x158] sm:$0xff]
    %v2272 = vld [vmem:[#allocation5 + $0x160] sm:$0xff]
    %v2273 = vld [vmem:[#allocation5 + $0x168] sm:$0xff]
    %v2274 = vld [vmem:[#allocation5 + $0x170] sm:$0xff]
    %v2275 = vld [vmem:[#allocation5 + $0x178] sm:$0xff]
    %v2276 = vld [vmem:[#allocation5 + $0x180] sm:$0xff]
    %v2277 = vld [vmem:[#allocation5 + $0x188] sm:$0xff]
    %v2278 = vld [vmem:[#allocation5 + $0x190] sm:$0xff]
    %v2279 = vld [vmem:[#allocation5 + $0x198] sm:$0xff]
    %v2280 = vld [vmem:[#allocation5 + $0x1a0] sm:$0xff]
    %v2281 = vld [vmem:[#allocation5 + $0x1a8] sm:$0xff]
    %v2282 = vld [vmem:[#allocation5 + $0x1b0] sm:$0xff]
    %v2283 = vld [vmem:[#allocation5 + $0x1b8] sm:$0xff]
    %v2284 = vld [vmem:[#allocation5 + $0x1c0] sm:$0xff]
    %v2285 = vld [vmem:[#allocation5 + $0x1c8] sm:$0xff]
    %v2286 = vld [vmem:[#allocation5 + $0x1d0] sm:$0xff]
    %v2287 = vld [vmem:[#allocation5 + $0x1d8] sm:$0xff]
    %v2288 = vld [vmem:[#allocation5 + $0x1e0] sm:$0xff]
    %v2289 = vld [vmem:[#allocation5 + $0x1e8] sm:$0xff]
    %v2290 = vld [vmem:[#allocation5 + $0x1f0] sm:$0xff]
    %v2291 = vld [vmem:[#allocation5 + $0x1f8] sm:$0xff]
    %v2292 = vld [vmem:[#allocation5 + $0x200] sm:$0xff]
    %v2293 = vld [vmem:[#allocation5 + $0x208] sm:$0xff]
    %v2294 = vld [vmem:[#allocation5 + $0x210] sm:$0xff]
    %v2295 = vld [vmem:[#allocation5 + $0x218] sm:$0xff]
    %v2296 = vld [vmem:[#allocation5 + $0x220] sm:$0xff]
    %v2297 = vld [vmem:[#allocation5 + $0x228] sm:$0xff]
    %v2298 = vld [vmem:[#allocation5 + $0x230] sm:$0xff]
    %v2299 = vld [vmem:[#allocation5 + $0x238] sm:$0xff]
    %v2300 = vld [vmem:[#allocation5 + $0x240] sm:$0xff]
    %v2301 = vld [vmem:[#allocation5 + $0x248] sm:$0xff]
    %v2302 = vld [vmem:[#allocation5 + $0x250] sm:$0xff]
    %v2303 = vld [vmem:[#allocation5 + $0x258] sm:$0xff]
    %v2304 = vld [vmem:[#allocation5 + $0x260] sm:$0xff]
    %v2305 = vld [vmem:[#allocation5 + $0x268] sm:$0xff]
    %v2306 = vld [vmem:[#allocation5 + $0x270] sm:$0xff]
    %v2307 = vld [vmem:[#allocation5 + $0x278] sm:$0xff]
    %v2308 = vld [vmem:[#allocation5 + $0x280] sm:$0xff]
    %v2309 = vld [vmem:[#allocation5 + $0x288] sm:$0xff]
    %v2310 = vld [vmem:[#allocation5 + $0x290] sm:$0xff]
    %v2311 = vld [vmem:[#allocation5 + $0x298] sm:$0xff]
    %v2312 = vld [vmem:[#allocation5 + $0x2a0] sm:$0xff]
    %v2313 = vld [vmem:[#allocation5 + $0x2a8] sm:$0xff]
    %v2314 = vld [vmem:[#allocation5 + $0x2b0] sm:$0xff]
    %v2315 = vld [vmem:[#allocation5 + $0x2b8] sm:$0xff]
    %v2316 = vld [vmem:[#allocation5 + $0x2c0] sm:$0xff]
    %v2317 = vld [vmem:[#allocation5 + $0x2c8] sm:$0xff]
    %v2318 = vld [vmem:[#allocation5 + $0x2d0] sm:$0xff]
    %v2319 = vld [vmem:[#allocation5 + $0x2d8] sm:$0xff]
    %v2320 = vld [vmem:[#allocation5 + $0x2e0] sm:$0xff]
    %v2321 = vld [vmem:[#allocation5 + $0x2e8] sm:$0xff]
    %v2322 = vld [vmem:[#allocation5 + $0x2f0] sm:$0xff]
    %v2323 = vld [vmem:[#allocation5 + $0x2f8] sm:$0xff]
    %v2324 = vld [vmem:[#allocation5 + $0x300] sm:$0xff]
    %v2325 = vld [vmem:[#allocation5 + $0x308] sm:$0xff]
    %v2326 = vld [vmem:[#allocation5 + $0x310] sm:$0xff]
    %v2327 = vld [vmem:[#allocation5 + $0x318] sm:$0xff]
    %v2328 = vld [vmem:[#allocation5 + $0x320] sm:$0xff]
    %v2329 = vld [vmem:[#allocation5 + $0x328] sm:$0xff]
    %v2330 = vld [vmem:[#allocation5 + $0x330] sm:$0xff]
    %v2331 = vld [vmem:[#allocation5 + $0x338] sm:$0xff]
    %v2332 = vld [vmem:[#allocation5 + $0x340] sm:$0xff]
    %v2333 = vld [vmem:[#allocation5 + $0x348] sm:$0xff]
    %v2334 = vld [vmem:[#allocation5 + $0x350] sm:$0xff]
    %v2335 = vld [vmem:[#allocation5 + $0x358] sm:$0xff]
    %v2336 = vld [vmem:[#allocation5 + $0x360] sm:$0xff]
    %v2337 = vld [vmem:[#allocation5 + $0x368] sm:$0xff]
    %v2338 = vld [vmem:[#allocation5 + $0x370] sm:$0xff]
    %v2339 = vld [vmem:[#allocation5 + $0x378] sm:$0xff]
    %v2340 = vld [vmem:[#allocation5 + $0x380] sm:$0xff]
    %v2341 = vld [vmem:[#allocation5 + $0x388] sm:$0xff]
    %v2342 = vld [vmem:[#allocation5 + $0x390] sm:$0xff]
    %v2343 = vld [vmem:[#allocation5 + $0x398] sm:$0xff]
    %v2344 = vld [vmem:[#allocation5 + $0x3a0] sm:$0xff]
    %v2345 = vld [vmem:[#allocation5 + $0x3a8] sm:$0xff]
    %v2346 = vld [vmem:[#allocation5 + $0x3b0] sm:$0xff]
    %v2347 = vld [vmem:[#allocation5 + $0x3b8] sm:$0xff]
    %v2348 = vld [vmem:[#allocation5 + $0x3c0] sm:$0xff]
    %v2349 = vld [vmem:[#allocation5 + $0x3c8] sm:$0xff]
    %v2350 = vld [vmem:[#allocation5 + $0x3d0] sm:$0xff]
    %v2351 = vld [vmem:[#allocation5 + $0x3d8] sm:$0xff]
    %v2352 = vld [vmem:[#allocation5 + $0x3e0] sm:$0xff]
    %v2353 = vld [vmem:[#allocation5 + $0x3e8] sm:$0xff]
    %v2354 = vld [vmem:[#allocation5 + $0x3f0] sm:$0xff]
    %v2355 = vld [vmem:[#allocation5 + $0x3f8] sm:$0xff]
    %2356 = vmatprep.subr.mxu0 %v2289
    %2357 = vmatpush1.msra.mxu0 %v2288
    %2358 = vmatprep.subr.mxu0 %v2285
    %2359 = vmatpush1.msra.mxu0 %v2284
    %2360 = vmatprep.subr.mxu0 %v2281
    %2361 = vmatpush1.msra.mxu0 %v2280
    %2362 = vmatprep.subr.mxu0 %v2277
    %2363 = vmatpush1.msra.mxu0 %v2276
    %2364 = vmatprep.subr.mxu0 %v2273
    %2365 = vmatpush1.msra.mxu0 %v2272
    %2366 = vmatprep.subr.mxu0 %v2269
    %2367 = vmatpush1.msra.mxu0 %v2268
    %2368 = vmatprep.subr.mxu0 %v2265
    %2369 = vmatpush1.msra.mxu0 %v2264
    %2370 = vmatprep.subr.mxu0 %v2261
    %2371 = vmatpush1.msra.mxu0 %v2260
    %2372 = vmatprep.subr.mxu0 %v2257
    %2373 = vmatpush1.msra.mxu0 %v2256
    %2374 = vmatprep.subr.mxu0 %v2253
    %2375 = vmatpush1.msra.mxu0 %v2252
    %2376 = vmatprep.subr.mxu0 %v2249
    %2377 = vmatpush1.msra.mxu0 %v2248
    %2378 = vmatprep.subr.mxu0 %v2245
    %2379 = vmatpush1.msra.mxu0 %v2244
    %2380 = vmatprep.subr.mxu0 %v2241
    %2381 = vmatpush1.msra.mxu0 %v2240
    %2382 = vmatprep.subr.mxu0 %v2237
    %2383 = vmatpush1.msra.mxu0 %v2236
    %2384 = vmatprep.subr.mxu0 %v2233
    %2385 = vmatpush1.msra.mxu0 %v2232
    %2386 = vmatprep.subr.mxu0 %v2229
    %2387 = vmatpush1.msra.mxu0 %v2228
    %2388 = vmatprep.subr.mxu0 %v2353
    %2389 = vmatpush2.msra.mxu0 %v2352
    %2390 = vmatprep.subr.mxu0 %v2349
    %2391 = vmatpush2.msra.mxu0 %v2348
    %2392 = vmatprep.subr.mxu0 %v2345
    %2393 = vmatpush2.msra.mxu0 %v2344
    %2394 = vmatprep.subr.mxu0 %v2341
    %2395 = vmatpush2.msra.mxu0 %v2340
    %2396 = vmatprep.subr.mxu0 %v2337
    %2397 = vmatpush2.msra.mxu0 %v2336
    %2398 = vmatprep.subr.mxu0 %v2333
    %2399 = vmatpush2.msra.mxu0 %v2332
    %2400 = vmatprep.subr.mxu0 %v2329
    %2401 = vmatpush2.msra.mxu0 %v2328
    %2402 = vmatprep.subr.mxu0 %v2325
    %2403 = vmatpush2.msra.mxu0 %v2324
    %2404 = vmatprep.subr.mxu0 %v2321
    %2405 = vmatpush2.msra.mxu0 %v2320
    %2406 = vmatprep.subr.mxu0 %v2317
    %2407 = vmatpush2.msra.mxu0 %v2316
    %2408 = vmatprep.subr.mxu0 %v2313
    %2409 = vmatpush2.msra.mxu0 %v2312
    %2410 = vmatprep.subr.mxu0 %v2309
    %2411 = vmatpush2.msra.mxu0 %v2308
    %2412 = vmatprep.subr.mxu0 %v2305
    %2413 = vmatpush2.msra.mxu0 %v2304
    %2414 = vmatprep.subr.mxu0 %v2301
    %2415 = vmatpush2.msra.mxu0 %v2300
    %2416 = vmatprep.subr.mxu0 %v2297
    %2417 = vmatpush2.msra.mxu0 %v2296
    %2418 = vmatprep.subr.mxu0 %v2293
    %2419 = vmatpush2.msra.mxu0 %v2292
    %2420 = vmatprep.mubr.f32.mxu0 %v2207
    %2421 = vmatmul.mubr.f32.gmra.mxu0 %v2227
    %v2422 = vpop.f32.mrf.mxu0
    %v2423 = vadd.f32 0.0, %v2422
    %v2424 = vpop.f32.mrf.mxu0
    %v2425 = vadd.f32 0.0, %v2424
    %2426 = vdwg.mxu0
    %2427 = vmatprep.subr.mxu0 %v2291
    %2428 = vmatpush1.msra.mxu0 %v2290
    %2429 = vmatprep.subr.mxu0 %v2287
    %2430 = vmatpush1.msra.mxu0 %v2286
    %2431 = vmatprep.subr.mxu0 %v2283
    %2432 = vmatpush1.msra.mxu0 %v2282
    %2433 = vmatprep.subr.mxu0 %v2279
    %2434 = vmatpush1.msra.mxu0 %v2278
    %2435 = vmatprep.subr.mxu0 %v2275
    %2436 = vmatpush1.msra.mxu0 %v2274
    %2437 = vmatprep.subr.mxu0 %v2271
    %2438 = vmatpush1.msra.mxu0 %v2270
    %2439 = vmatprep.subr.mxu0 %v2267
    %2440 = vmatpush1.msra.mxu0 %v2266
    %2441 = vmatprep.subr.mxu0 %v2263
    %2442 = vmatpush1.msra.mxu0 %v2262
    %2443 = vmatprep.subr.mxu0 %v2259
    %2444 = vmatpush1.msra.mxu0 %v2258
    %2445 = vmatprep.subr.mxu0 %v2255
    %2446 = vmatpush1.msra.mxu0 %v2254
    %2447 = vmatprep.subr.mxu0 %v2251
    %2448 = vmatpush1.msra.mxu0 %v2250
    %2449 = vmatprep.subr.mxu0 %v2247
    %2450 = vmatpush1.msra.mxu0 %v2246
    %2451 = vmatprep.subr.mxu0 %v2243
    %2452 = vmatpush1.msra.mxu0 %v2242
    %2453 = vmatprep.subr.mxu0 %v2239
    %2454 = vmatpush1.msra.mxu0 %v2238
    %2455 = vmatprep.subr.mxu0 %v2235
    %2456 = vmatpush1.msra.mxu0 %v2234
    %2457 = vmatprep.subr.mxu0 %v2231
    %2458 = vmatpush1.msra.mxu0 %v2230
    %2459 = vmatprep.subr.mxu0 %v2355
    %2460 = vmatpush2.msra.mxu0 %v2354
    %2461 = vmatprep.subr.mxu0 %v2351
    %2462 = vmatpush2.msra.mxu0 %v2350
    %2463 = vmatprep.subr.mxu0 %v2347
    %2464 = vmatpush2.msra.mxu0 %v2346
    %2465 = vmatprep.subr.mxu0 %v2343
    %2466 = vmatpush2.msra.mxu0 %v2342
    %2467 = vmatprep.subr.mxu0 %v2339
    %2468 = vmatpush2.msra.mxu0 %v2338
    %2469 = vmatprep.subr.mxu0 %v2335
    %2470 = vmatpush2.msra.mxu0 %v2334
    %2471 = vmatprep.subr.mxu0 %v2331
    %2472 = vmatpush2.msra.mxu0 %v2330
    %2473 = vmatprep.subr.mxu0 %v2327
    %2474 = vmatpush2.msra.mxu0 %v2326
    %2475 = vmatprep.subr.mxu0 %v2323
    %2476 = vmatpush2.msra.mxu0 %v2322
    %2477 = vmatprep.subr.mxu0 %v2319
    %2478 = vmatpush2.msra.mxu0 %v2318
    %2479 = vmatprep.subr.mxu0 %v2315
    %2480 = vmatpush2.msra.mxu0 %v2314
    %2481 = vmatprep.subr.mxu0 %v2311
    %2482 = vmatpush2.msra.mxu0 %v2310
    %2483 = vmatprep.subr.mxu0 %v2307
    %2484 = vmatpush2.msra.mxu0 %v2306
    %2485 = vmatprep.subr.mxu0 %v2303
    %2486 = vmatpush2.msra.mxu0 %v2302
    %2487 = vmatprep.subr.mxu0 %v2299
    %2488 = vmatpush2.msra.mxu0 %v2298
    %2489 = vmatprep.subr.mxu0 %v2295
    %2490 = vmatpush2.msra.mxu0 %v2294
    %2491 = vmatprep.mubr.f32.mxu0 %v2207
    %2492 = vmatmul.mubr.f32.gmra.mxu0 %v2227
    %v2493 = vpop.f32.mrf.mxu0
    %v2494 = vadd.f32 0.0, %v2493
    %v2495 = vpop.f32.mrf.mxu0
    %v2496 = vadd.f32 0.0, %v2495
    %2497 = vdwg.mxu0
    %v2498 = vxor.u32 %v2423, 2147483648
    %v2499 = vmul.f32 %v2498, 1.442695
    %v2500 = vpow.pop %v2499
    %v2501 = vadd.f32 %v2500, 1.0
    %v2502 = vrcp.pop %v2501
    %v2503 = vmul.f32 1.0, %v2502
    %v2504 = vxor.u32 %v2425, 2147483648
    %v2505 = vmul.f32 %v2504, 1.442695
    %v2506 = vpow.pop %v2505
    %v2507 = vadd.f32 %v2506, 1.0
    %v2508 = vrcp.pop %v2507
    %v2509 = vmul.f32 1.0, %v2508
    %v2510 = vtanh.pop %v2494
    %v2511 = vxor.u32 %v2496, 2147483648
    %v2512 = vmul.f32 %v2511, 1.442695
    %v2513 = vpow.pop %v2512
    %v2514 = vadd.f32 %v2513, 1.0
    %v2515 = vrcp.pop %v2514
    %v2516 = vmul.f32 1.0, %v2515
    %v2517 = vmul.f32 %v2509, %v2205
    %v2518 = vmul.f32 %v2503, %v2510
    %v2519 = vadd.f32 %v2517, %v2518
    %v2520 = vtanh.pop %v2519
    %v2521 = vmul.f32 %v2516, %v2520
    %2522 = vst [vmem:[#allocation3 + $0x8] sm:$0x1] %v2521
    %v2523 = vmul.f32 %v2521, %v42
    %v2524 = vsel %vm2210, %v2523, 0.0
    %2525 = vadd.xlane.f32.xlu0 %v2524
    %v2526 = vpop.xlane.xlu0 %2525
    %v2527 = vadd.f32 %v2526, %v43
    %2529 = vset.pattern.permute.xlu0 0
    %2530 = vperm.xlu0 %2529, %v2527
    %v2531 = vpop.permute.xlu0 %2530
    %v2533 = vmul.f32 %v2531, %v40
    %v2534 = vadd.f32 %v2533, %v41
    %v2535 = vxor.u32 %v2534, 2147483648
    %v2536 = vmul.f32 %v2535, 1.442695
    %v2537 = vpow.pop %v2536
    %v2538 = vadd.f32 %v2537, 1.0
    %v2539 = vrcp.pop %v2538
    %v2540 = vmul.f32 1.0, %v2539
    %v2541 = vld [vmem:[#allocation5] sm:$0xff]
    %v2542 = vld [vmem:[#allocation5 + $0x8] sm:$0xff]
    %v2543 = vld [vmem:[#allocation5 + $0x10] sm:$0xff]
    %v2544 = vld [vmem:[#allocation5 + $0x18] sm:$0xff]
    %v2545 = vld [vmem:[#allocation5 + $0x20] sm:$0xff]
    %v2546 = vld [vmem:[#allocation5 + $0x28] sm:$0xff]
    %v2547 = vld [vmem:[#allocation5 + $0x30] sm:$0xff]
    %v2548 = vld [vmem:[#allocation5 + $0x38] sm:$0xff]
    %v2549 = vld [vmem:[#allocation5 + $0x40] sm:$0xff]
    %v2550 = vld [vmem:[#allocation5 + $0x48] sm:$0xff]
    %v2551 = vld [vmem:[#allocation5 + $0x50] sm:$0xff]
    %v2552 = vld [vmem:[#allocation5 + $0x58] sm:$0xff]
    %v2553 = vld [vmem:[#allocation5 + $0x60] sm:$0xff]
    %v2554 = vld [vmem:[#allocation5 + $0x68] sm:$0xff]
    %v2555 = vld [vmem:[#allocation5 + $0x70] sm:$0xff]
    %v2556 = vld [vmem:[#allocation5 + $0x78] sm:$0xff]
    %v2557 = vld [vmem:[#allocation5 + $0x80] sm:$0xff]
    %v2558 = vld [vmem:[#allocation5 + $0x88] sm:$0xff]
    %v2559 = vld [vmem:[#allocation5 + $0x90] sm:$0xff]
    %v2560 = vld [vmem:[#allocation5 + $0x98] sm:$0xff]
    %v2561 = vld [vmem:[#allocation5 + $0xa0] sm:$0xff]
    %v2562 = vld [vmem:[#allocation5 + $0xa8] sm:$0xff]
    %v2563 = vld [vmem:[#allocation5 + $0xb0] sm:$0xff]
    %v2564 = vld [vmem:[#allocation5 + $0xb8] sm:$0xff]
    %v2565 = vld [vmem:[#allocation5 + $0xc0] sm:$0xff]
    %v2566 = vld [vmem:[#allocation5 + $0xc8] sm:$0xff]
    %v2567 = vld [vmem:[#allocation5 + $0xd0] sm:$0xff]
    %v2568 = vld [vmem:[#allocation5 + $0xd8] sm:$0xff]
    %v2569 = vld [vmem:[#allocation5 + $0xe0] sm:$0xff]
    %v2570 = vld [vmem:[#allocation5 + $0xe8] sm:$0xff]
    %v2571 = vld [vmem:[#allocation5 + $0xf0] sm:$0xff]
    %v2572 = vld [vmem:[#allocation5 + $0xf8] sm:$0xff]
    %v2573 = vld [vmem:[#allocation5 + $0x100] sm:$0xff]
    %v2574 = vld [vmem:[#allocation5 + $0x108] sm:$0xff]
    %v2575 = vld [vmem:[#allocation5 + $0x110] sm:$0xff]
    %v2576 = vld [vmem:[#allocation5 + $0x118] sm:$0xff]
    %v2577 = vld [vmem:[#allocation5 + $0x120] sm:$0xff]
    %v2578 = vld [vmem:[#allocation5 + $0x128] sm:$0xff]
    %v2579 = vld [vmem:[#allocation5 + $0x130] sm:$0xff]
    %v2580 = vld [vmem:[#allocation5 + $0x138] sm:$0xff]
    %v2581 = vld [vmem:[#allocation5 + $0x140] sm:$0xff]
    %v2582 = vld [vmem:[#allocation5 + $0x148] sm:$0xff]
    %v2583 = vld [vmem:[#allocation5 + $0x150] sm:$0xff]
    %v2584 = vld [vmem:[#allocation5 + $0x158] sm:$0xff]
    %v2585 = vld [vmem:[#allocation5 + $0x160] sm:$0xff]
    %v2586 = vld [vmem:[#allocation5 + $0x168] sm:$0xff]
    %v2587 = vld [vmem:[#allocation5 + $0x170] sm:$0xff]
    %v2588 = vld [vmem:[#allocation5 + $0x178] sm:$0xff]
    %v2589 = vld [vmem:[#allocation5 + $0x180] sm:$0xff]
    %v2590 = vld [vmem:[#allocation5 + $0x188] sm:$0xff]
    %v2591 = vld [vmem:[#allocation5 + $0x190] sm:$0xff]
    %v2592 = vld [vmem:[#allocation5 + $0x198] sm:$0xff]
    %v2593 = vld [vmem:[#allocation5 + $0x1a0] sm:$0xff]
    %v2594 = vld [vmem:[#allocation5 + $0x1a8] sm:$0xff]
    %v2595 = vld [vmem:[#allocation5 + $0x1b0] sm:$0xff]
    %v2596 = vld [vmem:[#allocation5 + $0x1b8] sm:$0xff]
    %v2597 = vld [vmem:[#allocation5 + $0x1c0] sm:$0xff]
    %v2598 = vld [vmem:[#allocation5 + $0x1c8] sm:$0xff]
    %v2599 = vld [vmem:[#allocation5 + $0x1d0] sm:$0xff]
    %v2600 = vld [vmem:[#allocation5 + $0x1d8] sm:$0xff]
    %v2601 = vld [vmem:[#allocation5 + $0x1e0] sm:$0xff]
    %v2602 = vld [vmem:[#allocation5 + $0x1e8] sm:$0xff]
    %v2603 = vld [vmem:[#allocation5 + $0x1f0] sm:$0xff]
    %v2604 = vld [vmem:[#allocation5 + $0x1f8] sm:$0xff]
    %v2605 = vld [vmem:[#allocation5 + $0x200] sm:$0xff]
    %v2606 = vld [vmem:[#allocation5 + $0x208] sm:$0xff]
    %v2607 = vld [vmem:[#allocation5 + $0x210] sm:$0xff]
    %v2608 = vld [vmem:[#allocation5 + $0x218] sm:$0xff]
    %v2609 = vld [vmem:[#allocation5 + $0x220] sm:$0xff]
    %v2610 = vld [vmem:[#allocation5 + $0x228] sm:$0xff]
    %v2611 = vld [vmem:[#allocation5 + $0x230] sm:$0xff]
    %v2612 = vld [vmem:[#allocation5 + $0x238] sm:$0xff]
    %v2613 = vld [vmem:[#allocation5 + $0x240] sm:$0xff]
    %v2614 = vld [vmem:[#allocation5 + $0x248] sm:$0xff]
    %v2615 = vld [vmem:[#allocation5 + $0x250] sm:$0xff]
    %v2616 = vld [vmem:[#allocation5 + $0x258] sm:$0xff]
    %v2617 = vld [vmem:[#allocation5 + $0x260] sm:$0xff]
    %v2618 = vld [vmem:[#allocation5 + $0x268] sm:$0xff]
    %v2619 = vld [vmem:[#allocation5 + $0x270] sm:$0xff]
    %v2620 = vld [vmem:[#allocation5 + $0x278] sm:$0xff]
    %v2621 = vld [vmem:[#allocation5 + $0x280] sm:$0xff]
    %v2622 = vld [vmem:[#allocation5 + $0x288] sm:$0xff]
    %v2623 = vld [vmem:[#allocation5 + $0x290] sm:$0xff]
    %v2624 = vld [vmem:[#allocation5 + $0x298] sm:$0xff]
    %v2625 = vld [vmem:[#allocation5 + $0x2a0] sm:$0xff]
    %v2626 = vld [vmem:[#allocation5 + $0x2a8] sm:$0xff]
    %v2627 = vld [vmem:[#allocation5 + $0x2b0] sm:$0xff]
    %v2628 = vld [vmem:[#allocation5 + $0x2b8] sm:$0xff]
    %v2629 = vld [vmem:[#allocation5 + $0x2c0] sm:$0xff]
    %v2630 = vld [vmem:[#allocation5 + $0x2c8] sm:$0xff]
    %v2631 = vld [vmem:[#allocation5 + $0x2d0] sm:$0xff]
    %v2632 = vld [vmem:[#allocation5 + $0x2d8] sm:$0xff]
    %v2633 = vld [vmem:[#allocation5 + $0x2e0] sm:$0xff]
    %v2634 = vld [vmem:[#allocation5 + $0x2e8] sm:$0xff]
    %v2635 = vld [vmem:[#allocation5 + $0x2f0] sm:$0xff]
    %v2636 = vld [vmem:[#allocation5 + $0x2f8] sm:$0xff]
    %v2637 = vld [vmem:[#allocation5 + $0x300] sm:$0xff]
    %v2638 = vld [vmem:[#allocation5 + $0x308] sm:$0xff]
    %v2639 = vld [vmem:[#allocation5 + $0x310] sm:$0xff]
    %v2640 = vld [vmem:[#allocation5 + $0x318] sm:$0xff]
    %v2641 = vld [vmem:[#allocation5 + $0x320] sm:$0xff]
    %v2642 = vld [vmem:[#allocation5 + $0x328] sm:$0xff]
    %v2643 = vld [vmem:[#allocation5 + $0x330] sm:$0xff]
    %v2644 = vld [vmem:[#allocation5 + $0x338] sm:$0xff]
    %v2645 = vld [vmem:[#allocation5 + $0x340] sm:$0xff]
    %v2646 = vld [vmem:[#allocation5 + $0x348] sm:$0xff]
    %v2647 = vld [vmem:[#allocation5 + $0x350] sm:$0xff]
    %v2648 = vld [vmem:[#allocation5 + $0x358] sm:$0xff]
    %v2649 = vld [vmem:[#allocation5 + $0x360] sm:$0xff]
    %v2650 = vld [vmem:[#allocation5 + $0x368] sm:$0xff]
    %v2651 = vld [vmem:[#allocation5 + $0x370] sm:$0xff]
    %v2652 = vld [vmem:[#allocation5 + $0x378] sm:$0xff]
    %v2653 = vld [vmem:[#allocation5 + $0x380] sm:$0xff]
    %v2654 = vld [vmem:[#allocation5 + $0x388] sm:$0xff]
    %v2655 = vld [vmem:[#allocation5 + $0x390] sm:$0xff]
    %v2656 = vld [vmem:[#allocation5 + $0x398] sm:$0xff]
    %v2657 = vld [vmem:[#allocation5 + $0x3a0] sm:$0xff]
    %v2658 = vld [vmem:[#allocation5 + $0x3a8] sm:$0xff]
    %v2659 = vld [vmem:[#allocation5 + $0x3b0] sm:$0xff]
    %v2660 = vld [vmem:[#allocation5 + $0x3b8] sm:$0xff]
    %v2661 = vld [vmem:[#allocation5 + $0x3c0] sm:$0xff]
    %v2662 = vld [vmem:[#allocation5 + $0x3c8] sm:$0xff]
    %v2663 = vld [vmem:[#allocation5 + $0x3d0] sm:$0xff]
    %v2664 = vld [vmem:[#allocation5 + $0x3d8] sm:$0xff]
    %v2665 = vld [vmem:[#allocation5 + $0x3e0] sm:$0xff]
    %v2666 = vld [vmem:[#allocation5 + $0x3e8] sm:$0xff]
    %v2667 = vld [vmem:[#allocation5 + $0x3f0] sm:$0xff]
    %v2668 = vld [vmem:[#allocation5 + $0x3f8] sm:$0xff]
    %2669 = vmatprep.subr.mxu0 %v2602
    %2670 = vmatpush1.msra.mxu0 %v2601
    %2671 = vmatprep.subr.mxu0 %v2598
    %2672 = vmatpush1.msra.mxu0 %v2597
    %2673 = vmatprep.subr.mxu0 %v2594
    %2674 = vmatpush1.msra.mxu0 %v2593
    %2675 = vmatprep.subr.mxu0 %v2590
    %2676 = vmatpush1.msra.mxu0 %v2589
    %2677 = vmatprep.subr.mxu0 %v2586
    %2678 = vmatpush1.msra.mxu0 %v2585
    %2679 = vmatprep.subr.mxu0 %v2582
    %2680 = vmatpush1.msra.mxu0 %v2581
    %2681 = vmatprep.subr.mxu0 %v2578
    %2682 = vmatpush1.msra.mxu0 %v2577
    %2683 = vmatprep.subr.mxu0 %v2574
    %2684 = vmatpush1.msra.mxu0 %v2573
    %2685 = vmatprep.subr.mxu0 %v2570
    %2686 = vmatpush1.msra.mxu0 %v2569
    %2687 = vmatprep.subr.mxu0 %v2566
    %2688 = vmatpush1.msra.mxu0 %v2565
    %2689 = vmatprep.subr.mxu0 %v2562
    %2690 = vmatpush1.msra.mxu0 %v2561
    %2691 = vmatprep.subr.mxu0 %v2558
    %2692 = vmatpush1.msra.mxu0 %v2557
    %2693 = vmatprep.subr.mxu0 %v2554
    %2694 = vmatpush1.msra.mxu0 %v2553
    %2695 = vmatprep.subr.mxu0 %v2550
    %2696 = vmatpush1.msra.mxu0 %v2549
    %2697 = vmatprep.subr.mxu0 %v2546
    %2698 = vmatpush1.msra.mxu0 %v2545
    %2699 = vmatprep.subr.mxu0 %v2542
    %2700 = vmatpush1.msra.mxu0 %v2541
    %2701 = vmatprep.subr.mxu0 %v2666
    %2702 = vmatpush2.msra.mxu0 %v2665
    %2703 = vmatprep.subr.mxu0 %v2662
    %2704 = vmatpush2.msra.mxu0 %v2661
    %2705 = vmatprep.subr.mxu0 %v2658
    %2706 = vmatpush2.msra.mxu0 %v2657
    %2707 = vmatprep.subr.mxu0 %v2654
    %2708 = vmatpush2.msra.mxu0 %v2653
    %2709 = vmatprep.subr.mxu0 %v2650
    %2710 = vmatpush2.msra.mxu0 %v2649
    %2711 = vmatprep.subr.mxu0 %v2646
    %2712 = vmatpush2.msra.mxu0 %v2645
    %2713 = vmatprep.subr.mxu0 %v2642
    %2714 = vmatpush2.msra.mxu0 %v2641
    %2715 = vmatprep.subr.mxu0 %v2638
    %2716 = vmatpush2.msra.mxu0 %v2637
    %2717 = vmatprep.subr.mxu0 %v2634
    %2718 = vmatpush2.msra.mxu0 %v2633
    %2719 = vmatprep.subr.mxu0 %v2630
    %2720 = vmatpush2.msra.mxu0 %v2629
    %2721 = vmatprep.subr.mxu0 %v2626
    %2722 = vmatpush2.msra.mxu0 %v2625
    %2723 = vmatprep.subr.mxu0 %v2622
    %2724 = vmatpush2.msra.mxu0 %v2621
    %2725 = vmatprep.subr.mxu0 %v2618
    %2726 = vmatpush2.msra.mxu0 %v2617
    %2727 = vmatprep.subr.mxu0 %v2614
    %2728 = vmatpush2.msra.mxu0 %v2613
    %2729 = vmatprep.subr.mxu0 %v2610
    %2730 = vmatpush2.msra.mxu0 %v2609
    %2731 = vmatprep.subr.mxu0 %v2606
    %2732 = vmatpush2.msra.mxu0 %v2605
    %2733 = vmatprep.mubr.f32.mxu0 %v2521
    %2734 = vmatmul.mubr.f32.gmra.mxu0 %v2540
    %v2735 = vpop.f32.mrf.mxu0
    %v2736 = vadd.f32 0.0, %v2735
    %v2737 = vpop.f32.mrf.mxu0
    %v2738 = vadd.f32 0.0, %v2737
    %2739 = vdwg.mxu0
    %2740 = vmatprep.subr.mxu0 %v2604
    %2741 = vmatpush1.msra.mxu0 %v2603
    %2742 = vmatprep.subr.mxu0 %v2600
    %2743 = vmatpush1.msra.mxu0 %v2599
    %2744 = vmatprep.subr.mxu0 %v2596
    %2745 = vmatpush1.msra.mxu0 %v2595
    %2746 = vmatprep.subr.mxu0 %v2592
    %2747 = vmatpush1.msra.mxu0 %v2591
    %2748 = vmatprep.subr.mxu0 %v2588
    %2749 = vmatpush1.msra.mxu0 %v2587
    %2750 = vmatprep.subr.mxu0 %v2584
    %2751 = vmatpush1.msra.mxu0 %v2583
    %2752 = vmatprep.subr.mxu0 %v2580
    %2753 = vmatpush1.msra.mxu0 %v2579
    %2754 = vmatprep.subr.mxu0 %v2576
    %2755 = vmatpush1.msra.mxu0 %v2575
    %2756 = vmatprep.subr.mxu0 %v2572
    %2757 = vmatpush1.msra.mxu0 %v2571
    %2758 = vmatprep.subr.mxu0 %v2568
    %2759 = vmatpush1.msra.mxu0 %v2567
    %2760 = vmatprep.subr.mxu0 %v2564
    %2761 = vmatpush1.msra.mxu0 %v2563
    %2762 = vmatprep.subr.mxu0 %v2560
    %2763 = vmatpush1.msra.mxu0 %v2559
    %2764 = vmatprep.subr.mxu0 %v2556
    %2765 = vmatpush1.msra.mxu0 %v2555
    %2766 = vmatprep.subr.mxu0 %v2552
    %2767 = vmatpush1.msra.mxu0 %v2551
    %2768 = vmatprep.subr.mxu0 %v2548
    %2769 = vmatpush1.msra.mxu0 %v2547
    %2770 = vmatprep.subr.mxu0 %v2544
    %2771 = vmatpush1.msra.mxu0 %v2543
    %2772 = vmatprep.subr.mxu0 %v2668
    %2773 = vmatpush2.msra.mxu0 %v2667
    %2774 = vmatprep.subr.mxu0 %v2664
    %2775 = vmatpush2.msra.mxu0 %v2663
    %2776 = vmatprep.subr.mxu0 %v2660
    %2777 = vmatpush2.msra.mxu0 %v2659
    %2778 = vmatprep.subr.mxu0 %v2656
    %2779 = vmatpush2.msra.mxu0 %v2655
    %2780 = vmatprep.subr.mxu0 %v2652
    %2781 = vmatpush2.msra.mxu0 %v2651
    %2782 = vmatprep.subr.mxu0 %v2648
    %2783 = vmatpush2.msra.mxu0 %v2647
    %2784 = vmatprep.subr.mxu0 %v2644
    %2785 = vmatpush2.msra.mxu0 %v2643
    %2786 = vmatprep.subr.mxu0 %v2640
    %2787 = vmatpush2.msra.mxu0 %v2639
    %2788 = vmatprep.subr.mxu0 %v2636
    %2789 = vmatpush2.msra.mxu0 %v2635
    %2790 = vmatprep.subr.mxu0 %v2632
    %2791 = vmatpush2.msra.mxu0 %v2631
    %2792 = vmatprep.subr.mxu0 %v2628
    %2793 = vmatpush2.msra.mxu0 %v2627
    %2794 = vmatprep.subr.mxu0 %v2624
    %2795 = vmatpush2.msra.mxu0 %v2623
    %2796 = vmatprep.subr.mxu0 %v2620
    %2797 = vmatpush2.msra.mxu0 %v2619
    %2798 = vmatprep.subr.mxu0 %v2616
    %2799 = vmatpush2.msra.mxu0 %v2615
    %2800 = vmatprep.subr.mxu0 %v2612
    %2801 = vmatpush2.msra.mxu0 %v2611
    %2802 = vmatprep.subr.mxu0 %v2608
    %2803 = vmatpush2.msra.mxu0 %v2607
    %2804 = vmatprep.mubr.f32.mxu0 %v2521
    %2805 = vmatmul.mubr.f32.gmra.mxu0 %v2540
    %v2806 = vpop.f32.mrf.mxu0
    %v2807 = vadd.f32 0.0, %v2806
    %v2808 = vpop.f32.mrf.mxu0
    %v2809 = vadd.f32 0.0, %v2808
    %2810 = vdwg.mxu0
    %v2811 = vxor.u32 %v2736, 2147483648
    %v2812 = vmul.f32 %v2811, 1.442695
    %v2813 = vpow.pop %v2812
    %v2814 = vadd.f32 %v2813, 1.0
    %v2815 = vrcp.pop %v2814
    %v2816 = vmul.f32 1.0, %v2815
    %v2817 = vxor.u32 %v2738, 2147483648
    %v2818 = vmul.f32 %v2817, 1.442695
    %v2819 = vpow.pop %v2818
    %v2820 = vadd.f32 %v2819, 1.0
    %v2821 = vrcp.pop %v2820
    %v2822 = vmul.f32 1.0, %v2821
    %v2823 = vtanh.pop %v2807
    %v2824 = vxor.u32 %v2809, 2147483648
    %v2825 = vmul.f32 %v2824, 1.442695
    %v2826 = vpow.pop %v2825
    %v2827 = vadd.f32 %v2826, 1.0
    %v2828 = vrcp.pop %v2827
    %v2829 = vmul.f32 1.0, %v2828
    %v2830 = vmul.f32 %v2822, %v2519
    %v2831 = vmul.f32 %v2816, %v2823
    %v2832 = vadd.f32 %v2830, %v2831
    %v2833 = vtanh.pop %v2832
    %v2834 = vmul.f32 %v2829, %v2833
    %2835 = vst [vmem:[#allocation3 + $0x9] sm:$0x1] %v2834
    %v2836 = vmul.f32 %v2834, %v42
    %v2837 = vsel %vm2210, %v2836, 0.0
    %2838 = vadd.xlane.f32.xlu0 %v2837
    %v2839 = vpop.xlane.xlu0 %2838
    %v2840 = vadd.f32 %v2839, %v43
    %2842 = vset.pattern.permute.xlu0 0
    %2843 = vperm.xlu0 %2842, %v2840
    %v2844 = vpop.permute.xlu0 %2843
    %v2846 = vmul.f32 %v2844, %v40
    %v2847 = vadd.f32 %v2846, %v41
    %v2848 = vxor.u32 %v2847, 2147483648
    %v2849 = vmul.f32 %v2848, 1.442695
    %v2850 = vpow.pop %v2849
    %v2851 = vadd.f32 %v2850, 1.0
    %v2852 = vrcp.pop %v2851
    %v2853 = vmul.f32 1.0, %v2852
    %v2854 = vld [vmem:[#allocation5] sm:$0xff]
    %v2855 = vld [vmem:[#allocation5 + $0x8] sm:$0xff]
    %v2856 = vld [vmem:[#allocation5 + $0x10] sm:$0xff]
    %v2857 = vld [vmem:[#allocation5 + $0x18] sm:$0xff]
    %v2858 = vld [vmem:[#allocation5 + $0x20] sm:$0xff]
    %v2859 = vld [vmem:[#allocation5 + $0x28] sm:$0xff]
    %v2860 = vld [vmem:[#allocation5 + $0x30] sm:$0xff]
    %v2861 = vld [vmem:[#allocation5 + $0x38] sm:$0xff]
    %v2862 = vld [vmem:[#allocation5 + $0x40] sm:$0xff]
    %v2863 = vld [vmem:[#allocation5 + $0x48] sm:$0xff]
    %v2864 = vld [vmem:[#allocation5 + $0x50] sm:$0xff]
    %v2865 = vld [vmem:[#allocation5 + $0x58] sm:$0xff]
    %v2866 = vld [vmem:[#allocation5 + $0x60] sm:$0xff]
    %v2867 = vld [vmem:[#allocation5 + $0x68] sm:$0xff]
    %v2868 = vld [vmem:[#allocation5 + $0x70] sm:$0xff]
    %v2869 = vld [vmem:[#allocation5 + $0x78] sm:$0xff]
    %v2870 = vld [vmem:[#allocation5 + $0x80] sm:$0xff]
    %v2871 = vld [vmem:[#allocation5 + $0x88] sm:$0xff]
    %v2872 = vld [vmem:[#allocation5 + $0x90] sm:$0xff]
    %v2873 = vld [vmem:[#allocation5 + $0x98] sm:$0xff]
    %v2874 = vld [vmem:[#allocation5 + $0xa0] sm:$0xff]
    %v2875 = vld [vmem:[#allocation5 + $0xa8] sm:$0xff]
    %v2876 = vld [vmem:[#allocation5 + $0xb0] sm:$0xff]
    %v2877 = vld [vmem:[#allocation5 + $0xb8] sm:$0xff]
    %v2878 = vld [vmem:[#allocation5 + $0xc0] sm:$0xff]
    %v2879 = vld [vmem:[#allocation5 + $0xc8] sm:$0xff]
    %v2880 = vld [vmem:[#allocation5 + $0xd0] sm:$0xff]
    %v2881 = vld [vmem:[#allocation5 + $0xd8] sm:$0xff]
    %v2882 = vld [vmem:[#allocation5 + $0xe0] sm:$0xff]
    %v2883 = vld [vmem:[#allocation5 + $0xe8] sm:$0xff]
    %v2884 = vld [vmem:[#allocation5 + $0xf0] sm:$0xff]
    %v2885 = vld [vmem:[#allocation5 + $0xf8] sm:$0xff]
    %v2886 = vld [vmem:[#allocation5 + $0x100] sm:$0xff]
    %v2887 = vld [vmem:[#allocation5 + $0x108] sm:$0xff]
    %v2888 = vld [vmem:[#allocation5 + $0x110] sm:$0xff]
    %v2889 = vld [vmem:[#allocation5 + $0x118] sm:$0xff]
    %v2890 = vld [vmem:[#allocation5 + $0x120] sm:$0xff]
    %v2891 = vld [vmem:[#allocation5 + $0x128] sm:$0xff]
    %v2892 = vld [vmem:[#allocation5 + $0x130] sm:$0xff]
    %v2893 = vld [vmem:[#allocation5 + $0x138] sm:$0xff]
    %v2894 = vld [vmem:[#allocation5 + $0x140] sm:$0xff]
    %v2895 = vld [vmem:[#allocation5 + $0x148] sm:$0xff]
    %v2896 = vld [vmem:[#allocation5 + $0x150] sm:$0xff]
    %v2897 = vld [vmem:[#allocation5 + $0x158] sm:$0xff]
    %v2898 = vld [vmem:[#allocation5 + $0x160] sm:$0xff]
    %v2899 = vld [vmem:[#allocation5 + $0x168] sm:$0xff]
    %v2900 = vld [vmem:[#allocation5 + $0x170] sm:$0xff]
    %v2901 = vld [vmem:[#allocation5 + $0x178] sm:$0xff]
    %v2902 = vld [vmem:[#allocation5 + $0x180] sm:$0xff]
    %v2903 = vld [vmem:[#allocation5 + $0x188] sm:$0xff]
    %v2904 = vld [vmem:[#allocation5 + $0x190] sm:$0xff]
    %v2905 = vld [vmem:[#allocation5 + $0x198] sm:$0xff]
    %v2906 = vld [vmem:[#allocation5 + $0x1a0] sm:$0xff]
    %v2907 = vld [vmem:[#allocation5 + $0x1a8] sm:$0xff]
    %v2908 = vld [vmem:[#allocation5 + $0x1b0] sm:$0xff]
    %v2909 = vld [vmem:[#allocation5 + $0x1b8] sm:$0xff]
    %v2910 = vld [vmem:[#allocation5 + $0x1c0] sm:$0xff]
    %v2911 = vld [vmem:[#allocation5 + $0x1c8] sm:$0xff]
    %v2912 = vld [vmem:[#allocation5 + $0x1d0] sm:$0xff]
    %v2913 = vld [vmem:[#allocation5 + $0x1d8] sm:$0xff]
    %v2914 = vld [vmem:[#allocation5 + $0x1e0] sm:$0xff]
    %v2915 = vld [vmem:[#allocation5 + $0x1e8] sm:$0xff]
    %v2916 = vld [vmem:[#allocation5 + $0x1f0] sm:$0xff]
    %v2917 = vld [vmem:[#allocation5 + $0x1f8] sm:$0xff]
    %v2918 = vld [vmem:[#allocation5 + $0x200] sm:$0xff]
    %v2919 = vld [vmem:[#allocation5 + $0x208] sm:$0xff]
    %v2920 = vld [vmem:[#allocation5 + $0x210] sm:$0xff]
    %v2921 = vld [vmem:[#allocation5 + $0x218] sm:$0xff]
    %v2922 = vld [vmem:[#allocation5 + $0x220] sm:$0xff]
    %v2923 = vld [vmem:[#allocation5 + $0x228] sm:$0xff]
    %v2924 = vld [vmem:[#allocation5 + $0x230] sm:$0xff]
    %v2925 = vld [vmem:[#allocation5 + $0x238] sm:$0xff]
    %v2926 = vld [vmem:[#allocation5 + $0x240] sm:$0xff]
    %v2927 = vld [vmem:[#allocation5 + $0x248] sm:$0xff]
    %v2928 = vld [vmem:[#allocation5 + $0x250] sm:$0xff]
    %v2929 = vld [vmem:[#allocation5 + $0x258] sm:$0xff]
    %v2930 = vld [vmem:[#allocation5 + $0x260] sm:$0xff]
    %v2931 = vld [vmem:[#allocation5 + $0x268] sm:$0xff]
    %v2932 = vld [vmem:[#allocation5 + $0x270] sm:$0xff]
    %v2933 = vld [vmem:[#allocation5 + $0x278] sm:$0xff]
    %v2934 = vld [vmem:[#allocation5 + $0x280] sm:$0xff]
    %v2935 = vld [vmem:[#allocation5 + $0x288] sm:$0xff]
    %v2936 = vld [vmem:[#allocation5 + $0x290] sm:$0xff]
    %v2937 = vld [vmem:[#allocation5 + $0x298] sm:$0xff]
    %v2938 = vld [vmem:[#allocation5 + $0x2a0] sm:$0xff]
    %v2939 = vld [vmem:[#allocation5 + $0x2a8] sm:$0xff]
    %v2940 = vld [vmem:[#allocation5 + $0x2b0] sm:$0xff]
    %v2941 = vld [vmem:[#allocation5 + $0x2b8] sm:$0xff]
    %v2942 = vld [vmem:[#allocation5 + $0x2c0] sm:$0xff]
    %v2943 = vld [vmem:[#allocation5 + $0x2c8] sm:$0xff]
    %v2944 = vld [vmem:[#allocation5 + $0x2d0] sm:$0xff]
    %v2945 = vld [vmem:[#allocation5 + $0x2d8] sm:$0xff]
    %v2946 = vld [vmem:[#allocation5 + $0x2e0] sm:$0xff]
    %v2947 = vld [vmem:[#allocation5 + $0x2e8] sm:$0xff]
    %v2948 = vld [vmem:[#allocation5 + $0x2f0] sm:$0xff]
    %v2949 = vld [vmem:[#allocation5 + $0x2f8] sm:$0xff]
    %v2950 = vld [vmem:[#allocation5 + $0x300] sm:$0xff]
    %v2951 = vld [vmem:[#allocation5 + $0x308] sm:$0xff]
    %v2952 = vld [vmem:[#allocation5 + $0x310] sm:$0xff]
    %v2953 = vld [vmem:[#allocation5 + $0x318] sm:$0xff]
    %v2954 = vld [vmem:[#allocation5 + $0x320] sm:$0xff]
    %v2955 = vld [vmem:[#allocation5 + $0x328] sm:$0xff]
    %v2956 = vld [vmem:[#allocation5 + $0x330] sm:$0xff]
    %v2957 = vld [vmem:[#allocation5 + $0x338] sm:$0xff]
    %v2958 = vld [vmem:[#allocation5 + $0x340] sm:$0xff]
    %v2959 = vld [vmem:[#allocation5 + $0x348] sm:$0xff]
    %v2960 = vld [vmem:[#allocation5 + $0x350] sm:$0xff]
    %v2961 = vld [vmem:[#allocation5 + $0x358] sm:$0xff]
    %v2962 = vld [vmem:[#allocation5 + $0x360] sm:$0xff]
    %v2963 = vld [vmem:[#allocation5 + $0x368] sm:$0xff]
    %v2964 = vld [vmem:[#allocation5 + $0x370] sm:$0xff]
    %v2965 = vld [vmem:[#allocation5 + $0x378] sm:$0xff]
    %v2966 = vld [vmem:[#allocation5 + $0x380] sm:$0xff]
    %v2967 = vld [vmem:[#allocation5 + $0x388] sm:$0xff]
    %v2968 = vld [vmem:[#allocation5 + $0x390] sm:$0xff]
    %v2969 = vld [vmem:[#allocation5 + $0x398] sm:$0xff]
    %v2970 = vld [vmem:[#allocation5 + $0x3a0] sm:$0xff]
    %v2971 = vld [vmem:[#allocation5 + $0x3a8] sm:$0xff]
    %v2972 = vld [vmem:[#allocation5 + $0x3b0] sm:$0xff]
    %v2973 = vld [vmem:[#allocation5 + $0x3b8] sm:$0xff]
    %v2974 = vld [vmem:[#allocation5 + $0x3c0] sm:$0xff]
    %v2975 = vld [vmem:[#allocation5 + $0x3c8] sm:$0xff]
    %v2976 = vld [vmem:[#allocation5 + $0x3d0] sm:$0xff]
    %v2977 = vld [vmem:[#allocation5 + $0x3d8] sm:$0xff]
    %v2978 = vld [vmem:[#allocation5 + $0x3e0] sm:$0xff]
    %v2979 = vld [vmem:[#allocation5 + $0x3e8] sm:$0xff]
    %v2980 = vld [vmem:[#allocation5 + $0x3f0] sm:$0xff]
    %v2981 = vld [vmem:[#allocation5 + $0x3f8] sm:$0xff]
    %2982 = vmatprep.subr.mxu0 %v2915
    %2983 = vmatpush1.msra.mxu0 %v2914
    %2984 = vmatprep.subr.mxu0 %v2911
    %2985 = vmatpush1.msra.mxu0 %v2910
    %2986 = vmatprep.subr.mxu0 %v2907
    %2987 = vmatpush1.msra.mxu0 %v2906
    %2988 = vmatprep.subr.mxu0 %v2903
    %2989 = vmatpush1.msra.mxu0 %v2902
    %2990 = vmatprep.subr.mxu0 %v2899
    %2991 = vmatpush1.msra.mxu0 %v2898
    %2992 = vmatprep.subr.mxu0 %v2895
    %2993 = vmatpush1.msra.mxu0 %v2894
    %2994 = vmatprep.subr.mxu0 %v2891
    %2995 = vmatpush1.msra.mxu0 %v2890
    %2996 = vmatprep.subr.mxu0 %v2887
    %2997 = vmatpush1.msra.mxu0 %v2886
    %2998 = vmatprep.subr.mxu0 %v2883
    %2999 = vmatpush1.msra.mxu0 %v2882
    %3000 = vmatprep.subr.mxu0 %v2879
    %3001 = vmatpush1.msra.mxu0 %v2878
    %3002 = vmatprep.subr.mxu0 %v2875
    %3003 = vmatpush1.msra.mxu0 %v2874
    %3004 = vmatprep.subr.mxu0 %v2871
    %3005 = vmatpush1.msra.mxu0 %v2870
    %3006 = vmatprep.subr.mxu0 %v2867
    %3007 = vmatpush1.msra.mxu0 %v2866
    %3008 = vmatprep.subr.mxu0 %v2863
    %3009 = vmatpush1.msra.mxu0 %v2862
    %3010 = vmatprep.subr.mxu0 %v2859
    %3011 = vmatpush1.msra.mxu0 %v2858
    %3012 = vmatprep.subr.mxu0 %v2855
    %3013 = vmatpush1.msra.mxu0 %v2854
    %3014 = vmatprep.subr.mxu0 %v2979
    %3015 = vmatpush2.msra.mxu0 %v2978
    %3016 = vmatprep.subr.mxu0 %v2975
    %3017 = vmatpush2.msra.mxu0 %v2974
    %3018 = vmatprep.subr.mxu0 %v2971
    %3019 = vmatpush2.msra.mxu0 %v2970
    %3020 = vmatprep.subr.mxu0 %v2967
    %3021 = vmatpush2.msra.mxu0 %v2966
    %3022 = vmatprep.subr.mxu0 %v2963
    %3023 = vmatpush2.msra.mxu0 %v2962
    %3024 = vmatprep.subr.mxu0 %v2959
    %3025 = vmatpush2.msra.mxu0 %v2958
    %3026 = vmatprep.subr.mxu0 %v2955
    %3027 = vmatpush2.msra.mxu0 %v2954
    %3028 = vmatprep.subr.mxu0 %v2951
    %3029 = vmatpush2.msra.mxu0 %v2950
    %3030 = vmatprep.subr.mxu0 %v2947
    %3031 = vmatpush2.msra.mxu0 %v2946
    %3032 = vmatprep.subr.mxu0 %v2943
    %3033 = vmatpush2.msra.mxu0 %v2942
    %3034 = vmatprep.subr.mxu0 %v2939
    %3035 = vmatpush2.msra.mxu0 %v2938
    %3036 = vmatprep.subr.mxu0 %v2935
    %3037 = vmatpush2.msra.mxu0 %v2934
    %3038 = vmatprep.subr.mxu0 %v2931
    %3039 = vmatpush2.msra.mxu0 %v2930
    %3040 = vmatprep.subr.mxu0 %v2927
    %3041 = vmatpush2.msra.mxu0 %v2926
    %3042 = vmatprep.subr.mxu0 %v2923
    %3043 = vmatpush2.msra.mxu0 %v2922
    %3044 = vmatprep.subr.mxu0 %v2919
    %3045 = vmatpush2.msra.mxu0 %v2918
    %3046 = vmatprep.mubr.f32.mxu0 %v2834
    %3047 = vmatmul.mubr.f32.gmra.mxu0 %v2853
    %v3048 = vpop.f32.mrf.mxu0
    %v3049 = vadd.f32 0.0, %v3048
    %v3050 = vpop.f32.mrf.mxu0
    %v3051 = vadd.f32 0.0, %v3050
    %3052 = vdwg.mxu0
    %3053 = vmatprep.subr.mxu0 %v2917
    %3054 = vmatpush1.msra.mxu0 %v2916
    %3055 = vmatprep.subr.mxu0 %v2913
    %3056 = vmatpush1.msra.mxu0 %v2912
    %3057 = vmatprep.subr.mxu0 %v2909
    %3058 = vmatpush1.msra.mxu0 %v2908
    %3059 = vmatprep.subr.mxu0 %v2905
    %3060 = vmatpush1.msra.mxu0 %v2904
    %3061 = vmatprep.subr.mxu0 %v2901
    %3062 = vmatpush1.msra.mxu0 %v2900
    %3063 = vmatprep.subr.mxu0 %v2897
    %3064 = vmatpush1.msra.mxu0 %v2896
    %3065 = vmatprep.subr.mxu0 %v2893
    %3066 = vmatpush1.msra.mxu0 %v2892
    %3067 = vmatprep.subr.mxu0 %v2889
    %3068 = vmatpush1.msra.mxu0 %v2888
    %3069 = vmatprep.subr.mxu0 %v2885
    %3070 = vmatpush1.msra.mxu0 %v2884
    %3071 = vmatprep.subr.mxu0 %v2881
    %3072 = vmatpush1.msra.mxu0 %v2880
    %3073 = vmatprep.subr.mxu0 %v2877
    %3074 = vmatpush1.msra.mxu0 %v2876
    %3075 = vmatprep.subr.mxu0 %v2873
    %3076 = vmatpush1.msra.mxu0 %v2872
    %3077 = vmatprep.subr.mxu0 %v2869
    %3078 = vmatpush1.msra.mxu0 %v2868
    %3079 = vmatprep.subr.mxu0 %v2865
    %3080 = vmatpush1.msra.mxu0 %v2864
    %3081 = vmatprep.subr.mxu0 %v2861
    %3082 = vmatpush1.msra.mxu0 %v2860
    %3083 = vmatprep.subr.mxu0 %v2857
    %3084 = vmatpush1.msra.mxu0 %v2856
    %3085 = vmatprep.subr.mxu0 %v2981
    %3086 = vmatpush2.msra.mxu0 %v2980
    %3087 = vmatprep.subr.mxu0 %v2977
    %3088 = vmatpush2.msra.mxu0 %v2976
    %3089 = vmatprep.subr.mxu0 %v2973
    %3090 = vmatpush2.msra.mxu0 %v2972
    %3091 = vmatprep.subr.mxu0 %v2969
    %3092 = vmatpush2.msra.mxu0 %v2968
    %3093 = vmatprep.subr.mxu0 %v2965
    %3094 = vmatpush2.msra.mxu0 %v2964
    %3095 = vmatprep.subr.mxu0 %v2961
    %3096 = vmatpush2.msra.mxu0 %v2960
    %3097 = vmatprep.subr.mxu0 %v2957
    %3098 = vmatpush2.msra.mxu0 %v2956
    %3099 = vmatprep.subr.mxu0 %v2953
    %3100 = vmatpush2.msra.mxu0 %v2952
    %3101 = vmatprep.subr.mxu0 %v2949
    %3102 = vmatpush2.msra.mxu0 %v2948
    %3103 = vmatprep.subr.mxu0 %v2945
    %3104 = vmatpush2.msra.mxu0 %v2944
    %3105 = vmatprep.subr.mxu0 %v2941
    %3106 = vmatpush2.msra.mxu0 %v2940
    %3107 = vmatprep.subr.mxu0 %v2937
    %3108 = vmatpush2.msra.mxu0 %v2936
    %3109 = vmatprep.subr.mxu0 %v2933
    %3110 = vmatpush2.msra.mxu0 %v2932
    %3111 = vmatprep.subr.mxu0 %v2929
    %3112 = vmatpush2.msra.mxu0 %v2928
    %3113 = vmatprep.subr.mxu0 %v2925
    %3114 = vmatpush2.msra.mxu0 %v2924
    %3115 = vmatprep.subr.mxu0 %v2921
    %3116 = vmatpush2.msra.mxu0 %v2920
    %3117 = vmatprep.mubr.f32.mxu0 %v2834
    %3118 = vmatmul.mubr.f32.gmra.mxu0 %v2853
    %v3119 = vpop.f32.mrf.mxu0
    %v3120 = vadd.f32 0.0, %v3119
    %v3121 = vpop.f32.mrf.mxu0
    %v3122 = vadd.f32 0.0, %v3121
    %3123 = vdwg.mxu0
    %v3124 = vxor.u32 %v3049, 2147483648
    %v3125 = vmul.f32 %v3124, 1.442695
    %v3126 = vpow.pop %v3125
    %v3127 = vadd.f32 %v3126, 1.0
    %v3128 = vrcp.pop %v3127
    %v3129 = vmul.f32 1.0, %v3128
    %v3130 = vxor.u32 %v3051, 2147483648
    %v3131 = vmul.f32 %v3130, 1.442695
    %v3132 = vpow.pop %v3131
    %v3133 = vadd.f32 %v3132, 1.0
    %v3134 = vrcp.pop %v3133
    %v3135 = vmul.f32 1.0, %v3134
    %v3136 = vtanh.pop %v3120
    %v3137 = vxor.u32 %v3122, 2147483648
    %v3138 = vmul.f32 %v3137, 1.442695
    %v3139 = vpow.pop %v3138
    %v3140 = vadd.f32 %v3139, 1.0
    %v3141 = vrcp.pop %v3140
    %v3142 = vmul.f32 1.0, %v3141
    %v3143 = vmul.f32 %v3135, %v2832
    %v3144 = vmul.f32 %v3129, %v3136
    %v3145 = vadd.f32 %v3143, %v3144
    %v3146 = vtanh.pop %v3145
    %v3147 = vmul.f32 %v3142, %v3146
    %3148 = vst [vmem:[#allocation3 + $0xa] sm:$0x1] %v3147
    %v3149 = vmul.f32 %v3147, %v42
    %v3150 = vsel %vm2210, %v3149, 0.0
    %3151 = vadd.xlane.f32.xlu0 %v3150
    %v3152 = vpop.xlane.xlu0 %3151
    %v3153 = vadd.f32 %v3152, %v43
    %3155 = vset.pattern.permute.xlu0 0
    %3156 = vperm.xlu0 %3155, %v3153
    %v3157 = vpop.permute.xlu0 %3156
    %v3159 = vmul.f32 %v3157, %v40
    %v3160 = vadd.f32 %v3159, %v41
    %v3161 = vxor.u32 %v3160, 2147483648
    %v3162 = vmul.f32 %v3161, 1.442695
    %v3163 = vpow.pop %v3162
    %v3164 = vadd.f32 %v3163, 1.0
    %v3165 = vrcp.pop %v3164
    %v3166 = vmul.f32 1.0, %v3165
    %v3167 = vld [vmem:[#allocation5] sm:$0xff]
    %v3168 = vld [vmem:[#allocation5 + $0x8] sm:$0xff]
    %v3169 = vld [vmem:[#allocation5 + $0x10] sm:$0xff]
    %v3170 = vld [vmem:[#allocation5 + $0x18] sm:$0xff]
    %v3171 = vld [vmem:[#allocation5 + $0x20] sm:$0xff]
    %v3172 = vld [vmem:[#allocation5 + $0x28] sm:$0xff]
    %v3173 = vld [vmem:[#allocation5 + $0x30] sm:$0xff]
    %v3174 = vld [vmem:[#allocation5 + $0x38] sm:$0xff]
    %v3175 = vld [vmem:[#allocation5 + $0x40] sm:$0xff]
    %v3176 = vld [vmem:[#allocation5 + $0x48] sm:$0xff]
    %v3177 = vld [vmem:[#allocation5 + $0x50] sm:$0xff]
    %v3178 = vld [vmem:[#allocation5 + $0x58] sm:$0xff]
    %v3179 = vld [vmem:[#allocation5 + $0x60] sm:$0xff]
    %v3180 = vld [vmem:[#allocation5 + $0x68] sm:$0xff]
    %v3181 = vld [vmem:[#allocation5 + $0x70] sm:$0xff]
    %v3182 = vld [vmem:[#allocation5 + $0x78] sm:$0xff]
    %v3183 = vld [vmem:[#allocation5 + $0x80] sm:$0xff]
    %v3184 = vld [vmem:[#allocation5 + $0x88] sm:$0xff]
    %v3185 = vld [vmem:[#allocation5 + $0x90] sm:$0xff]
    %v3186 = vld [vmem:[#allocation5 + $0x98] sm:$0xff]
    %v3187 = vld [vmem:[#allocation5 + $0xa0] sm:$0xff]
    %v3188 = vld [vmem:[#allocation5 + $0xa8] sm:$0xff]
    %v3189 = vld [vmem:[#allocation5 + $0xb0] sm:$0xff]
    %v3190 = vld [vmem:[#allocation5 + $0xb8] sm:$0xff]
    %v3191 = vld [vmem:[#allocation5 + $0xc0] sm:$0xff]
    %v3192 = vld [vmem:[#allocation5 + $0xc8] sm:$0xff]
    %v3193 = vld [vmem:[#allocation5 + $0xd0] sm:$0xff]
    %v3194 = vld [vmem:[#allocation5 + $0xd8] sm:$0xff]
    %v3195 = vld [vmem:[#allocation5 + $0xe0] sm:$0xff]
    %v3196 = vld [vmem:[#allocation5 + $0xe8] sm:$0xff]
    %v3197 = vld [vmem:[#allocation5 + $0xf0] sm:$0xff]
    %v3198 = vld [vmem:[#allocation5 + $0xf8] sm:$0xff]
    %v3199 = vld [vmem:[#allocation5 + $0x100] sm:$0xff]
    %v3200 = vld [vmem:[#allocation5 + $0x108] sm:$0xff]
    %v3201 = vld [vmem:[#allocation5 + $0x110] sm:$0xff]
    %v3202 = vld [vmem:[#allocation5 + $0x118] sm:$0xff]
    %v3203 = vld [vmem:[#allocation5 + $0x120] sm:$0xff]
    %v3204 = vld [vmem:[#allocation5 + $0x128] sm:$0xff]
    %v3205 = vld [vmem:[#allocation5 + $0x130] sm:$0xff]
    %v3206 = vld [vmem:[#allocation5 + $0x138] sm:$0xff]
    %v3207 = vld [vmem:[#allocation5 + $0x140] sm:$0xff]
    %v3208 = vld [vmem:[#allocation5 + $0x148] sm:$0xff]
    %v3209 = vld [vmem:[#allocation5 + $0x150] sm:$0xff]
    %v3210 = vld [vmem:[#allocation5 + $0x158] sm:$0xff]
    %v3211 = vld [vmem:[#allocation5 + $0x160] sm:$0xff]
    %v3212 = vld [vmem:[#allocation5 + $0x168] sm:$0xff]
    %v3213 = vld [vmem:[#allocation5 + $0x170] sm:$0xff]
    %v3214 = vld [vmem:[#allocation5 + $0x178] sm:$0xff]
    %v3215 = vld [vmem:[#allocation5 + $0x180] sm:$0xff]
    %v3216 = vld [vmem:[#allocation5 + $0x188] sm:$0xff]
    %v3217 = vld [vmem:[#allocation5 + $0x190] sm:$0xff]
    %v3218 = vld [vmem:[#allocation5 + $0x198] sm:$0xff]
    %v3219 = vld [vmem:[#allocation5 + $0x1a0] sm:$0xff]
    %v3220 = vld [vmem:[#allocation5 + $0x1a8] sm:$0xff]
    %v3221 = vld [vmem:[#allocation5 + $0x1b0] sm:$0xff]
    %v3222 = vld [vmem:[#allocation5 + $0x1b8] sm:$0xff]
    %v3223 = vld [vmem:[#allocation5 + $0x1c0] sm:$0xff]
    %v3224 = vld [vmem:[#allocation5 + $0x1c8] sm:$0xff]
    %v3225 = vld [vmem:[#allocation5 + $0x1d0] sm:$0xff]
    %v3226 = vld [vmem:[#allocation5 + $0x1d8] sm:$0xff]
    %v3227 = vld [vmem:[#allocation5 + $0x1e0] sm:$0xff]
    %v3228 = vld [vmem:[#allocation5 + $0x1e8] sm:$0xff]
    %v3229 = vld [vmem:[#allocation5 + $0x1f0] sm:$0xff]
    %v3230 = vld [vmem:[#allocation5 + $0x1f8] sm:$0xff]
    %v3231 = vld [vmem:[#allocation5 + $0x200] sm:$0xff]
    %v3232 = vld [vmem:[#allocation5 + $0x208] sm:$0xff]
    %v3233 = vld [vmem:[#allocation5 + $0x210] sm:$0xff]
    %v3234 = vld [vmem:[#allocation5 + $0x218] sm:$0xff]
    %v3235 = vld [vmem:[#allocation5 + $0x220] sm:$0xff]
    %v3236 = vld [vmem:[#allocation5 + $0x228] sm:$0xff]
    %v3237 = vld [vmem:[#allocation5 + $0x230] sm:$0xff]
    %v3238 = vld [vmem:[#allocation5 + $0x238] sm:$0xff]
    %v3239 = vld [vmem:[#allocation5 + $0x240] sm:$0xff]
    %v3240 = vld [vmem:[#allocation5 + $0x248] sm:$0xff]
    %v3241 = vld [vmem:[#allocation5 + $0x250] sm:$0xff]
    %v3242 = vld [vmem:[#allocation5 + $0x258] sm:$0xff]
    %v3243 = vld [vmem:[#allocation5 + $0x260] sm:$0xff]
    %v3244 = vld [vmem:[#allocation5 + $0x268] sm:$0xff]
    %v3245 = vld [vmem:[#allocation5 + $0x270] sm:$0xff]
    %v3246 = vld [vmem:[#allocation5 + $0x278] sm:$0xff]
    %v3247 = vld [vmem:[#allocation5 + $0x280] sm:$0xff]
    %v3248 = vld [vmem:[#allocation5 + $0x288] sm:$0xff]
    %v3249 = vld [vmem:[#allocation5 + $0x290] sm:$0xff]
    %v3250 = vld [vmem:[#allocation5 + $0x298] sm:$0xff]
    %v3251 = vld [vmem:[#allocation5 + $0x2a0] sm:$0xff]
    %v3252 = vld [vmem:[#allocation5 + $0x2a8] sm:$0xff]
    %v3253 = vld [vmem:[#allocation5 + $0x2b0] sm:$0xff]
    %v3254 = vld [vmem:[#allocation5 + $0x2b8] sm:$0xff]
    %v3255 = vld [vmem:[#allocation5 + $0x2c0] sm:$0xff]
    %v3256 = vld [vmem:[#allocation5 + $0x2c8] sm:$0xff]
    %v3257 = vld [vmem:[#allocation5 + $0x2d0] sm:$0xff]
    %v3258 = vld [vmem:[#allocation5 + $0x2d8] sm:$0xff]
    %v3259 = vld [vmem:[#allocation5 + $0x2e0] sm:$0xff]
    %v3260 = vld [vmem:[#allocation5 + $0x2e8] sm:$0xff]
    %v3261 = vld [vmem:[#allocation5 + $0x2f0] sm:$0xff]
    %v3262 = vld [vmem:[#allocation5 + $0x2f8] sm:$0xff]
    %v3263 = vld [vmem:[#allocation5 + $0x300] sm:$0xff]
    %v3264 = vld [vmem:[#allocation5 + $0x308] sm:$0xff]
    %v3265 = vld [vmem:[#allocation5 + $0x310] sm:$0xff]
    %v3266 = vld [vmem:[#allocation5 + $0x318] sm:$0xff]
    %v3267 = vld [vmem:[#allocation5 + $0x320] sm:$0xff]
    %v3268 = vld [vmem:[#allocation5 + $0x328] sm:$0xff]
    %v3269 = vld [vmem:[#allocation5 + $0x330] sm:$0xff]
    %v3270 = vld [vmem:[#allocation5 + $0x338] sm:$0xff]
    %v3271 = vld [vmem:[#allocation5 + $0x340] sm:$0xff]
    %v3272 = vld [vmem:[#allocation5 + $0x348] sm:$0xff]
    %v3273 = vld [vmem:[#allocation5 + $0x350] sm:$0xff]
    %v3274 = vld [vmem:[#allocation5 + $0x358] sm:$0xff]
    %v3275 = vld [vmem:[#allocation5 + $0x360] sm:$0xff]
    %v3276 = vld [vmem:[#allocation5 + $0x368] sm:$0xff]
    %v3277 = vld [vmem:[#allocation5 + $0x370] sm:$0xff]
    %v3278 = vld [vmem:[#allocation5 + $0x378] sm:$0xff]
    %v3279 = vld [vmem:[#allocation5 + $0x380] sm:$0xff]
    %v3280 = vld [vmem:[#allocation5 + $0x388] sm:$0xff]
    %v3281 = vld [vmem:[#allocation5 + $0x390] sm:$0xff]
    %v3282 = vld [vmem:[#allocation5 + $0x398] sm:$0xff]
    %v3283 = vld [vmem:[#allocation5 + $0x3a0] sm:$0xff]
    %v3284 = vld [vmem:[#allocation5 + $0x3a8] sm:$0xff]
    %v3285 = vld [vmem:[#allocation5 + $0x3b0] sm:$0xff]
    %v3286 = vld [vmem:[#allocation5 + $0x3b8] sm:$0xff]
    %v3287 = vld [vmem:[#allocation5 + $0x3c0] sm:$0xff]
    %v3288 = vld [vmem:[#allocation5 + $0x3c8] sm:$0xff]
    %v3289 = vld [vmem:[#allocation5 + $0x3d0] sm:$0xff]
    %v3290 = vld [vmem:[#allocation5 + $0x3d8] sm:$0xff]
    %v3291 = vld [vmem:[#allocation5 + $0x3e0] sm:$0xff]
    %v3292 = vld [vmem:[#allocation5 + $0x3e8] sm:$0xff]
    %v3293 = vld [vmem:[#allocation5 + $0x3f0] sm:$0xff]
    %v3294 = vld [vmem:[#allocation5 + $0x3f8] sm:$0xff]
    %3295 = vmatprep.subr.mxu0 %v3228
    %3296 = vmatpush1.msra.mxu0 %v3227
    %3297 = vmatprep.subr.mxu0 %v3224
    %3298 = vmatpush1.msra.mxu0 %v3223
    %3299 = vmatprep.subr.mxu0 %v3220
    %3300 = vmatpush1.msra.mxu0 %v3219
    %3301 = vmatprep.subr.mxu0 %v3216
    %3302 = vmatpush1.msra.mxu0 %v3215
    %3303 = vmatprep.subr.mxu0 %v3212
    %3304 = vmatpush1.msra.mxu0 %v3211
    %3305 = vmatprep.subr.mxu0 %v3208
    %3306 = vmatpush1.msra.mxu0 %v3207
    %3307 = vmatprep.subr.mxu0 %v3204
    %3308 = vmatpush1.msra.mxu0 %v3203
    %3309 = vmatprep.subr.mxu0 %v3200
    %3310 = vmatpush1.msra.mxu0 %v3199
    %3311 = vmatprep.subr.mxu0 %v3196
    %3312 = vmatpush1.msra.mxu0 %v3195
    %3313 = vmatprep.subr.mxu0 %v3192
    %3314 = vmatpush1.msra.mxu0 %v3191
    %3315 = vmatprep.subr.mxu0 %v3188
    %3316 = vmatpush1.msra.mxu0 %v3187
    %3317 = vmatprep.subr.mxu0 %v3184
    %3318 = vmatpush1.msra.mxu0 %v3183
    %3319 = vmatprep.subr.mxu0 %v3180
    %3320 = vmatpush1.msra.mxu0 %v3179
    %3321 = vmatprep.subr.mxu0 %v3176
    %3322 = vmatpush1.msra.mxu0 %v3175
    %3323 = vmatprep.subr.mxu0 %v3172
    %3324 = vmatpush1.msra.mxu0 %v3171
    %3325 = vmatprep.subr.mxu0 %v3168
    %3326 = vmatpush1.msra.mxu0 %v3167
    %3327 = vmatprep.subr.mxu0 %v3292
    %3328 = vmatpush2.msra.mxu0 %v3291
    %3329 = vmatprep.subr.mxu0 %v3288
    %3330 = vmatpush2.msra.mxu0 %v3287
    %3331 = vmatprep.subr.mxu0 %v3284
    %3332 = vmatpush2.msra.mxu0 %v3283
    %3333 = vmatprep.subr.mxu0 %v3280
    %3334 = vmatpush2.msra.mxu0 %v3279
    %3335 = vmatprep.subr.mxu0 %v3276
    %3336 = vmatpush2.msra.mxu0 %v3275
    %3337 = vmatprep.subr.mxu0 %v3272
    %3338 = vmatpush2.msra.mxu0 %v3271
    %3339 = vmatprep.subr.mxu0 %v3268
    %3340 = vmatpush2.msra.mxu0 %v3267
    %3341 = vmatprep.subr.mxu0 %v3264
    %3342 = vmatpush2.msra.mxu0 %v3263
    %3343 = vmatprep.subr.mxu0 %v3260
    %3344 = vmatpush2.msra.mxu0 %v3259
    %3345 = vmatprep.subr.mxu0 %v3256
    %3346 = vmatpush2.msra.mxu0 %v3255
    %3347 = vmatprep.subr.mxu0 %v3252
    %3348 = vmatpush2.msra.mxu0 %v3251
    %3349 = vmatprep.subr.mxu0 %v3248
    %3350 = vmatpush2.msra.mxu0 %v3247
    %3351 = vmatprep.subr.mxu0 %v3244
    %3352 = vmatpush2.msra.mxu0 %v3243
    %3353 = vmatprep.subr.mxu0 %v3240
    %3354 = vmatpush2.msra.mxu0 %v3239
    %3355 = vmatprep.subr.mxu0 %v3236
    %3356 = vmatpush2.msra.mxu0 %v3235
    %3357 = vmatprep.subr.mxu0 %v3232
    %3358 = vmatpush2.msra.mxu0 %v3231
    %3359 = vmatprep.mubr.f32.mxu0 %v3147
    %3360 = vmatmul.mubr.f32.gmra.mxu0 %v3166
    %v3361 = vpop.f32.mrf.mxu0
    %v3362 = vadd.f32 0.0, %v3361
    %v3363 = vpop.f32.mrf.mxu0
    %v3364 = vadd.f32 0.0, %v3363
    %3365 = vdwg.mxu0
    %3366 = vmatprep.subr.mxu0 %v3230
    %3367 = vmatpush1.msra.mxu0 %v3229
    %3368 = vmatprep.subr.mxu0 %v3226
    %3369 = vmatpush1.msra.mxu0 %v3225
    %3370 = vmatprep.subr.mxu0 %v3222
    %3371 = vmatpush1.msra.mxu0 %v3221
    %3372 = vmatprep.subr.mxu0 %v3218
    %3373 = vmatpush1.msra.mxu0 %v3217
    %3374 = vmatprep.subr.mxu0 %v3214
    %3375 = vmatpush1.msra.mxu0 %v3213
    %3376 = vmatprep.subr.mxu0 %v3210
    %3377 = vmatpush1.msra.mxu0 %v3209
    %3378 = vmatprep.subr.mxu0 %v3206
    %3379 = vmatpush1.msra.mxu0 %v3205
    %3380 = vmatprep.subr.mxu0 %v3202
    %3381 = vmatpush1.msra.mxu0 %v3201
    %3382 = vmatprep.subr.mxu0 %v3198
    %3383 = vmatpush1.msra.mxu0 %v3197
    %3384 = vmatprep.subr.mxu0 %v3194
    %3385 = vmatpush1.msra.mxu0 %v3193
    %3386 = vmatprep.subr.mxu0 %v3190
    %3387 = vmatpush1.msra.mxu0 %v3189
    %3388 = vmatprep.subr.mxu0 %v3186
    %3389 = vmatpush1.msra.mxu0 %v3185
    %3390 = vmatprep.subr.mxu0 %v3182
    %3391 = vmatpush1.msra.mxu0 %v3181
    %3392 = vmatprep.subr.mxu0 %v3178
    %3393 = vmatpush1.msra.mxu0 %v3177
    %3394 = vmatprep.subr.mxu0 %v3174
    %3395 = vmatpush1.msra.mxu0 %v3173
    %3396 = vmatprep.subr.mxu0 %v3170
    %3397 = vmatpush1.msra.mxu0 %v3169
    %3398 = vmatprep.subr.mxu0 %v3294
    %3399 = vmatpush2.msra.mxu0 %v3293
    %3400 = vmatprep.subr.mxu0 %v3290
    %3401 = vmatpush2.msra.mxu0 %v3289
    %3402 = vmatprep.subr.mxu0 %v3286
    %3403 = vmatpush2.msra.mxu0 %v3285
    %3404 = vmatprep.subr.mxu0 %v3282
    %3405 = vmatpush2.msra.mxu0 %v3281
    %3406 = vmatprep.subr.mxu0 %v3278
    %3407 = vmatpush2.msra.mxu0 %v3277
    %3408 = vmatprep.subr.mxu0 %v3274
    %3409 = vmatpush2.msra.mxu0 %v3273
    %3410 = vmatprep.subr.mxu0 %v3270
    %3411 = vmatpush2.msra.mxu0 %v3269
    %3412 = vmatprep.subr.mxu0 %v3266
    %3413 = vmatpush2.msra.mxu0 %v3265
    %3414 = vmatprep.subr.mxu0 %v3262
    %3415 = vmatpush2.msra.mxu0 %v3261
    %3416 = vmatprep.subr.mxu0 %v3258
    %3417 = vmatpush2.msra.mxu0 %v3257
    %3418 = vmatprep.subr.mxu0 %v3254
    %3419 = vmatpush2.msra.mxu0 %v3253
    %3420 = vmatprep.subr.mxu0 %v3250
    %3421 = vmatpush2.msra.mxu0 %v3249
    %3422 = vmatprep.subr.mxu0 %v3246
    %3423 = vmatpush2.msra.mxu0 %v3245
    %3424 = vmatprep.subr.mxu0 %v3242
    %3425 = vmatpush2.msra.mxu0 %v3241
    %3426 = vmatprep.subr.mxu0 %v3238
    %3427 = vmatpush2.msra.mxu0 %v3237
    %3428 = vmatprep.subr.mxu0 %v3234
    %3429 = vmatpush2.msra.mxu0 %v3233
    %3430 = vmatprep.mubr.f32.mxu0 %v3147
    %3431 = vmatmul.mubr.f32.gmra.mxu0 %v3166
    %v3432 = vpop.f32.mrf.mxu0
    %v3433 = vadd.f32 0.0, %v3432
    %v3434 = vpop.f32.mrf.mxu0
    %v3435 = vadd.f32 0.0, %v3434
    %3436 = vdwg.mxu0
    %v3437 = vxor.u32 %v3362, 2147483648
    %v3438 = vmul.f32 %v3437, 1.442695
    %v3439 = vpow.pop %v3438
    %v3440 = vadd.f32 %v3439, 1.0
    %v3441 = vrcp.pop %v3440
    %v3442 = vmul.f32 1.0, %v3441
    %v3443 = vxor.u32 %v3364, 2147483648
    %v3444 = vmul.f32 %v3443, 1.442695
    %v3445 = vpow.pop %v3444
    %v3446 = vadd.f32 %v3445, 1.0
    %v3447 = vrcp.pop %v3446
    %v3448 = vmul.f32 1.0, %v3447
    %v3449 = vtanh.pop %v3433
    %v3450 = vxor.u32 %v3435, 2147483648
    %v3451 = vmul.f32 %v3450, 1.442695
    %v3452 = vpow.pop %v3451
    %v3453 = vadd.f32 %v3452, 1.0
    %v3454 = vrcp.pop %v3453
    %v3455 = vmul.f32 1.0, %v3454
    %v3456 = vmul.f32 %v3448, %v3145
    %v3457 = vmul.f32 %v3442, %v3449
    %v3458 = vadd.f32 %v3456, %v3457
    %v3459 = vtanh.pop %v3458
    %v3460 = vmul.f32 %v3455, %v3459
    %3461 = vst [vmem:[#allocation3 + $0xb] sm:$0x1] %v3460
    %v3462 = vld [vmem:[#allocation3] sm:$0xff]
    %v3463 = vld [vmem:[#allocation3 + $0x8] sm:$0xf]
    %3465 = vset.pattern.permute.xlu0 0
    %3466 = vperm.xlu0 %3465, %v43
    %v3467 = vpop.permute.xlu0 %3466
    %v3469 = vlaneseq
    %v3470 = vshrl.u32 %v3469, 7
    %v3471 = vsub.s32 0, %v3470
    %v3472 = vrot.slane %v3467, %v3471
    %3473 = vmatprep.subr.mxu0 0.0
    %3474 = vmatpush1.xpose.msra.mxu0 0.0
    %3475 = vmatprep.subr.mxu0 0.0
    %3476 = vmatpush1.xpose.msra.mxu0 0.0
    %3477 = vmatprep.subr.mxu0 0.0
    %3478 = vmatpush1.xpose.msra.mxu0 0.0
    %3479 = vmatprep.subr.mxu0 0.0
    %3480 = vmatpush1.xpose.msra.mxu0 0.0
    %3481 = vmatprep.subr.mxu0 0.0
    %3482 = vmatpush1.xpose.msra.mxu0 0.0
    %3483 = vmatprep.subr.mxu0 0.0
    %3484 = vmatpush1.xpose.msra.mxu0 0.0
    %3485 = vmatprep.subr.mxu0 0.0
    %3486 = vmatpush1.xpose.msra.mxu0 0.0
    %3487 = vmatprep.subr.mxu0 0.0
    %3488 = vmatpush1.xpose.msra.mxu0 0.0
    %3489 = vmatprep.subr.mxu0 0.0
    %3490 = vmatpush1.xpose.msra.mxu0 0.0
    %3491 = vmatprep.subr.mxu0 0.0
    %3492 = vmatpush1.xpose.msra.mxu0 0.0
    %3493 = vmatprep.subr.mxu0 0.0
    %3494 = vmatpush1.xpose.msra.mxu0 0.0
    %3495 = vmatprep.subr.mxu0 0.0
    %3496 = vmatpush1.xpose.msra.mxu0 0.0
    %3497 = vmatprep.subr.mxu0 0.0
    %3498 = vmatpush1.xpose.msra.mxu0 0.0
    %3499 = vmatprep.subr.mxu0 0.0
    %3500 = vmatpush1.xpose.msra.mxu0 0.0
    %3501 = vmatprep.subr.mxu0 0.0
    %3502 = vmatpush1.xpose.msra.mxu0 %v3463
    %3503 = vmatprep.subr.mxu0 0.0
    %3504 = vmatpush1.xpose.msra.mxu0 %v3462
    %3505 = vmatprep.subr.mxu0 0.0
    %3506 = vmatpush2.xpose.msra.mxu0 0.0
    %3507 = vmatprep.subr.mxu0 0.0
    %3508 = vmatpush2.xpose.msra.mxu0 0.0
    %3509 = vmatprep.subr.mxu0 0.0
    %3510 = vmatpush2.xpose.msra.mxu0 0.0
    %3511 = vmatprep.subr.mxu0 0.0
    %3512 = vmatpush2.xpose.msra.mxu0 0.0
    %3513 = vmatprep.subr.mxu0 0.0
    %3514 = vmatpush2.xpose.msra.mxu0 0.0
    %3515 = vmatprep.subr.mxu0 0.0
    %3516 = vmatpush2.xpose.msra.mxu0 0.0
    %3517 = vmatprep.subr.mxu0 0.0
    %3518 = vmatpush2.xpose.msra.mxu0 0.0
    %3519 = vmatprep.subr.mxu0 0.0
    %3520 = vmatpush2.xpose.msra.mxu0 0.0
    %3521 = vmatprep.subr.mxu0 0.0
    %3522 = vmatpush2.xpose.msra.mxu0 0.0
    %3523 = vmatprep.subr.mxu0 0.0
    %3524 = vmatpush2.xpose.msra.mxu0 0.0
    %3525 = vmatprep.subr.mxu0 0.0
    %3526 = vmatpush2.xpose.msra.mxu0 0.0
    %3527 = vmatprep.subr.mxu0 0.0
    %3528 = vmatpush2.xpose.msra.mxu0 0.0
    %3529 = vmatprep.subr.mxu0 0.0
    %3530 = vmatpush2.xpose.msra.mxu0 0.0
    %3531 = vmatprep.subr.mxu0 0.0
    %3532 = vmatpush2.xpose.msra.mxu0 0.0
    %3533 = vmatprep.subr.mxu0 0.0
    %3534 = vmatpush2.xpose.msra.mxu0 0.0
    %3535 = vmatprep.subr.mxu0 0.0
    %3536 = vmatpush2.xpose.msra.mxu0 0.0
    %3537 = vmatprep.mubr.f32.mxu0 0.0
    %3538 = vmatmul.mubr.f32.gmra.mxu0 %v42
    %v3539 = vpop.f32.mrf.mxu0
    %v3540 = vadd.f32 %v3472, %v3539
    %v3541 = vpop.f32.mrf.mxu0
    %3542 = vdwg.mxu0
    %vm3543 = vcmask 90112
    %3544 = vst.msk [vmem:[#allocation8] sm:$0x1] %vm3543, %v3540
    // Predicated region
    $region30: #{tpu_custom_call.1} parent=1 // pred_check
      _
    $region31: #{tpu_custom_call.1} parent=1 // pred_check_branch
      %3546 = sbr.rel (0) target = $region33
    $region32: #{tpu_custom_call.1} parent=1 // pred_region
      %s3548 = ssub.s32 16, 16
      %3549 = vsyncadd [#allocation7], %s3548
      %s3551 = sshll.u32 [#allocation8], 4
      %s3552 = int_to_ptr.vmem [resolvable:$true] %s3551
      %3554 = dma.vmem_to_hbm [thread:$0]  %s3552, 16, %s6, [#allocation7]
    $region33: #{tpu_custom_call.1} parent=1 // pred_fallthru
      _
    // Predicated region
    $region34: #{tpu_custom_call.1} parent=1 // pred_check
      _
    $region35: #{tpu_custom_call.1} parent=1 // pred_check_branch
      %3556 = sbr.rel (0) target = $region37
    $region36: #{tpu_custom_call.1} parent=1 // pred_region
      %3557 = dma.done [#allocation7], 16
    $region37: #{tpu_custom_call.1} parent=1 // pred_fallthru
      _
    %3558 = vsyncpa [#allocation6], 1
    %3559 = vsyncpa [#allocation7], 1

</llo_original>
